<compile_context>
chip_gen: v7x
topology: tpu7x:2x2x1
jax: 0.10.0
libtpu: 0.0.40
codegen_flags: <defaults>
</compile_context>

<pallas_src>
import functools

import jax
import jax.numpy as jnp
import numpy as np
from jax.experimental import pallas as pl
from jax.experimental.pallas import tpu as pltpu


KPAD = 128  # lane width of the packed state / transfer operators


def _round_up(v, m):
    return ((v + m - 1) // m) * m


# ----------------------------------------------------------------------------
# Parameter construction (deterministic, mirrors ImprovedMPS.__init__)
# ----------------------------------------------------------------------------
def init_mps_tensors(key, num_sites, phys_dim, bond_dim):
    """Replicates _initialize_tensors (QR-orthogonal init)."""
    tensors = []
    current_bond = 1
    for i in range(num_sites):
        if i == 0:
            next_bond = min(bond_dim, phys_dim)
            shape = (1, phys_dim, next_bond)
            current_bond = next_bond
        elif i == num_sites - 1:
            shape = (current_bond, phys_dim, 1)
        else:
            next_bond = min(bond_dim, current_bond * phys_dim)
            shape = (current_bond, phys_dim, next_bond)
            current_bond = next_bond
        key, sub = jax.random.split(key)
        left_dim = shape[0] * shape[1]
        right_dim = shape[2]
        matrix = jax.random.normal(sub, (left_dim, right_dim), jnp.float32) * 0.1
        if left_dim >= right_dim:
            q, _ = jnp.linalg.qr(matrix)
            tensor = q.reshape(shape)
        else:
            q, _ = jnp.linalg.qr(matrix.T)
            tensor = q.T.reshape(shape)
        tensors.append(tensor)
    return tensors


def canonical_form(tensors):
    """Replicates _canonical_form (left-orthogonalization sweep)."""
    tensors = list(tensors)
    for i in range(len(tensors) - 1):
        t = tensors[i]
        l, p, r = t.shape
        q, rmat = jnp.linalg.qr(t.reshape(l * p, r))
        tensors[i] = q.reshape(l, p, q.shape[1])
        nt = tensors[i + 1]
        nl, np_, nr = nt.shape
        new_next = (rmat @ nt.reshape(nl, np_ * nr)).reshape(rmat.shape[0], np_, nr)
        tensors[i + 1] = new_next
    return tensors


# ----------------------------------------------------------------------------
# Host-side packing of the MPS into block-diagonal lane-dense operators
# ----------------------------------------------------------------------------
def pack_mps_operators(tensors, phys_dim, bond_dim, dtype=jnp.float32):
    """Returns (m0, r, a):

      m0 : (XW, 128)        site-0 fold:   state_1      = x_compact @ m0
      r  : (S-1, XW, 128)   replication:   x_rep_s      = x_compact @ r[s-1]
      a  : (S-1, 128, 128)  transfer:      state_{s+1}  = (state_s * x_rep_s) @ a[s-1]

    Per-group (sample) layout inside the 128 lanes: lane = g*Wg + p*L + l,
    with Wg = P*L and G = 128 // Wg batch groups.  Operators are kron(I_G, block).
    """
    S = len(tensors)
    P, L = phys_dim, bond_dim
    Wg = P * L
    assert S >= 2, "need at least two sites"
    assert Wg <= KPAD, "phys_dim * bond_dim must fit in 128 lanes"
    G = KPAD // Wg                    # batch samples packed per row
    SP = S * P
    XW = _round_up(G * SP, KPAD)      # lane width of the compact input tile

    t_np = [np.asarray(t, np.float32) for t in tensors]

    def padded(t):
        out = np.zeros((L, P, L), np.float32)
        out[: t.shape[0], :, : t.shape[2]] = t
        return out

    # ---- single-group (small) blocks --------------------------------------
    # Site-0 fold (left bond = 1, left vector = 1):
    #   m0_small[0*P + p, p2*L + d] = A0[0, p, d]   for all p2 (output replication).
    A0 = padded(t_np[0])
    m0_small = np.zeros((SP, Wg), np.float32)
    for p in range(P):
        for p2 in range(P):
            m0_small[p, p2 * L:(p2 + 1) * L] = A0[0, p, :]

    # Replication selectors for sites 1..S-1:
    #   r_small[s-1, s*P + p, p*L + l] = 1  (copies x[b,s,p] over the L lanes of p).
    r_small = np.zeros((S - 1, SP, Wg), np.float32)
    for s in range(1, S):
        for p in range(P):
            r_small[s - 1, s * P + p, p * L:(p + 1) * L] = 1.0

    # Folded transfer matrices for sites 1..S-1:
    #   a_small[s-1, p*L + l, p2*L + d] = A_s[l, p, d]  (broadcast over p2).
    a_small = np.zeros((S - 1, Wg, Wg), np.float32)
    for s in range(1, S):
        As = padded(t_np[s])
        for p in range(P):
            for p2 in range(P):
                a_small[s - 1, p * L:(p + 1) * L, p2 * L:(p2 + 1) * L] = As[:, p, :]

    # ---- block-diagonal expansion over the G batch groups ------------------
    eye = np.eye(G, dtype=np.float32)

    def expand(small, nrows, ncols):
        big = np.kron(eye, small)
        out = np.zeros((nrows, ncols), np.float32)
        out[: big.shape[0], : big.shape[1]] = big
        return out

    m0 = expand(m0_small, XW, KPAD)
    r = np.stack([expand(r_small[i], XW, KPAD) for i in range(S - 1)], axis=0)
    a = np.stack([expand(a_small[i], KPAD, KPAD) for i in range(S - 1)], axis=0)

    return (jnp.asarray(m0, dtype=dtype),
            jnp.asarray(r, dtype=dtype),
            jnp.asarray(a, dtype=dtype))


# ----------------------------------------------------------------------------
# Pallas kernel: sequential MPS contraction, 16 batch groups per row,
# two independent half-tile chains (hides MRF latency on v5e/v6e).
# ----------------------------------------------------------------------------
def mps_kernel(x_ref, m0_ref, r_ref, a_ref, out_ref, *, num_sites, n_split):
    TB = out_ref.shape[0]
    hb = TB // n_split
    w_dtype = m0_ref.dtype

    def mm(lhs, rhs):
        # f32 accumulation regardless of operand dtype (bf16 operands optional).
        return jnp.dot(lhs.astype(w_dtype), rhs, preferred_element_type=jnp.float32)

    m0 = m0_ref[...]
    xs = [x_ref[pl.ds(h * hb, hb), :] for h in range(n_split)]

    # Site 0 folded into m0: state_1 = x_compact @ m0   (no init iota, no multiply)
    states = [mm(xh, m0) for xh in xs]

    # Static unroll over the remaining sites (num_sites is small).
    for s in range(1, num_sites):
        rep = r_ref[s - 1]
        trf = a_ref[s - 1]
        xrs = [mm(xh, rep) for xh in xs]                    # MXU (independent of state)
        states = [mm(st * xr, trf)                          # VPU f32 mul + MXU
                  for st, xr in zip(states, xrs)]

    for h in range(n_split):
        out_ref[pl.ds(h * hb, hb), :] = states[h]           # lane-dense f32 store


def mps_forward(x, packed, *, num_sites, phys_dim, bond_dim,
                block_rows=256, n_split=2):
    """x: (B, S, P) float32; packed = pack_mps_operators(...). Returns (B, 1) f32."""
    m0, r, a = packed
    B, S, P = x.shape
    assert S == num_sites and P == phys_dim and S >= 2
    L = bond_dim
    Wg = P * L
    G = KPAD // Wg
    SP = S * P
    XW = _round_up(G * SP, KPAD)
    w_dtype = m0.dtype

    # Row tiling: each row carries G samples; tiles are multiples of 8*n_split
    # sublanes so the half-tile split stays sublane-aligned.
    rows = -(-B // G)
    align = 8 * max(1, n_split)
    TBr = _round_up(min(block_rows, _round_up(rows, align)), align)
    rows_pad = _round_up(rows, TBr)
    Bp = rows_pad * G

    # Compact lane-dense input: x_compact[row, g*S*P + s*P + p] = x[row*G + g, s, p]
    xp = jnp.pad(x.astype(jnp.float32), ((0, Bp - B), (0, 0), (0, 0)))
    x_compact = xp.reshape(rows_pad, G * SP)
    if XW > G * SP:
        x_compact = jnp.pad(x_compact, ((0, 0), (0, XW - G * SP)))
    x_compact = x_compact.astype(w_dtype)

    kernel = functools.partial(mps_kernel, num_sites=num_sites, n_split=n_split)
    out = pl.pallas_call(
        kernel,
        out_shape=jax.ShapeDtypeStruct((rows_pad, KPAD), jnp.float32),
        grid=(rows_pad // TBr,),
        in_specs=[
            pl.BlockSpec((TBr, XW), lambda i: (i, 0)),            # compact x, batch-tiled
            pl.BlockSpec((XW, KPAD), lambda i: (0, 0)),           # site-0 fold, resident
            pl.BlockSpec((S - 1, XW, KPAD), lambda i: (0, 0, 0)),  # replication, resident
            pl.BlockSpec((S - 1, KPAD, KPAD), lambda i: (0, 0, 0)),  # transfer, resident
        ],
        out_specs=pl.BlockSpec((TBr, KPAD), lambda i: (i, 0)),
        compiler_params=pltpu.CompilerParams(
            dimension_semantics=("parallel",),                    # megacore on v7x
        ),
    )(x_compact, m0, r, a)

    # Result for sample b = row*G + g sits at lane g*Wg (p'=0, final bond d=0).
    res = out.reshape(rows_pad, G, Wg)[:, :, 0].reshape(-1)[:B]
    return res[:, None]


# ----------------------------------------------------------------------------
# Pure-JAX reference (mirrors ImprovedMPS.forward exactly)
# ----------------------------------------------------------------------------
def mps_forward_ref(x, tensors):
    B = x.shape[0]
    left = jnp.ones((B, 1), x.dtype)
    for i, A in enumerate(tensors):
        x_i = x[:, i, :]
        contracted = jnp.einsum('bp,lpd->bld', x_i, A)
        left = jnp.einsum('bl,bld->bd', left, contracted)
    return left


if __name__ == "__main__":
    num_sites = 8
    phys_dim = 2
    bond_dim = 4
    batch = 1000          # non-multiple of 16 to exercise the padding path

    key = jax.random.PRNGKey(0)
    k_param, k_x = jax.random.split(key)

    tensors = canonical_form(init_mps_tensors(k_param, num_sites, phys_dim, bond_dim))
    x = jax.random.normal(k_x, (batch, num_sites, phys_dim), jnp.float32)

    ref = jax.block_until_ready(mps_forward_ref(x, tensors))
    ref_np = np.asarray(ref)

    # f32-operand path (strict check). block_rows=32 -> grid of 2 at this batch;
    # for large batches use the default block_rows=256 (4096 samples / tile).
    packed_f32 = pack_mps_operators(tensors, phys_dim, bond_dim, dtype=jnp.float32)
    out_f32 = mps_forward(x, packed_f32, num_sites=num_sites, phys_dim=phys_dim,
                          bond_dim=bond_dim, block_rows=32, n_split=2)
    out_f32 = jax.block_until_ready(out_f32)
    np.testing.assert_allclose(np.asarray(out_f32), ref_np, rtol=3e-4, atol=1e-5)

    # bf16-operand path (v6e/v7x MXU rate, f32 accumulation) — loose sanity check.
    packed_bf16 = pack_mps_operators(tensors, phys_dim, bond_dim, dtype=jnp.bfloat16)
    out_bf16 = mps_forward(x, packed_bf16, num_sites=num_sites, phys_dim=phys_dim,
                           bond_dim=bond_dim, block_rows=32, n_split=2)
    out_bf16 = jax.block_until_ready(out_bf16)
    rel = (np.linalg.norm(np.asarray(out_bf16) - ref_np) /
           max(np.linalg.norm(ref_np), 1e-12))
    assert rel < 0.1, f"bf16-operand path relative error too large: {rel}"

    print("KERNEL_OK")
</pallas_src>

<mosaic_0001>
module attributes {stable_mosaic.version = 11 : i64} {
  func.func @mps_kernel(%arg0: i32, %arg1: memref<32x256xf32, #tpu.memory_space<vmem>>, %arg2: memref<256x128xf32, #tpu.memory_space<vmem>>, %arg3: memref<7x256x128xf32, #tpu.memory_space<vmem>>, %arg4: memref<7x128x128xf32, #tpu.memory_space<vmem>>, %arg5: memref<32x128xf32, #tpu.memory_space<vmem>>) attributes {dimension_semantics = [#tpu.dimension_semantics<parallel>], iteration_bounds = array<i64: 2>, scalar_prefetch = 0 : i64, scratch_operands = 0 : i64, tpu.core_type = #tpu.core_type<tc>, window_params = [{transform_indices = @transform_0, window_bounds = array<i64: 32, 256>}, {pipeline_mode = #tpu.pipeline_mode<synchronous>, transform_indices = @transform_1, window_bounds = array<i64: 256, 128>}, {pipeline_mode = #tpu.pipeline_mode<synchronous>, transform_indices = @transform_2, window_bounds = array<i64: 7, 256, 128>}, {pipeline_mode = #tpu.pipeline_mode<synchronous>, transform_indices = @transform_3, window_bounds = array<i64: 7, 128, 128>}, {transform_indices = @transform_4, window_bounds = array<i64: 32, 128>}]} {
    %c0 = arith.constant 0 : index
    %c0_0 = arith.constant 0 : index
    %0 = vector.load %arg2[%c0, %c0_0] : memref<256x128xf32, #tpu.memory_space<vmem>>, vector<256x128xf32>
    %c0_1 = arith.constant 0 : index
    %c0_2 = arith.constant 0 : index
    %1 = vector.load %arg1[%c0_1, %c0_2] : memref<32x256xf32, #tpu.memory_space<vmem>>, vector<16x256xf32>
    %c16 = arith.constant 16 : index
    %c0_3 = arith.constant 0 : index
    %2 = vector.load %arg1[%c16, %c0_3] : memref<32x256xf32, #tpu.memory_space<vmem>>, vector<16x256xf32>
    %cst = arith.constant dense<0.000000e+00> : vector<16x128xf32>
    %3 = tpu.matmul %1, %0, %cst {dimension_numbers = #tpu.dot_dimension_numbers<[1], [0], [0], [1], [0, 0, 1, 1], [], []>} : vector<16x256xf32>, vector<256x128xf32>, vector<16x128xf32> -> vector<16x128xf32>
    %cst_4 = arith.constant dense<0.000000e+00> : vector<16x128xf32>
    %4 = tpu.matmul %2, %0, %cst_4 {dimension_numbers = #tpu.dot_dimension_numbers<[1], [0], [0], [1], [0, 0, 1, 1], [], []>} : vector<16x256xf32>, vector<256x128xf32>, vector<16x128xf32> -> vector<16x128xf32>
    %c0_5 = arith.constant 0 : index
    %c0_6 = arith.constant 0 : index
    %c0_7 = arith.constant 0 : index
    %5 = vector.load %arg3[%c0_5, %c0_6, %c0_7] : memref<7x256x128xf32, #tpu.memory_space<vmem>>, vector<1x256x128xf32>
    %6 = vector.shape_cast %5 : vector<1x256x128xf32> to vector<256x128xf32>
    %c0_8 = arith.constant 0 : index
    %c0_9 = arith.constant 0 : index
    %c0_10 = arith.constant 0 : index
    %7 = vector.load %arg4[%c0_8, %c0_9, %c0_10] : memref<7x128x128xf32, #tpu.memory_space<vmem>>, vector<1x128x128xf32>
    %8 = vector.shape_cast %7 : vector<1x128x128xf32> to vector<128x128xf32>
    %cst_11 = arith.constant dense<0.000000e+00> : vector<16x128xf32>
    %9 = tpu.matmul %1, %6, %cst_11 {dimension_numbers = #tpu.dot_dimension_numbers<[1], [0], [0], [1], [0, 0, 1, 1], [], []>} : vector<16x256xf32>, vector<256x128xf32>, vector<16x128xf32> -> vector<16x128xf32>
    %cst_12 = arith.constant dense<0.000000e+00> : vector<16x128xf32>
    %10 = tpu.matmul %2, %6, %cst_12 {dimension_numbers = #tpu.dot_dimension_numbers<[1], [0], [0], [1], [0, 0, 1, 1], [], []>} : vector<16x256xf32>, vector<256x128xf32>, vector<16x128xf32> -> vector<16x128xf32>
    %11 = arith.mulf %3, %9 : vector<16x128xf32>
    %cst_13 = arith.constant dense<0.000000e+00> : vector<16x128xf32>
    %12 = tpu.matmul %11, %8, %cst_13 {dimension_numbers = #tpu.dot_dimension_numbers<[1], [0], [0], [1], [0, 0, 1, 1], [], []>} : vector<16x128xf32>, vector<128x128xf32>, vector<16x128xf32> -> vector<16x128xf32>
    %13 = arith.mulf %4, %10 : vector<16x128xf32>
    %cst_14 = arith.constant dense<0.000000e+00> : vector<16x128xf32>
    %14 = tpu.matmul %13, %8, %cst_14 {dimension_numbers = #tpu.dot_dimension_numbers<[1], [0], [0], [1], [0, 0, 1, 1], [], []>} : vector<16x128xf32>, vector<128x128xf32>, vector<16x128xf32> -> vector<16x128xf32>
    %c1 = arith.constant 1 : index
    %c0_15 = arith.constant 0 : index
    %c0_16 = arith.constant 0 : index
    %15 = vector.load %arg3[%c1, %c0_15, %c0_16] : memref<7x256x128xf32, #tpu.memory_space<vmem>>, vector<1x256x128xf32>
    %16 = vector.shape_cast %15 : vector<1x256x128xf32> to vector<256x128xf32>
    %c1_17 = arith.constant 1 : index
    %c0_18 = arith.constant 0 : index
    %c0_19 = arith.constant 0 : index
    %17 = vector.load %arg4[%c1_17, %c0_18, %c0_19] : memref<7x128x128xf32, #tpu.memory_space<vmem>>, vector<1x128x128xf32>
    %18 = vector.shape_cast %17 : vector<1x128x128xf32> to vector<128x128xf32>
    %cst_20 = arith.constant dense<0.000000e+00> : vector<16x128xf32>
    %19 = tpu.matmul %1, %16, %cst_20 {dimension_numbers = #tpu.dot_dimension_numbers<[1], [0], [0], [1], [0, 0, 1, 1], [], []>} : vector<16x256xf32>, vector<256x128xf32>, vector<16x128xf32> -> vector<16x128xf32>
    %cst_21 = arith.constant dense<0.000000e+00> : vector<16x128xf32>
    %20 = tpu.matmul %2, %16, %cst_21 {dimension_numbers = #tpu.dot_dimension_numbers<[1], [0], [0], [1], [0, 0, 1, 1], [], []>} : vector<16x256xf32>, vector<256x128xf32>, vector<16x128xf32> -> vector<16x128xf32>
    %21 = arith.mulf %12, %19 : vector<16x128xf32>
    %cst_22 = arith.constant dense<0.000000e+00> : vector<16x128xf32>
    %22 = tpu.matmul %21, %18, %cst_22 {dimension_numbers = #tpu.dot_dimension_numbers<[1], [0], [0], [1], [0, 0, 1, 1], [], []>} : vector<16x128xf32>, vector<128x128xf32>, vector<16x128xf32> -> vector<16x128xf32>
    %23 = arith.mulf %14, %20 : vector<16x128xf32>
    %cst_23 = arith.constant dense<0.000000e+00> : vector<16x128xf32>
    %24 = tpu.matmul %23, %18, %cst_23 {dimension_numbers = #tpu.dot_dimension_numbers<[1], [0], [0], [1], [0, 0, 1, 1], [], []>} : vector<16x128xf32>, vector<128x128xf32>, vector<16x128xf32> -> vector<16x128xf32>
    %c2 = arith.constant 2 : index
    %c0_24 = arith.constant 0 : index
    %c0_25 = arith.constant 0 : index
    %25 = vector.load %arg3[%c2, %c0_24, %c0_25] : memref<7x256x128xf32, #tpu.memory_space<vmem>>, vector<1x256x128xf32>
    %26 = vector.shape_cast %25 : vector<1x256x128xf32> to vector<256x128xf32>
    %c2_26 = arith.constant 2 : index
    %c0_27 = arith.constant 0 : index
    %c0_28 = arith.constant 0 : index
    %27 = vector.load %arg4[%c2_26, %c0_27, %c0_28] : memref<7x128x128xf32, #tpu.memory_space<vmem>>, vector<1x128x128xf32>
    %28 = vector.shape_cast %27 : vector<1x128x128xf32> to vector<128x128xf32>
    %cst_29 = arith.constant dense<0.000000e+00> : vector<16x128xf32>
    %29 = tpu.matmul %1, %26, %cst_29 {dimension_numbers = #tpu.dot_dimension_numbers<[1], [0], [0], [1], [0, 0, 1, 1], [], []>} : vector<16x256xf32>, vector<256x128xf32>, vector<16x128xf32> -> vector<16x128xf32>
    %cst_30 = arith.constant dense<0.000000e+00> : vector<16x128xf32>
    %30 = tpu.matmul %2, %26, %cst_30 {dimension_numbers = #tpu.dot_dimension_numbers<[1], [0], [0], [1], [0, 0, 1, 1], [], []>} : vector<16x256xf32>, vector<256x128xf32>, vector<16x128xf32> -> vector<16x128xf32>
    %31 = arith.mulf %22, %29 : vector<16x128xf32>
    %cst_31 = arith.constant dense<0.000000e+00> : vector<16x128xf32>
    %32 = tpu.matmul %31, %28, %cst_31 {dimension_numbers = #tpu.dot_dimension_numbers<[1], [0], [0], [1], [0, 0, 1, 1], [], []>} : vector<16x128xf32>, vector<128x128xf32>, vector<16x128xf32> -> vector<16x128xf32>
    %33 = arith.mulf %24, %30 : vector<16x128xf32>
    %cst_32 = arith.constant dense<0.000000e+00> : vector<16x128xf32>
    %34 = tpu.matmul %33, %28, %cst_32 {dimension_numbers = #tpu.dot_dimension_numbers<[1], [0], [0], [1], [0, 0, 1, 1], [], []>} : vector<16x128xf32>, vector<128x128xf32>, vector<16x128xf32> -> vector<16x128xf32>
    %c3 = arith.constant 3 : index
    %c0_33 = arith.constant 0 : index
    %c0_34 = arith.constant 0 : index
    %35 = vector.load %arg3[%c3, %c0_33, %c0_34] : memref<7x256x128xf32, #tpu.memory_space<vmem>>, vector<1x256x128xf32>
    %36 = vector.shape_cast %35 : vector<1x256x128xf32> to vector<256x128xf32>
    %c3_35 = arith.constant 3 : index
    %c0_36 = arith.constant 0 : index
    %c0_37 = arith.constant 0 : index
    %37 = vector.load %arg4[%c3_35, %c0_36, %c0_37] : memref<7x128x128xf32, #tpu.memory_space<vmem>>, vector<1x128x128xf32>
    %38 = vector.shape_cast %37 : vector<1x128x128xf32> to vector<128x128xf32>
    %cst_38 = arith.constant dense<0.000000e+00> : vector<16x128xf32>
    %39 = tpu.matmul %1, %36, %cst_38 {dimension_numbers = #tpu.dot_dimension_numbers<[1], [0], [0], [1], [0, 0, 1, 1], [], []>} : vector<16x256xf32>, vector<256x128xf32>, vector<16x128xf32> -> vector<16x128xf32>
    %cst_39 = arith.constant dense<0.000000e+00> : vector<16x128xf32>
    %40 = tpu.matmul %2, %36, %cst_39 {dimension_numbers = #tpu.dot_dimension_numbers<[1], [0], [0], [1], [0, 0, 1, 1], [], []>} : vector<16x256xf32>, vector<256x128xf32>, vector<16x128xf32> -> vector<16x128xf32>
    %41 = arith.mulf %32, %39 : vector<16x128xf32>
    %cst_40 = arith.constant dense<0.000000e+00> : vector<16x128xf32>
    %42 = tpu.matmul %41, %38, %cst_40 {dimension_numbers = #tpu.dot_dimension_numbers<[1], [0], [0], [1], [0, 0, 1, 1], [], []>} : vector<16x128xf32>, vector<128x128xf32>, vector<16x128xf32> -> vector<16x128xf32>
    %43 = arith.mulf %34, %40 : vector<16x128xf32>
    %cst_41 = arith.constant dense<0.000000e+00> : vector<16x128xf32>
    %44 = tpu.matmul %43, %38, %cst_41 {dimension_numbers = #tpu.dot_dimension_numbers<[1], [0], [0], [1], [0, 0, 1, 1], [], []>} : vector<16x128xf32>, vector<128x128xf32>, vector<16x128xf32> -> vector<16x128xf32>
    %c4 = arith.constant 4 : index
    %c0_42 = arith.constant 0 : index
    %c0_43 = arith.constant 0 : index
    %45 = vector.load %arg3[%c4, %c0_42, %c0_43] : memref<7x256x128xf32, #tpu.memory_space<vmem>>, vector<1x256x128xf32>
    %46 = vector.shape_cast %45 : vector<1x256x128xf32> to vector<256x128xf32>
    %c4_44 = arith.constant 4 : index
    %c0_45 = arith.constant 0 : index
    %c0_46 = arith.constant 0 : index
    %47 = vector.load %arg4[%c4_44, %c0_45, %c0_46] : memref<7x128x128xf32, #tpu.memory_space<vmem>>, vector<1x128x128xf32>
    %48 = vector.shape_cast %47 : vector<1x128x128xf32> to vector<128x128xf32>
    %cst_47 = arith.constant dense<0.000000e+00> : vector<16x128xf32>
    %49 = tpu.matmul %1, %46, %cst_47 {dimension_numbers = #tpu.dot_dimension_numbers<[1], [0], [0], [1], [0, 0, 1, 1], [], []>} : vector<16x256xf32>, vector<256x128xf32>, vector<16x128xf32> -> vector<16x128xf32>
    %cst_48 = arith.constant dense<0.000000e+00> : vector<16x128xf32>
    %50 = tpu.matmul %2, %46, %cst_48 {dimension_numbers = #tpu.dot_dimension_numbers<[1], [0], [0], [1], [0, 0, 1, 1], [], []>} : vector<16x256xf32>, vector<256x128xf32>, vector<16x128xf32> -> vector<16x128xf32>
    %51 = arith.mulf %42, %49 : vector<16x128xf32>
    %cst_49 = arith.constant dense<0.000000e+00> : vector<16x128xf32>
    %52 = tpu.matmul %51, %48, %cst_49 {dimension_numbers = #tpu.dot_dimension_numbers<[1], [0], [0], [1], [0, 0, 1, 1], [], []>} : vector<16x128xf32>, vector<128x128xf32>, vector<16x128xf32> -> vector<16x128xf32>
    %53 = arith.mulf %44, %50 : vector<16x128xf32>
    %cst_50 = arith.constant dense<0.000000e+00> : vector<16x128xf32>
    %54 = tpu.matmul %53, %48, %cst_50 {dimension_numbers = #tpu.dot_dimension_numbers<[1], [0], [0], [1], [0, 0, 1, 1], [], []>} : vector<16x128xf32>, vector<128x128xf32>, vector<16x128xf32> -> vector<16x128xf32>
    %c5 = arith.constant 5 : index
    %c0_51 = arith.constant 0 : index
    %c0_52 = arith.constant 0 : index
    %55 = vector.load %arg3[%c5, %c0_51, %c0_52] : memref<7x256x128xf32, #tpu.memory_space<vmem>>, vector<1x256x128xf32>
    %56 = vector.shape_cast %55 : vector<1x256x128xf32> to vector<256x128xf32>
    %c5_53 = arith.constant 5 : index
    %c0_54 = arith.constant 0 : index
    %c0_55 = arith.constant 0 : index
    %57 = vector.load %arg4[%c5_53, %c0_54, %c0_55] : memref<7x128x128xf32, #tpu.memory_space<vmem>>, vector<1x128x128xf32>
    %58 = vector.shape_cast %57 : vector<1x128x128xf32> to vector<128x128xf32>
    %cst_56 = arith.constant dense<0.000000e+00> : vector<16x128xf32>
    %59 = tpu.matmul %1, %56, %cst_56 {dimension_numbers = #tpu.dot_dimension_numbers<[1], [0], [0], [1], [0, 0, 1, 1], [], []>} : vector<16x256xf32>, vector<256x128xf32>, vector<16x128xf32> -> vector<16x128xf32>
    %cst_57 = arith.constant dense<0.000000e+00> : vector<16x128xf32>
    %60 = tpu.matmul %2, %56, %cst_57 {dimension_numbers = #tpu.dot_dimension_numbers<[1], [0], [0], [1], [0, 0, 1, 1], [], []>} : vector<16x256xf32>, vector<256x128xf32>, vector<16x128xf32> -> vector<16x128xf32>
    %61 = arith.mulf %52, %59 : vector<16x128xf32>
    %cst_58 = arith.constant dense<0.000000e+00> : vector<16x128xf32>
    %62 = tpu.matmul %61, %58, %cst_58 {dimension_numbers = #tpu.dot_dimension_numbers<[1], [0], [0], [1], [0, 0, 1, 1], [], []>} : vector<16x128xf32>, vector<128x128xf32>, vector<16x128xf32> -> vector<16x128xf32>
    %63 = arith.mulf %54, %60 : vector<16x128xf32>
    %cst_59 = arith.constant dense<0.000000e+00> : vector<16x128xf32>
    %64 = tpu.matmul %63, %58, %cst_59 {dimension_numbers = #tpu.dot_dimension_numbers<[1], [0], [0], [1], [0, 0, 1, 1], [], []>} : vector<16x128xf32>, vector<128x128xf32>, vector<16x128xf32> -> vector<16x128xf32>
    %c6 = arith.constant 6 : index
    %c0_60 = arith.constant 0 : index
    %c0_61 = arith.constant 0 : index
    %65 = vector.load %arg3[%c6, %c0_60, %c0_61] : memref<7x256x128xf32, #tpu.memory_space<vmem>>, vector<1x256x128xf32>
    %66 = vector.shape_cast %65 : vector<1x256x128xf32> to vector<256x128xf32>
    %c6_62 = arith.constant 6 : index
    %c0_63 = arith.constant 0 : index
    %c0_64 = arith.constant 0 : index
    %67 = vector.load %arg4[%c6_62, %c0_63, %c0_64] : memref<7x128x128xf32, #tpu.memory_space<vmem>>, vector<1x128x128xf32>
    %68 = vector.shape_cast %67 : vector<1x128x128xf32> to vector<128x128xf32>
    %cst_65 = arith.constant dense<0.000000e+00> : vector<16x128xf32>
    %69 = tpu.matmul %1, %66, %cst_65 {dimension_numbers = #tpu.dot_dimension_numbers<[1], [0], [0], [1], [0, 0, 1, 1], [], []>} : vector<16x256xf32>, vector<256x128xf32>, vector<16x128xf32> -> vector<16x128xf32>
    %cst_66 = arith.constant dense<0.000000e+00> : vector<16x128xf32>
    %70 = tpu.matmul %2, %66, %cst_66 {dimension_numbers = #tpu.dot_dimension_numbers<[1], [0], [0], [1], [0, 0, 1, 1], [], []>} : vector<16x256xf32>, vector<256x128xf32>, vector<16x128xf32> -> vector<16x128xf32>
    %71 = arith.mulf %62, %69 : vector<16x128xf32>
    %cst_67 = arith.constant dense<0.000000e+00> : vector<16x128xf32>
    %72 = tpu.matmul %71, %68, %cst_67 {dimension_numbers = #tpu.dot_dimension_numbers<[1], [0], [0], [1], [0, 0, 1, 1], [], []>} : vector<16x128xf32>, vector<128x128xf32>, vector<16x128xf32> -> vector<16x128xf32>
    %73 = arith.mulf %64, %70 : vector<16x128xf32>
    %cst_68 = arith.constant dense<0.000000e+00> : vector<16x128xf32>
    %74 = tpu.matmul %73, %68, %cst_68 {dimension_numbers = #tpu.dot_dimension_numbers<[1], [0], [0], [1], [0, 0, 1, 1], [], []>} : vector<16x128xf32>, vector<128x128xf32>, vector<16x128xf32> -> vector<16x128xf32>
    %c0_69 = arith.constant 0 : index
    %c0_70 = arith.constant 0 : index
    %75 = vector.load %arg5[%c0_69, %c0_70] : memref<32x128xf32, #tpu.memory_space<vmem>>, vector<16x128xf32>
    tpu.vector_store %arg5[%c0_69, %c0_70], %72 {strides = array<i32>} : memref<32x128xf32, #tpu.memory_space<vmem>>, vector<16x128xf32>,
    %c16_71 = arith.constant 16 : index
    %c0_72 = arith.constant 0 : index
    %76 = vector.load %arg5[%c16_71, %c0_72] : memref<32x128xf32, #tpu.memory_space<vmem>>, vector<16x128xf32>
    tpu.vector_store %arg5[%c16_71, %c0_72], %74 {strides = array<i32>} : memref<32x128xf32, #tpu.memory_space<vmem>>, vector<16x128xf32>,
    return
  }
  func.func @transform_0(%arg0: i32) -> (i32, i32) {
    %c0_i32 = arith.constant 0 : i32
    %c0_i32_0 = arith.constant 0 : i32
    return %arg0, %c0_i32 : i32, i32
  }
  func.func @transform_1(%arg0: i32) -> (i32, i32) {
    %c0_i32 = arith.constant 0 : i32
    %c0_i32_0 = arith.constant 0 : i32
    %c0_i32_1 = arith.constant 0 : i32
    return %c0_i32, %c0_i32_0 : i32, i32
  }
  func.func @transform_2(%arg0: i32) -> (i32, i32, i32) {
    %c0_i32 = arith.constant 0 : i32
    %c0_i32_0 = arith.constant 0 : i32
    %c0_i32_1 = arith.constant 0 : i32
    %c0_i32_2 = arith.constant 0 : i32
    return %c0_i32, %c0_i32_0, %c0_i32_1 : i32, i32, i32
  }
  func.func @transform_3(%arg0: i32) -> (i32, i32, i32) {
    %c0_i32 = arith.constant 0 : i32
    %c0_i32_0 = arith.constant 0 : i32
    %c0_i32_1 = arith.constant 0 : i32
    %c0_i32_2 = arith.constant 0 : i32
    return %c0_i32, %c0_i32_0, %c0_i32_1 : i32, i32, i32
  }
  func.func @transform_4(%arg0: i32) -> (i32, i32) {
    %c0_i32 = arith.constant 0 : i32
    %c0_i32_0 = arith.constant 0 : i32
    return %arg0, %c0_i32 : i32, i32
  }
}

</mosaic_0001>

<llo_original>
// kernel: tpu_custom_call.1
$region0: #{tpu_custom_call.1}
  #allocation0 [shape = 'u32[]', space=smem, size = 0x4, offset = 0x4, fixed_abs, tag = 'smem constant byte address 0x4 - core index']
  #allocation1 [shape = 'u32[144,128]{1,0:T(1,128)}', space=vmem, size = 0x12000, scoped, tag = 'internal scratch']
  %s0 = inlined_call_operand.hbm [shape: f32[64,256], index: 0, kind: input, shape index: {}]
  %s1 = inlined_call_operand.hbm [shape: f32[256,128], index: 1, kind: input, shape index: {}]
  %s2 = inlined_call_operand.hbm [shape: f32[7,256,128], index: 2, kind: input, shape index: {}]
  %s3 = inlined_call_operand.hbm [shape: f32[7,128,128], index: 3, kind: input, shape index: {}]
  %s4 = inlined_call_operand.hbm [shape: f32[64,128], index: 4, kind: output, shape index: {}]
  %s5 = sld [smem:[#allocation0]]
  $region65: #{tpu_custom_call.1} parent=0
    _
  %s7 = ssub.s32 1, %s5
  %s8 = scalar_select 0, %s7, %s5
  $region1: #{tpu_custom_call.1} parent=0
    #allocation2 [shape = 'u8[65536]{0}', space=vmem, size = 0x10000, scoped, tag = 'input window, operand 0']
    #allocation3 [shape = 's32[2]{0}', space=sflag, size = 0x8, scoped, tag = 'scoped memory for tpu_custom_call.1']
    #allocation4 [shape = 's32[2]{0}', space=sflag, size = 0x8, scoped, tag = 'scoped memory for tpu_custom_call.1']
    #allocation5 [shape = 'u8[131072]{0}', space=vmem, size = 0x20000, scoped, tag = 'input window, operand 1, single buffered']
    #allocation6 [shape = 's32[1]{0}', space=sflag, size = 0x4, scoped, tag = 'scoped memory for tpu_custom_call.1']
    #allocation7 [shape = 'u8[917504]{0}', space=vmem, size = 0xe0000, scoped, tag = 'input window, operand 2, single buffered']
    #allocation8 [shape = 'u8[458752]{0}', space=vmem, size = 0x70000, scoped, tag = 'input window, operand 3, single buffered']
    #allocation9 [shape = 's32[1]{0}', space=sflag, size = 0x4, scoped, tag = 'scoped memory for tpu_custom_call.1']
    #allocation10 [shape = 'u8[32768]{0}', space=vmem, size = 0x8000, scoped, tag = 'output window, operand 0']
    %9 = vsyncpa [#allocation3], 0
    %s10 = scalar_lea.sflag [#allocation3], 1
    %11 = vsyncpa %s10, 0
    %12 = vsyncpa [#allocation6], 0
    %13 = vsyncpa [#allocation9], 0
    %14 = vsyncpa [#allocation4], 0
    %s15 = scalar_lea.sflag [#allocation4], 1
    %16 = vsyncpa %s15, 0
    loop: start=0, step=1, limit=4
    $region2: #{tpu_custom_call.1} parent=1 // loop_pre_header
      _
    $region3: #{tpu_custom_call.1} parent=1 // loop_header
      %s18 = sphi 0, %s22
      %p19 = scmp.ge.s32.totalorder %s18, 4
      %s28 = sphi 0, %s30
      %s31 = sphi 0, %s28
      %s32 = sphi 0, %s31
      %s48 = sphi 0, %s32
      %s52 = sphi 0, %s52
      %s54 = sphi 0, %s52
      %s55 = sphi 0, %s54
      %s69 = sphi 0, %s55
      %s73 = sphi 0, %s73
      %s75 = sphi 0, %s73
      %s76 = sphi 0, %s75
      %s90 = sphi 0, %s76
      %s94 = sphi 0, %s94
      %s96 = sphi 0, %s94
      %s97 = sphi 0, %s96
      %s111 = sphi 0, %s97
      %s117 = sphi 0, %s119
      %s120 = sphi 0, %s117
      %s121 = sphi 0, %s120
      %s137 = sphi 0, %s121
    $region4: #{tpu_custom_call.1} parent=1 // loop_header_branch
      %21 = sbr.rel (%p19) target = $region8
    $region5: #{tpu_custom_call.1} parent=1 // loop_body
      %s23 = ssub.s32 %s18, 1
      %s24 = ssub.s32 %s18, 2
      %s25 = sadd.s32 %s18, 1
      %s26 = ssub.s32 %s18, %s25
      %p27 = scmp.eq.s32.totalorder %s26, 0
      %s29 = sadd.s32 %s28, 1
      %s30 = scalar_select %p27, %s28, %s29
      %p33 = pneg %p27
      %p34 = scmp.eq.s32.totalorder %s18, 1
      %p35 = por %p33, %p34
      %p36 = scmp.ne.s32.totalorder %s28, %s31
      %p37 = scmp.eq.s32.totalorder %s18, 0
      %p38 = por %p36, %p37
      %p39 = scmp.ne.s32.totalorder %s28, %s31
      %p40 = scmp.eq.s32.totalorder %s23, 1
      %p41 = por %p39, %p40
      %p42 = scmp.ne.s32.totalorder %s31, %s32
      %p43 = scmp.eq.s32.totalorder %s23, 0
      %p44 = por %p42, %p43
      %p45 = scmp.ne.s32.totalorder %s31, %s32
      %p46 = scmp.eq.s32.totalorder %s24, 1
      %p47 = por %p45, %p46
      %p49 = scmp.ne.s32.totalorder %s32, %s48
      %p50 = scmp.eq.s32.totalorder %s24, 0
      %p51 = por %p49, %p50
      %s53 = sadd.s32 %s52, 1
      %p56 = scmp.eq.s32.totalorder %s18, 1
      %p57 = scmp.ne.s32.totalorder %s52, %s54
      %p58 = scmp.eq.s32.totalorder %s18, 0
      %p59 = por %p57, %p58
      %p60 = scmp.ne.s32.totalorder %s52, %s54
      %p61 = scmp.eq.s32.totalorder %s23, 1
      %p62 = por %p60, %p61
      %p63 = scmp.ne.s32.totalorder %s54, %s55
      %p64 = scmp.eq.s32.totalorder %s23, 0
      %p65 = por %p63, %p64
      %p66 = scmp.ne.s32.totalorder %s54, %s55
      %p67 = scmp.eq.s32.totalorder %s24, 1
      %p68 = por %p66, %p67
      %p70 = scmp.ne.s32.totalorder %s55, %s69
      %p71 = scmp.eq.s32.totalorder %s24, 0
      %p72 = por %p70, %p71
      %s74 = sadd.s32 %s73, 1
      %p77 = scmp.eq.s32.totalorder %s18, 1
      %p78 = scmp.ne.s32.totalorder %s73, %s75
      %p79 = scmp.eq.s32.totalorder %s18, 0
      %p80 = por %p78, %p79
      %p81 = scmp.ne.s32.totalorder %s73, %s75
      %p82 = scmp.eq.s32.totalorder %s23, 1
      %p83 = por %p81, %p82
      %p84 = scmp.ne.s32.totalorder %s75, %s76
      %p85 = scmp.eq.s32.totalorder %s23, 0
      %p86 = por %p84, %p85
      %p87 = scmp.ne.s32.totalorder %s75, %s76
      %p88 = scmp.eq.s32.totalorder %s24, 1
      %p89 = por %p87, %p88
      %p91 = scmp.ne.s32.totalorder %s76, %s90
      %p92 = scmp.eq.s32.totalorder %s24, 0
      %p93 = por %p91, %p92
      %s95 = sadd.s32 %s94, 1
      %p98 = scmp.eq.s32.totalorder %s18, 1
      %p99 = scmp.ne.s32.totalorder %s94, %s96
      %p100 = scmp.eq.s32.totalorder %s18, 0
      %p101 = por %p99, %p100
      %p102 = scmp.ne.s32.totalorder %s94, %s96
      %p103 = scmp.eq.s32.totalorder %s23, 1
      %p104 = por %p102, %p103
      %p105 = scmp.ne.s32.totalorder %s96, %s97
      %p106 = scmp.eq.s32.totalorder %s23, 0
      %p107 = por %p105, %p106
      %p108 = scmp.ne.s32.totalorder %s96, %s97
      %p109 = scmp.eq.s32.totalorder %s24, 1
      %p110 = por %p108, %p109
      %p112 = scmp.ne.s32.totalorder %s97, %s111
      %p113 = scmp.eq.s32.totalorder %s24, 0
      %p114 = por %p112, %p113
      %s115 = ssub.s32 %s18, %s25
      %p116 = scmp.eq.s32.totalorder %s115, 0
      %s118 = sadd.s32 %s117, 1
      %s119 = scalar_select %p116, %s117, %s118
      %p122 = pneg %p116
      %p123 = scmp.eq.s32.totalorder %s18, 1
      %p124 = por %p122, %p123
      %p125 = scmp.ne.s32.totalorder %s117, %s120
      %p126 = scmp.eq.s32.totalorder %s18, 0
      %p127 = por %p125, %p126
      %p128 = scmp.ne.s32.totalorder %s117, %s120
      %p129 = scmp.eq.s32.totalorder %s23, 1
      %p130 = por %p128, %p129
      %p131 = scmp.ne.s32.totalorder %s120, %s121
      %p132 = scmp.eq.s32.totalorder %s23, 0
      %p133 = por %p131, %p132
      %p134 = scmp.ne.s32.totalorder %s120, %s121
      %p135 = scmp.eq.s32.totalorder %s24, 1
      %p136 = por %p134, %p135
      %p138 = scmp.ne.s32.totalorder %s121, %s137
      %p139 = scmp.eq.s32.totalorder %s24, 0
      %p140 = por %p138, %p139
      %p141 = scmp.le.s32.totalorder 1, %s18
      %p142 = scmp.lt.s32.totalorder %s18, 3
      %p143 = pnand %p141, %p142
      %p144 = pneg %p143
      // Predicated region
      $region9: #{tpu_custom_call.1} parent=5 // pred_check
        _
      $region10: #{tpu_custom_call.1} parent=5 // pred_check_branch
        %146 = sbr.rel (%p143) target = $region12
      $region11: #{tpu_custom_call.1} parent=5 // pred_region
        %s147 = ssub.s32 %s18, 1
        // Predicated region
        $region13: #{tpu_custom_call.1} parent=11 // pred_check
          %p148 = pneg %p65
        $region14: #{tpu_custom_call.1} parent=11 // pred_check_branch
          %150 = sbr.rel (%p148) target = $region16
        $region15: #{tpu_custom_call.1} parent=11 // pred_region
          %s152 = ssub.s32 4096, 4096
          %153 = vsyncadd [#allocation6], %s152
          %s154 = sshll.u32 [#allocation5], 4
          %s155 = int_to_ptr.vmem [resolvable:$true] %s154
          %160 = dma.hbm_to_vmem [thread:$0]  %s1, 4096, %s155, [#allocation6], 128, 128, 8
        $region16: #{tpu_custom_call.1} parent=11 // pred_fallthru
          _
        // Predicated region
        $region17: #{tpu_custom_call.1} parent=11 // pred_check
          %p161 = pneg %p86
        $region18: #{tpu_custom_call.1} parent=11 // pred_check_branch
          %163 = sbr.rel (%p161) target = $region20
        $region19: #{tpu_custom_call.1} parent=11 // pred_region
          %s165 = ssub.s32 28672, 28672
          %166 = vsyncadd [#allocation6], %s165
          %s167 = sshll.u32 [#allocation7], 4
          %s168 = int_to_ptr.vmem [resolvable:$true] %s167
          %173 = dma.hbm_to_vmem [thread:$0]  %s2, 28672, %s168, [#allocation6], 128, 128, 8
        $region20: #{tpu_custom_call.1} parent=11 // pred_fallthru
          _
        // Predicated region
        $region21: #{tpu_custom_call.1} parent=11 // pred_check
          %p174 = pneg %p107
        $region22: #{tpu_custom_call.1} parent=11 // pred_check_branch
          %176 = sbr.rel (%p174) target = $region24
        $region23: #{tpu_custom_call.1} parent=11 // pred_region
          %s178 = ssub.s32 14336, 14336
          %179 = vsyncadd [#allocation9], %s178
          %s180 = sshll.u32 [#allocation8], 4
          %s181 = int_to_ptr.vmem [resolvable:$true] %s180
          %186 = dma.hbm_to_vmem [thread:$0]  %s3, 14336, %s181, [#allocation9], 128, 128, 8
        $region24: #{tpu_custom_call.1} parent=11 // pred_fallthru
          _
      $region12: #{tpu_custom_call.1} parent=5 // pred_fallthru
        _
      %p187 = scmp.lt.s32.totalorder %s18, 2
      // Predicated region
      $region25: #{tpu_custom_call.1} parent=5 // pred_check
        %p188 = pneg %p187
      $region26: #{tpu_custom_call.1} parent=5 // pred_check_branch
        %190 = sbr.rel (%p188) target = $region28
      $region27: #{tpu_custom_call.1} parent=5 // pred_region
        // Predicated region
        $region29: #{tpu_custom_call.1} parent=27 // pred_check
          %p191 = pneg %p38
        $region30: #{tpu_custom_call.1} parent=27 // pred_check_branch
          %193 = sbr.rel (%p191) target = $region32
        $region31: #{tpu_custom_call.1} parent=27 // pred_region
          %s194 = sand.u32 %s28, 1
          %s195 = scalar_lea.sflag [#allocation3], %s194
          %s196 = sand.u32 %s28, 1
          %s197 = smul.addr %s196, 64
          %s198 = scalar_lea.vmem [#allocation2], %s197
          %s199 = smul.u32 4, %s18
          %s201 = ssub.s32 1024, 1024
          %202 = vsyncadd %s195, %s201
          %s203 = smul.addr %s199, 2
          %s204 = smul.addr %s203, 128
          %s205 = scalar_lea.hbm %s0, %s204
          %s206 = sshll.u32 %s198, 4
          %s207 = int_to_ptr.vmem [resolvable:$true] %s206
          %212 = dma.hbm_to_vmem [thread:$0]  %s205, 1024, %s207, %s195, 256, 256, 16
        $region32: #{tpu_custom_call.1} parent=27 // pred_fallthru
          _
      $region28: #{tpu_custom_call.1} parent=5 // pred_fallthru
        _
      %p213 = scmp.le.s32.totalorder 1, %s18
      %p214 = scmp.lt.s32.totalorder %s18, 3
      %p215 = pnand %p213, %p214
      %p216 = pneg %p215
      // Predicated region
      $region33: #{tpu_custom_call.1} parent=5 // pred_check
        _
      $region34: #{tpu_custom_call.1} parent=5 // pred_check_branch
        %218 = sbr.rel (%p215) target = $region36
      $region35: #{tpu_custom_call.1} parent=5 // pred_region
        %s219 = ssub.s32 %s18, 1
        %s220 = sand.u32 %s31, 1
        %s221 = scalar_lea.sflag [#allocation3], %s220
        %s222 = sand.u32 %s31, 1
        %s223 = smul.addr %s222, 64
        %s224 = scalar_lea.vmem [#allocation2], %s223
        // Predicated region
        $region37: #{tpu_custom_call.1} parent=35 // pred_check
          %p225 = pneg %p44
        $region38: #{tpu_custom_call.1} parent=35 // pred_check_branch
          %227 = sbr.rel (%p225) target = $region40
        $region39: #{tpu_custom_call.1} parent=35 // pred_region
          %228 = dma.done %s221, 1024
        $region40: #{tpu_custom_call.1} parent=35 // pred_fallthru
          _
        // Predicated region
        $region41: #{tpu_custom_call.1} parent=35 // pred_check
          %p229 = pneg %p65
        $region42: #{tpu_custom_call.1} parent=35 // pred_check_branch
          %231 = sbr.rel (%p229) target = $region44
        $region43: #{tpu_custom_call.1} parent=35 // pred_region
          %232 = dma.done [#allocation6], 4096
        $region44: #{tpu_custom_call.1} parent=35 // pred_fallthru
          _
        // Predicated region
        $region45: #{tpu_custom_call.1} parent=35 // pred_check
          %p233 = pneg %p86
        $region46: #{tpu_custom_call.1} parent=35 // pred_check_branch
          %235 = sbr.rel (%p233) target = $region48
        $region47: #{tpu_custom_call.1} parent=35 // pred_region
          %236 = dma.done [#allocation6], 28672
        $region48: #{tpu_custom_call.1} parent=35 // pred_fallthru
          _
        // Predicated region
        $region49: #{tpu_custom_call.1} parent=35 // pred_check
          %p237 = pneg %p107
        $region50: #{tpu_custom_call.1} parent=35 // pred_check_branch
          %239 = sbr.rel (%p237) target = $region52
        $region51: #{tpu_custom_call.1} parent=35 // pred_region
          %240 = dma.done [#allocation9], 14336
        $region52: #{tpu_custom_call.1} parent=35 // pred_fallthru
          _
        %s241 = sand.u32 %s31, 1
        %s242 = scalar_lea.sflag [#allocation3], %s241
        %s243 = sand.u32 %s31, 1
        %s244 = smul.addr %s243, 64
        %s245 = scalar_lea.vmem [#allocation2], %s244
        %p246 = pneg %p44
        %p247 = pneg %p41
        %p248 = pneg %p65
        %p249 = pneg %p62
        %p250 = pneg %p86
        %p251 = pneg %p83
        %p252 = pneg %p107
        %p253 = pneg %p104
        %p254 = pneg %p133
        %p255 = pneg %p130
        %s256 = sand.u32 %s120, 1
        %s257 = scalar_lea.sflag [#allocation4], %s256
        %s258 = sand.u32 %s120, 1
        %s259 = smul.addr %s258, 32
        %s260 = scalar_lea.vmem [#allocation10], %s259
        %s261 = smul.u32 4, %s23
        %s262 = smul.u32 4, %s23
        %v263 = vld [vmem:[#allocation5] sm:$0xff]
        %v264 = vld [vmem:[#allocation5 + $0x8] sm:$0xff]
        %v265 = vld [vmem:[#allocation5 + $0x10] sm:$0xff]
        %v266 = vld [vmem:[#allocation5 + $0x18] sm:$0xff]
        %v267 = vld [vmem:[#allocation5 + $0x20] sm:$0xff]
        %v268 = vld [vmem:[#allocation5 + $0x28] sm:$0xff]
        %v269 = vld [vmem:[#allocation5 + $0x30] sm:$0xff]
        %v270 = vld [vmem:[#allocation5 + $0x38] sm:$0xff]
        %v271 = vld [vmem:[#allocation5 + $0x40] sm:$0xff]
        %v272 = vld [vmem:[#allocation5 + $0x48] sm:$0xff]
        %v273 = vld [vmem:[#allocation5 + $0x50] sm:$0xff]
        %v274 = vld [vmem:[#allocation5 + $0x58] sm:$0xff]
        %v275 = vld [vmem:[#allocation5 + $0x60] sm:$0xff]
        %v276 = vld [vmem:[#allocation5 + $0x68] sm:$0xff]
        %v277 = vld [vmem:[#allocation5 + $0x70] sm:$0xff]
        %v278 = vld [vmem:[#allocation5 + $0x78] sm:$0xff]
        %v279 = vld [vmem:[#allocation5 + $0x80] sm:$0xff]
        %v280 = vld [vmem:[#allocation5 + $0x88] sm:$0xff]
        %v281 = vld [vmem:[#allocation5 + $0x90] sm:$0xff]
        %v282 = vld [vmem:[#allocation5 + $0x98] sm:$0xff]
        %v283 = vld [vmem:[#allocation5 + $0xa0] sm:$0xff]
        %v284 = vld [vmem:[#allocation5 + $0xa8] sm:$0xff]
        %v285 = vld [vmem:[#allocation5 + $0xb0] sm:$0xff]
        %v286 = vld [vmem:[#allocation5 + $0xb8] sm:$0xff]
        %v287 = vld [vmem:[#allocation5 + $0xc0] sm:$0xff]
        %v288 = vld [vmem:[#allocation5 + $0xc8] sm:$0xff]
        %v289 = vld [vmem:[#allocation5 + $0xd0] sm:$0xff]
        %v290 = vld [vmem:[#allocation5 + $0xd8] sm:$0xff]
        %v291 = vld [vmem:[#allocation5 + $0xe0] sm:$0xff]
        %v292 = vld [vmem:[#allocation5 + $0xe8] sm:$0xff]
        %v293 = vld [vmem:[#allocation5 + $0xf0] sm:$0xff]
        %v294 = vld [vmem:[#allocation5 + $0xf8] sm:$0xff]
        %v295 = vld [vmem:[%s224] sm:$0xff]
        %v296 = vld [vmem:[%s224 + $0x8] sm:$0xff]
        %v297 = vld [vmem:[%s224 + $0x10] sm:$0xff]
        %v298 = vld [vmem:[%s224 + $0x18] sm:$0xff]
        %v299 = vld [vmem:[%s224 + $0x20] sm:$0xff]
        %v300 = vld [vmem:[%s224 + $0x28] sm:$0xff]
        %v301 = vld [vmem:[%s224 + $0x30] sm:$0xff]
        %v302 = vld [vmem:[%s224 + $0x38] sm:$0xff]
        %303 = vmatprep.subr.mxu0 0.0
        %304 = vmatpush1.msra.mxu0 %v263
        %305 = vmatprep.subr.mxu0 0.0
        %306 = vmatpush1.msra.mxu0 %v264
        %307 = vmatprep.subr.mxu0 0.0
        %308 = vmatpush1.msra.mxu0 %v265
        %309 = vmatprep.subr.mxu0 0.0
        %310 = vmatpush1.msra.mxu0 %v266
        %311 = vmatprep.subr.mxu0 0.0
        %312 = vmatpush1.msra.mxu0 %v267
        %313 = vmatprep.subr.mxu0 0.0
        %314 = vmatpush1.msra.mxu0 %v268
        %315 = vmatprep.subr.mxu0 0.0
        %316 = vmatpush1.msra.mxu0 %v269
        %317 = vmatprep.subr.mxu0 0.0
        %318 = vmatpush1.msra.mxu0 %v270
        %319 = vmatprep.subr.mxu0 0.0
        %320 = vmatpush1.msra.mxu0 %v271
        %321 = vmatprep.subr.mxu0 0.0
        %322 = vmatpush1.msra.mxu0 %v272
        %323 = vmatprep.subr.mxu0 0.0
        %324 = vmatpush1.msra.mxu0 %v273
        %325 = vmatprep.subr.mxu0 0.0
        %326 = vmatpush1.msra.mxu0 %v274
        %327 = vmatprep.subr.mxu0 0.0
        %328 = vmatpush1.msra.mxu0 %v275
        %329 = vmatprep.subr.mxu0 0.0
        %330 = vmatpush1.msra.mxu0 %v276
        %331 = vmatprep.subr.mxu0 0.0
        %332 = vmatpush1.msra.mxu0 %v277
        %333 = vmatprep.subr.mxu0 0.0
        %334 = vmatpush1.msra.mxu0 %v278
        %335 = vmatprep.subr.mxu0 0.0
        %336 = vmatpush1.msra.mxu0 %v279
        %337 = vmatprep.subr.mxu0 0.0
        %338 = vmatpush1.msra.mxu0 %v280
        %339 = vmatprep.subr.mxu0 0.0
        %340 = vmatpush1.msra.mxu0 %v281
        %341 = vmatprep.subr.mxu0 0.0
        %342 = vmatpush1.msra.mxu0 %v282
        %343 = vmatprep.subr.mxu0 0.0
        %344 = vmatpush1.msra.mxu0 %v283
        %345 = vmatprep.subr.mxu0 0.0
        %346 = vmatpush1.msra.mxu0 %v284
        %347 = vmatprep.subr.mxu0 0.0
        %348 = vmatpush1.msra.mxu0 %v285
        %349 = vmatprep.subr.mxu0 0.0
        %350 = vmatpush1.msra.mxu0 %v286
        %351 = vmatprep.subr.mxu0 0.0
        %352 = vmatpush1.msra.mxu0 %v287
        %353 = vmatprep.subr.mxu0 0.0
        %354 = vmatpush1.msra.mxu0 %v288
        %355 = vmatprep.subr.mxu0 0.0
        %356 = vmatpush1.msra.mxu0 %v289
        %357 = vmatprep.subr.mxu0 0.0
        %358 = vmatpush1.msra.mxu0 %v290
        %359 = vmatprep.subr.mxu0 0.0
        %360 = vmatpush1.msra.mxu0 %v291
        %361 = vmatprep.subr.mxu0 0.0
        %362 = vmatpush1.msra.mxu0 %v292
        %363 = vmatprep.subr.mxu0 0.0
        %364 = vmatpush1.msra.mxu0 %v293
        %365 = vmatprep.subr.mxu0 0.0
        %366 = vmatpush1.msra.mxu0 %v294
        %367 = vmatprep.mubr.f32.mxu0 %v296
        %368 = vmatmul.mubr.f32.gmra.mrb[0].mxu0 %v295
        %v369 = vpop.f32.mrb[0].mxu0
        %v370 = vadd.f32 0.0, %v369
        %v371 = vpop.f32.mrb[0].mxu0
        %372 = vmatprep.mubr.f32.mxu0 %v298
        %373 = vmatmul.mubr.f32.gmra.mrb[0].mxu0 %v297
        %v374 = vpop.f32.mrb[0].mxu0
        %v375 = vadd.f32 0.0, %v374
        %v376 = vpop.f32.mrb[0].mxu0
        %377 = vdwg.mxu0
        %378 = vmatprep.subr.mxu0 0.0
        %379 = vmatpush1.msra.mxu0 %v263
        %380 = vmatprep.subr.mxu0 0.0
        %381 = vmatpush1.msra.mxu0 %v264
        %382 = vmatprep.subr.mxu0 0.0
        %383 = vmatpush1.msra.mxu0 %v265
        %384 = vmatprep.subr.mxu0 0.0
        %385 = vmatpush1.msra.mxu0 %v266
        %386 = vmatprep.subr.mxu0 0.0
        %387 = vmatpush1.msra.mxu0 %v267
        %388 = vmatprep.subr.mxu0 0.0
        %389 = vmatpush1.msra.mxu0 %v268
        %390 = vmatprep.subr.mxu0 0.0
        %391 = vmatpush1.msra.mxu0 %v269
        %392 = vmatprep.subr.mxu0 0.0
        %393 = vmatpush1.msra.mxu0 %v270
        %394 = vmatprep.subr.mxu0 0.0
        %395 = vmatpush1.msra.mxu0 %v271
        %396 = vmatprep.subr.mxu0 0.0
        %397 = vmatpush1.msra.mxu0 %v272
        %398 = vmatprep.subr.mxu0 0.0
        %399 = vmatpush1.msra.mxu0 %v273
        %400 = vmatprep.subr.mxu0 0.0
        %401 = vmatpush1.msra.mxu0 %v274
        %402 = vmatprep.subr.mxu0 0.0
        %403 = vmatpush1.msra.mxu0 %v275
        %404 = vmatprep.subr.mxu0 0.0
        %405 = vmatpush1.msra.mxu0 %v276
        %406 = vmatprep.subr.mxu0 0.0
        %407 = vmatpush1.msra.mxu0 %v277
        %408 = vmatprep.subr.mxu0 0.0
        %409 = vmatpush1.msra.mxu0 %v278
        %410 = vmatprep.subr.mxu0 0.0
        %411 = vmatpush1.msra.mxu0 %v279
        %412 = vmatprep.subr.mxu0 0.0
        %413 = vmatpush1.msra.mxu0 %v280
        %414 = vmatprep.subr.mxu0 0.0
        %415 = vmatpush1.msra.mxu0 %v281
        %416 = vmatprep.subr.mxu0 0.0
        %417 = vmatpush1.msra.mxu0 %v282
        %418 = vmatprep.subr.mxu0 0.0
        %419 = vmatpush1.msra.mxu0 %v283
        %420 = vmatprep.subr.mxu0 0.0
        %421 = vmatpush1.msra.mxu0 %v284
        %422 = vmatprep.subr.mxu0 0.0
        %423 = vmatpush1.msra.mxu0 %v285
        %424 = vmatprep.subr.mxu0 0.0
        %425 = vmatpush1.msra.mxu0 %v286
        %426 = vmatprep.subr.mxu0 0.0
        %427 = vmatpush1.msra.mxu0 %v287
        %428 = vmatprep.subr.mxu0 0.0
        %429 = vmatpush1.msra.mxu0 %v288
        %430 = vmatprep.subr.mxu0 0.0
        %431 = vmatpush1.msra.mxu0 %v289
        %432 = vmatprep.subr.mxu0 0.0
        %433 = vmatpush1.msra.mxu0 %v290
        %434 = vmatprep.subr.mxu0 0.0
        %435 = vmatpush1.msra.mxu0 %v291
        %436 = vmatprep.subr.mxu0 0.0
        %437 = vmatpush1.msra.mxu0 %v292
        %438 = vmatprep.subr.mxu0 0.0
        %439 = vmatpush1.msra.mxu0 %v293
        %440 = vmatprep.subr.mxu0 0.0
        %441 = vmatpush1.msra.mxu0 %v294
        %442 = vmatprep.mubr.f32.mxu0 %v300
        %443 = vmatmul.mubr.f32.gmra.mrb[0].mxu0 %v299
        %v444 = vpop.f32.mrb[0].mxu0
        %v445 = vadd.f32 0.0, %v444
        %v446 = vpop.f32.mrb[0].mxu0
        %447 = vmatprep.mubr.f32.mxu0 %v302
        %448 = vmatmul.mubr.f32.gmra.mrb[0].mxu0 %v301
        %v449 = vpop.f32.mrb[0].mxu0
        %v450 = vadd.f32 0.0, %v449
        %v451 = vpop.f32.mrb[0].mxu0
        %452 = vdwg.mxu0
        %v453 = vld [vmem:[#allocation7] sm:$0xff]
        %v454 = vld [vmem:[#allocation7 + $0x8] sm:$0xff]
        %v455 = vld [vmem:[#allocation7 + $0x10] sm:$0xff]
        %v456 = vld [vmem:[#allocation7 + $0x18] sm:$0xff]
        %v457 = vld [vmem:[#allocation7 + $0x20] sm:$0xff]
        %v458 = vld [vmem:[#allocation7 + $0x28] sm:$0xff]
        %v459 = vld [vmem:[#allocation7 + $0x30] sm:$0xff]
        %v460 = vld [vmem:[#allocation7 + $0x38] sm:$0xff]
        %v461 = vld [vmem:[#allocation7 + $0x40] sm:$0xff]
        %v462 = vld [vmem:[#allocation7 + $0x48] sm:$0xff]
        %v463 = vld [vmem:[#allocation7 + $0x50] sm:$0xff]
        %v464 = vld [vmem:[#allocation7 + $0x58] sm:$0xff]
        %v465 = vld [vmem:[#allocation7 + $0x60] sm:$0xff]
        %v466 = vld [vmem:[#allocation7 + $0x68] sm:$0xff]
        %v467 = vld [vmem:[#allocation7 + $0x70] sm:$0xff]
        %v468 = vld [vmem:[#allocation7 + $0x78] sm:$0xff]
        %v469 = vld [vmem:[#allocation7 + $0x80] sm:$0xff]
        %v470 = vld [vmem:[#allocation7 + $0x88] sm:$0xff]
        %v471 = vld [vmem:[#allocation7 + $0x90] sm:$0xff]
        %v472 = vld [vmem:[#allocation7 + $0x98] sm:$0xff]
        %v473 = vld [vmem:[#allocation7 + $0xa0] sm:$0xff]
        %v474 = vld [vmem:[#allocation7 + $0xa8] sm:$0xff]
        %v475 = vld [vmem:[#allocation7 + $0xb0] sm:$0xff]
        %v476 = vld [vmem:[#allocation7 + $0xb8] sm:$0xff]
        %v477 = vld [vmem:[#allocation7 + $0xc0] sm:$0xff]
        %v478 = vld [vmem:[#allocation7 + $0xc8] sm:$0xff]
        %v479 = vld [vmem:[#allocation7 + $0xd0] sm:$0xff]
        %v480 = vld [vmem:[#allocation7 + $0xd8] sm:$0xff]
        %v481 = vld [vmem:[#allocation7 + $0xe0] sm:$0xff]
        %v482 = vld [vmem:[#allocation7 + $0xe8] sm:$0xff]
        %v483 = vld [vmem:[#allocation7 + $0xf0] sm:$0xff]
        %v484 = vld [vmem:[#allocation7 + $0xf8] sm:$0xff]
        %v485 = vld [vmem:[#allocation8] sm:$0xff]
        %v486 = vld [vmem:[#allocation8 + $0x8] sm:$0xff]
        %v487 = vld [vmem:[#allocation8 + $0x10] sm:$0xff]
        %v488 = vld [vmem:[#allocation8 + $0x18] sm:$0xff]
        %v489 = vld [vmem:[#allocation8 + $0x20] sm:$0xff]
        %v490 = vld [vmem:[#allocation8 + $0x28] sm:$0xff]
        %v491 = vld [vmem:[#allocation8 + $0x30] sm:$0xff]
        %v492 = vld [vmem:[#allocation8 + $0x38] sm:$0xff]
        %v493 = vld [vmem:[#allocation8 + $0x40] sm:$0xff]
        %v494 = vld [vmem:[#allocation8 + $0x48] sm:$0xff]
        %v495 = vld [vmem:[#allocation8 + $0x50] sm:$0xff]
        %v496 = vld [vmem:[#allocation8 + $0x58] sm:$0xff]
        %v497 = vld [vmem:[#allocation8 + $0x60] sm:$0xff]
        %v498 = vld [vmem:[#allocation8 + $0x68] sm:$0xff]
        %v499 = vld [vmem:[#allocation8 + $0x70] sm:$0xff]
        %v500 = vld [vmem:[#allocation8 + $0x78] sm:$0xff]
        %501 = vmatprep.subr.mxu0 0.0
        %502 = vmatpush1.msra.mxu0 %v453
        %503 = vmatprep.subr.mxu0 0.0
        %504 = vmatpush1.msra.mxu0 %v454
        %505 = vmatprep.subr.mxu0 0.0
        %506 = vmatpush1.msra.mxu0 %v455
        %507 = vmatprep.subr.mxu0 0.0
        %508 = vmatpush1.msra.mxu0 %v456
        %509 = vmatprep.subr.mxu0 0.0
        %510 = vmatpush1.msra.mxu0 %v457
        %511 = vmatprep.subr.mxu0 0.0
        %512 = vmatpush1.msra.mxu0 %v458
        %513 = vmatprep.subr.mxu0 0.0
        %514 = vmatpush1.msra.mxu0 %v459
        %515 = vmatprep.subr.mxu0 0.0
        %516 = vmatpush1.msra.mxu0 %v460
        %517 = vmatprep.subr.mxu0 0.0
        %518 = vmatpush1.msra.mxu0 %v461
        %519 = vmatprep.subr.mxu0 0.0
        %520 = vmatpush1.msra.mxu0 %v462
        %521 = vmatprep.subr.mxu0 0.0
        %522 = vmatpush1.msra.mxu0 %v463
        %523 = vmatprep.subr.mxu0 0.0
        %524 = vmatpush1.msra.mxu0 %v464
        %525 = vmatprep.subr.mxu0 0.0
        %526 = vmatpush1.msra.mxu0 %v465
        %527 = vmatprep.subr.mxu0 0.0
        %528 = vmatpush1.msra.mxu0 %v466
        %529 = vmatprep.subr.mxu0 0.0
        %530 = vmatpush1.msra.mxu0 %v467
        %531 = vmatprep.subr.mxu0 0.0
        %532 = vmatpush1.msra.mxu0 %v468
        %533 = vmatprep.subr.mxu0 0.0
        %534 = vmatpush1.msra.mxu0 %v469
        %535 = vmatprep.subr.mxu0 0.0
        %536 = vmatpush1.msra.mxu0 %v470
        %537 = vmatprep.subr.mxu0 0.0
        %538 = vmatpush1.msra.mxu0 %v471
        %539 = vmatprep.subr.mxu0 0.0
        %540 = vmatpush1.msra.mxu0 %v472
        %541 = vmatprep.subr.mxu0 0.0
        %542 = vmatpush1.msra.mxu0 %v473
        %543 = vmatprep.subr.mxu0 0.0
        %544 = vmatpush1.msra.mxu0 %v474
        %545 = vmatprep.subr.mxu0 0.0
        %546 = vmatpush1.msra.mxu0 %v475
        %547 = vmatprep.subr.mxu0 0.0
        %548 = vmatpush1.msra.mxu0 %v476
        %549 = vmatprep.subr.mxu0 0.0
        %550 = vmatpush1.msra.mxu0 %v477
        %551 = vmatprep.subr.mxu0 0.0
        %552 = vmatpush1.msra.mxu0 %v478
        %553 = vmatprep.subr.mxu0 0.0
        %554 = vmatpush1.msra.mxu0 %v479
        %555 = vmatprep.subr.mxu0 0.0
        %556 = vmatpush1.msra.mxu0 %v480
        %557 = vmatprep.subr.mxu0 0.0
        %558 = vmatpush1.msra.mxu0 %v481
        %559 = vmatprep.subr.mxu0 0.0
        %560 = vmatpush1.msra.mxu0 %v482
        %561 = vmatprep.subr.mxu0 0.0
        %562 = vmatpush1.msra.mxu0 %v483
        %563 = vmatprep.subr.mxu0 0.0
        %564 = vmatpush1.msra.mxu0 %v484
        %565 = vmatprep.mubr.f32.mxu0 %v296
        %566 = vmatmul.mubr.f32.gmra.mrb[0].mxu0 %v295
        %v567 = vpop.f32.mrb[0].mxu0
        %v568 = vadd.f32 0.0, %v567
        %v569 = vpop.f32.mrb[0].mxu0
        %570 = vmatprep.mubr.f32.mxu0 %v298
        %571 = vmatmul.mubr.f32.gmra.mrb[0].mxu0 %v297
        %v572 = vpop.f32.mrb[0].mxu0
        %v573 = vadd.f32 0.0, %v572
        %v574 = vpop.f32.mrb[0].mxu0
        %575 = vdwg.mxu0
        %576 = vmatprep.subr.mxu0 0.0
        %577 = vmatpush1.msra.mxu0 %v453
        %578 = vmatprep.subr.mxu0 0.0
        %579 = vmatpush1.msra.mxu0 %v454
        %580 = vmatprep.subr.mxu0 0.0
        %581 = vmatpush1.msra.mxu0 %v455
        %582 = vmatprep.subr.mxu0 0.0
        %583 = vmatpush1.msra.mxu0 %v456
        %584 = vmatprep.subr.mxu0 0.0
        %585 = vmatpush1.msra.mxu0 %v457
        %586 = vmatprep.subr.mxu0 0.0
        %587 = vmatpush1.msra.mxu0 %v458
        %588 = vmatprep.subr.mxu0 0.0
        %589 = vmatpush1.msra.mxu0 %v459
        %590 = vmatprep.subr.mxu0 0.0
        %591 = vmatpush1.msra.mxu0 %v460
        %592 = vmatprep.subr.mxu0 0.0
        %593 = vmatpush1.msra.mxu0 %v461
        %594 = vmatprep.subr.mxu0 0.0
        %595 = vmatpush1.msra.mxu0 %v462
        %596 = vmatprep.subr.mxu0 0.0
        %597 = vmatpush1.msra.mxu0 %v463
        %598 = vmatprep.subr.mxu0 0.0
        %599 = vmatpush1.msra.mxu0 %v464
        %600 = vmatprep.subr.mxu0 0.0
        %601 = vmatpush1.msra.mxu0 %v465
        %602 = vmatprep.subr.mxu0 0.0
        %603 = vmatpush1.msra.mxu0 %v466
        %604 = vmatprep.subr.mxu0 0.0
        %605 = vmatpush1.msra.mxu0 %v467
        %606 = vmatprep.subr.mxu0 0.0
        %607 = vmatpush1.msra.mxu0 %v468
        %608 = vmatprep.subr.mxu0 0.0
        %609 = vmatpush1.msra.mxu0 %v469
        %610 = vmatprep.subr.mxu0 0.0
        %611 = vmatpush1.msra.mxu0 %v470
        %612 = vmatprep.subr.mxu0 0.0
        %613 = vmatpush1.msra.mxu0 %v471
        %614 = vmatprep.subr.mxu0 0.0
        %615 = vmatpush1.msra.mxu0 %v472
        %616 = vmatprep.subr.mxu0 0.0
        %617 = vmatpush1.msra.mxu0 %v473
        %618 = vmatprep.subr.mxu0 0.0
        %619 = vmatpush1.msra.mxu0 %v474
        %620 = vmatprep.subr.mxu0 0.0
        %621 = vmatpush1.msra.mxu0 %v475
        %622 = vmatprep.subr.mxu0 0.0
        %623 = vmatpush1.msra.mxu0 %v476
        %624 = vmatprep.subr.mxu0 0.0
        %625 = vmatpush1.msra.mxu0 %v477
        %626 = vmatprep.subr.mxu0 0.0
        %627 = vmatpush1.msra.mxu0 %v478
        %628 = vmatprep.subr.mxu0 0.0
        %629 = vmatpush1.msra.mxu0 %v479
        %630 = vmatprep.subr.mxu0 0.0
        %631 = vmatpush1.msra.mxu0 %v480
        %632 = vmatprep.subr.mxu0 0.0
        %633 = vmatpush1.msra.mxu0 %v481
        %634 = vmatprep.subr.mxu0 0.0
        %635 = vmatpush1.msra.mxu0 %v482
        %636 = vmatprep.subr.mxu0 0.0
        %637 = vmatpush1.msra.mxu0 %v483
        %638 = vmatprep.subr.mxu0 0.0
        %639 = vmatpush1.msra.mxu0 %v484
        %640 = vmatprep.mubr.f32.mxu0 %v300
        %641 = vmatmul.mubr.f32.gmra.mrb[0].mxu0 %v299
        %v642 = vpop.f32.mrb[0].mxu0
        %v643 = vadd.f32 0.0, %v642
        %v644 = vpop.f32.mrb[0].mxu0
        %645 = vmatprep.mubr.f32.mxu0 %v302
        %646 = vmatmul.mubr.f32.gmra.mrb[0].mxu0 %v301
        %v647 = vpop.f32.mrb[0].mxu0
        %v648 = vadd.f32 0.0, %v647
        %v649 = vpop.f32.mrb[0].mxu0
        %650 = vdwg.mxu0
        %v651 = vmul.f32 %v370, %v568
        %v652 = vmul.f32 %v375, %v573
        %653 = vmatprep.subr.mxu0 0.0
        %654 = vmatpush1.msra.mxu0 %v485
        %655 = vmatprep.subr.mxu0 0.0
        %656 = vmatpush1.msra.mxu0 %v486
        %657 = vmatprep.subr.mxu0 0.0
        %658 = vmatpush1.msra.mxu0 %v487
        %659 = vmatprep.subr.mxu0 0.0
        %660 = vmatpush1.msra.mxu0 %v488
        %661 = vmatprep.subr.mxu0 0.0
        %662 = vmatpush1.msra.mxu0 %v489
        %663 = vmatprep.subr.mxu0 0.0
        %664 = vmatpush1.msra.mxu0 %v490
        %665 = vmatprep.subr.mxu0 0.0
        %666 = vmatpush1.msra.mxu0 %v491
        %667 = vmatprep.subr.mxu0 0.0
        %668 = vmatpush1.msra.mxu0 %v492
        %669 = vmatprep.subr.mxu0 0.0
        %670 = vmatpush1.msra.mxu0 %v493
        %671 = vmatprep.subr.mxu0 0.0
        %672 = vmatpush1.msra.mxu0 %v494
        %673 = vmatprep.subr.mxu0 0.0
        %674 = vmatpush1.msra.mxu0 %v495
        %675 = vmatprep.subr.mxu0 0.0
        %676 = vmatpush1.msra.mxu0 %v496
        %677 = vmatprep.subr.mxu0 0.0
        %678 = vmatpush1.msra.mxu0 %v497
        %679 = vmatprep.subr.mxu0 0.0
        %680 = vmatpush1.msra.mxu0 %v498
        %681 = vmatprep.subr.mxu0 0.0
        %682 = vmatpush1.msra.mxu0 %v499
        %683 = vmatprep.subr.mxu0 0.0
        %684 = vmatpush1.msra.mxu0 %v500
        %685 = vmatprep.subr.mxu0 0.0
        %686 = vmatpush1.msra.mxu0 0.0
        %687 = vmatprep.subr.mxu0 0.0
        %688 = vmatpush1.msra.mxu0 0.0
        %689 = vmatprep.subr.mxu0 0.0
        %690 = vmatpush1.msra.mxu0 0.0
        %691 = vmatprep.subr.mxu0 0.0
        %692 = vmatpush1.msra.mxu0 0.0
        %693 = vmatprep.subr.mxu0 0.0
        %694 = vmatpush1.msra.mxu0 0.0
        %695 = vmatprep.subr.mxu0 0.0
        %696 = vmatpush1.msra.mxu0 0.0
        %697 = vmatprep.subr.mxu0 0.0
        %698 = vmatpush1.msra.mxu0 0.0
        %699 = vmatprep.subr.mxu0 0.0
        %700 = vmatpush1.msra.mxu0 0.0
        %701 = vmatprep.subr.mxu0 0.0
        %702 = vmatpush1.msra.mxu0 0.0
        %703 = vmatprep.subr.mxu0 0.0
        %704 = vmatpush1.msra.mxu0 0.0
        %705 = vmatprep.subr.mxu0 0.0
        %706 = vmatpush1.msra.mxu0 0.0
        %707 = vmatprep.subr.mxu0 0.0
        %708 = vmatpush1.msra.mxu0 0.0
        %709 = vmatprep.subr.mxu0 0.0
        %710 = vmatpush1.msra.mxu0 0.0
        %711 = vmatprep.subr.mxu0 0.0
        %712 = vmatpush1.msra.mxu0 0.0
        %713 = vmatprep.subr.mxu0 0.0
        %714 = vmatpush1.msra.mxu0 0.0
        %715 = vmatprep.subr.mxu0 0.0
        %716 = vmatpush1.msra.mxu0 0.0
        %717 = vmatprep.mubr.f32.mxu0 0.0
        %718 = vmatmul.mubr.f32.gmra.mrb[0].mxu0 %v651
        %v719 = vpop.f32.mrb[0].mxu0
        %v720 = vadd.f32 0.0, %v719
        %v721 = vpop.f32.mrb[0].mxu0
        %722 = vmatprep.mubr.f32.mxu0 0.0
        %723 = vmatmul.mubr.f32.gmra.mrb[0].mxu0 %v652
        %v724 = vpop.f32.mrb[0].mxu0
        %v725 = vadd.f32 0.0, %v724
        %v726 = vpop.f32.mrb[0].mxu0
        %727 = vdwg.mxu0
        %v728 = vmul.f32 %v445, %v643
        %v729 = vmul.f32 %v450, %v648
        %730 = vmatprep.subr.mxu0 0.0
        %731 = vmatpush1.msra.mxu0 %v485
        %732 = vmatprep.subr.mxu0 0.0
        %733 = vmatpush1.msra.mxu0 %v486
        %734 = vmatprep.subr.mxu0 0.0
        %735 = vmatpush1.msra.mxu0 %v487
        %736 = vmatprep.subr.mxu0 0.0
        %737 = vmatpush1.msra.mxu0 %v488
        %738 = vmatprep.subr.mxu0 0.0
        %739 = vmatpush1.msra.mxu0 %v489
        %740 = vmatprep.subr.mxu0 0.0
        %741 = vmatpush1.msra.mxu0 %v490
        %742 = vmatprep.subr.mxu0 0.0
        %743 = vmatpush1.msra.mxu0 %v491
        %744 = vmatprep.subr.mxu0 0.0
        %745 = vmatpush1.msra.mxu0 %v492
        %746 = vmatprep.subr.mxu0 0.0
        %747 = vmatpush1.msra.mxu0 %v493
        %748 = vmatprep.subr.mxu0 0.0
        %749 = vmatpush1.msra.mxu0 %v494
        %750 = vmatprep.subr.mxu0 0.0
        %751 = vmatpush1.msra.mxu0 %v495
        %752 = vmatprep.subr.mxu0 0.0
        %753 = vmatpush1.msra.mxu0 %v496
        %754 = vmatprep.subr.mxu0 0.0
        %755 = vmatpush1.msra.mxu0 %v497
        %756 = vmatprep.subr.mxu0 0.0
        %757 = vmatpush1.msra.mxu0 %v498
        %758 = vmatprep.subr.mxu0 0.0
        %759 = vmatpush1.msra.mxu0 %v499
        %760 = vmatprep.subr.mxu0 0.0
        %761 = vmatpush1.msra.mxu0 %v500
        %762 = vmatprep.subr.mxu0 0.0
        %763 = vmatpush1.msra.mxu0 0.0
        %764 = vmatprep.subr.mxu0 0.0
        %765 = vmatpush1.msra.mxu0 0.0
        %766 = vmatprep.subr.mxu0 0.0
        %767 = vmatpush1.msra.mxu0 0.0
        %768 = vmatprep.subr.mxu0 0.0
        %769 = vmatpush1.msra.mxu0 0.0
        %770 = vmatprep.subr.mxu0 0.0
        %771 = vmatpush1.msra.mxu0 0.0
        %772 = vmatprep.subr.mxu0 0.0
        %773 = vmatpush1.msra.mxu0 0.0
        %774 = vmatprep.subr.mxu0 0.0
        %775 = vmatpush1.msra.mxu0 0.0
        %776 = vmatprep.subr.mxu0 0.0
        %777 = vmatpush1.msra.mxu0 0.0
        %778 = vmatprep.subr.mxu0 0.0
        %779 = vmatpush1.msra.mxu0 0.0
        %780 = vmatprep.subr.mxu0 0.0
        %781 = vmatpush1.msra.mxu0 0.0
        %782 = vmatprep.subr.mxu0 0.0
        %783 = vmatpush1.msra.mxu0 0.0
        %784 = vmatprep.subr.mxu0 0.0
        %785 = vmatpush1.msra.mxu0 0.0
        %786 = vmatprep.subr.mxu0 0.0
        %787 = vmatpush1.msra.mxu0 0.0
        %788 = vmatprep.subr.mxu0 0.0
        %789 = vmatpush1.msra.mxu0 0.0
        %790 = vmatprep.subr.mxu0 0.0
        %791 = vmatpush1.msra.mxu0 0.0
        %792 = vmatprep.subr.mxu0 0.0
        %793 = vmatpush1.msra.mxu0 0.0
        %794 = vmatprep.mubr.f32.mxu0 0.0
        %795 = vmatmul.mubr.f32.gmra.mrb[0].mxu0 %v728
        %v796 = vpop.f32.mrb[0].mxu0
        %v797 = vadd.f32 0.0, %v796
        %v798 = vpop.f32.mrb[0].mxu0
        %799 = vmatprep.mubr.f32.mxu0 0.0
        %800 = vmatmul.mubr.f32.gmra.mrb[0].mxu0 %v729
        %v801 = vpop.f32.mrb[0].mxu0
        %v802 = vadd.f32 0.0, %v801
        %v803 = vpop.f32.mrb[0].mxu0
        %804 = vdwg.mxu0
        %s805 = scalar_lea.vmem [#allocation7], 256
        %v806 = vld [vmem:[%s805] sm:$0xff]
        %v807 = vld [vmem:[%s805 + $0x8] sm:$0xff]
        %v808 = vld [vmem:[%s805 + $0x10] sm:$0xff]
        %v809 = vld [vmem:[%s805 + $0x18] sm:$0xff]
        %v810 = vld [vmem:[%s805 + $0x20] sm:$0xff]
        %v811 = vld [vmem:[%s805 + $0x28] sm:$0xff]
        %v812 = vld [vmem:[%s805 + $0x30] sm:$0xff]
        %v813 = vld [vmem:[%s805 + $0x38] sm:$0xff]
        %v814 = vld [vmem:[%s805 + $0x40] sm:$0xff]
        %v815 = vld [vmem:[%s805 + $0x48] sm:$0xff]
        %v816 = vld [vmem:[%s805 + $0x50] sm:$0xff]
        %v817 = vld [vmem:[%s805 + $0x58] sm:$0xff]
        %v818 = vld [vmem:[%s805 + $0x60] sm:$0xff]
        %v819 = vld [vmem:[%s805 + $0x68] sm:$0xff]
        %v820 = vld [vmem:[%s805 + $0x70] sm:$0xff]
        %v821 = vld [vmem:[%s805 + $0x78] sm:$0xff]
        %v822 = vld [vmem:[%s805 + $0x80] sm:$0xff]
        %v823 = vld [vmem:[%s805 + $0x88] sm:$0xff]
        %v824 = vld [vmem:[%s805 + $0x90] sm:$0xff]
        %v825 = vld [vmem:[%s805 + $0x98] sm:$0xff]
        %v826 = vld [vmem:[%s805 + $0xa0] sm:$0xff]
        %v827 = vld [vmem:[%s805 + $0xa8] sm:$0xff]
        %v828 = vld [vmem:[%s805 + $0xb0] sm:$0xff]
        %v829 = vld [vmem:[%s805 + $0xb8] sm:$0xff]
        %v830 = vld [vmem:[%s805 + $0xc0] sm:$0xff]
        %v831 = vld [vmem:[%s805 + $0xc8] sm:$0xff]
        %v832 = vld [vmem:[%s805 + $0xd0] sm:$0xff]
        %v833 = vld [vmem:[%s805 + $0xd8] sm:$0xff]
        %v834 = vld [vmem:[%s805 + $0xe0] sm:$0xff]
        %v835 = vld [vmem:[%s805 + $0xe8] sm:$0xff]
        %v836 = vld [vmem:[%s805 + $0xf0] sm:$0xff]
        %v837 = vld [vmem:[%s805 + $0xf8] sm:$0xff]
        %s838 = scalar_lea.vmem [#allocation8], 128
        %v839 = vld [vmem:[%s838] sm:$0xff]
        %v840 = vld [vmem:[%s838 + $0x8] sm:$0xff]
        %v841 = vld [vmem:[%s838 + $0x10] sm:$0xff]
        %v842 = vld [vmem:[%s838 + $0x18] sm:$0xff]
        %v843 = vld [vmem:[%s838 + $0x20] sm:$0xff]
        %v844 = vld [vmem:[%s838 + $0x28] sm:$0xff]
        %v845 = vld [vmem:[%s838 + $0x30] sm:$0xff]
        %v846 = vld [vmem:[%s838 + $0x38] sm:$0xff]
        %v847 = vld [vmem:[%s838 + $0x40] sm:$0xff]
        %v848 = vld [vmem:[%s838 + $0x48] sm:$0xff]
        %v849 = vld [vmem:[%s838 + $0x50] sm:$0xff]
        %v850 = vld [vmem:[%s838 + $0x58] sm:$0xff]
        %v851 = vld [vmem:[%s838 + $0x60] sm:$0xff]
        %v852 = vld [vmem:[%s838 + $0x68] sm:$0xff]
        %v853 = vld [vmem:[%s838 + $0x70] sm:$0xff]
        %v854 = vld [vmem:[%s838 + $0x78] sm:$0xff]
        %855 = vmatprep.subr.mxu0 0.0
        %856 = vmatpush1.msra.mxu0 %v806
        %857 = vmatprep.subr.mxu0 0.0
        %858 = vmatpush1.msra.mxu0 %v807
        %859 = vmatprep.subr.mxu0 0.0
        %860 = vmatpush1.msra.mxu0 %v808
        %861 = vmatprep.subr.mxu0 0.0
        %862 = vmatpush1.msra.mxu0 %v809
        %863 = vmatprep.subr.mxu0 0.0
        %864 = vmatpush1.msra.mxu0 %v810
        %865 = vmatprep.subr.mxu0 0.0
        %866 = vmatpush1.msra.mxu0 %v811
        %867 = vmatprep.subr.mxu0 0.0
        %868 = vmatpush1.msra.mxu0 %v812
        %869 = vmatprep.subr.mxu0 0.0
        %870 = vmatpush1.msra.mxu0 %v813
        %871 = vmatprep.subr.mxu0 0.0
        %872 = vmatpush1.msra.mxu0 %v814
        %873 = vmatprep.subr.mxu0 0.0
        %874 = vmatpush1.msra.mxu0 %v815
        %875 = vmatprep.subr.mxu0 0.0
        %876 = vmatpush1.msra.mxu0 %v816
        %877 = vmatprep.subr.mxu0 0.0
        %878 = vmatpush1.msra.mxu0 %v817
        %879 = vmatprep.subr.mxu0 0.0
        %880 = vmatpush1.msra.mxu0 %v818
        %881 = vmatprep.subr.mxu0 0.0
        %882 = vmatpush1.msra.mxu0 %v819
        %883 = vmatprep.subr.mxu0 0.0
        %884 = vmatpush1.msra.mxu0 %v820
        %885 = vmatprep.subr.mxu0 0.0
        %886 = vmatpush1.msra.mxu0 %v821
        %887 = vmatprep.subr.mxu0 0.0
        %888 = vmatpush1.msra.mxu0 %v822
        %889 = vmatprep.subr.mxu0 0.0
        %890 = vmatpush1.msra.mxu0 %v823
        %891 = vmatprep.subr.mxu0 0.0
        %892 = vmatpush1.msra.mxu0 %v824
        %893 = vmatprep.subr.mxu0 0.0
        %894 = vmatpush1.msra.mxu0 %v825
        %895 = vmatprep.subr.mxu0 0.0
        %896 = vmatpush1.msra.mxu0 %v826
        %897 = vmatprep.subr.mxu0 0.0
        %898 = vmatpush1.msra.mxu0 %v827
        %899 = vmatprep.subr.mxu0 0.0
        %900 = vmatpush1.msra.mxu0 %v828
        %901 = vmatprep.subr.mxu0 0.0
        %902 = vmatpush1.msra.mxu0 %v829
        %903 = vmatprep.subr.mxu0 0.0
        %904 = vmatpush1.msra.mxu0 %v830
        %905 = vmatprep.subr.mxu0 0.0
        %906 = vmatpush1.msra.mxu0 %v831
        %907 = vmatprep.subr.mxu0 0.0
        %908 = vmatpush1.msra.mxu0 %v832
        %909 = vmatprep.subr.mxu0 0.0
        %910 = vmatpush1.msra.mxu0 %v833
        %911 = vmatprep.subr.mxu0 0.0
        %912 = vmatpush1.msra.mxu0 %v834
        %913 = vmatprep.subr.mxu0 0.0
        %914 = vmatpush1.msra.mxu0 %v835
        %915 = vmatprep.subr.mxu0 0.0
        %916 = vmatpush1.msra.mxu0 %v836
        %917 = vmatprep.subr.mxu0 0.0
        %918 = vmatpush1.msra.mxu0 %v837
        %919 = vmatprep.mubr.f32.mxu0 %v296
        %920 = vmatmul.mubr.f32.gmra.mrb[0].mxu0 %v295
        %v921 = vpop.f32.mrb[0].mxu0
        %v922 = vadd.f32 0.0, %v921
        %v923 = vpop.f32.mrb[0].mxu0
        %924 = vmatprep.mubr.f32.mxu0 %v298
        %925 = vmatmul.mubr.f32.gmra.mrb[0].mxu0 %v297
        %v926 = vpop.f32.mrb[0].mxu0
        %v927 = vadd.f32 0.0, %v926
        %v928 = vpop.f32.mrb[0].mxu0
        %929 = vdwg.mxu0
        %930 = vmatprep.subr.mxu0 0.0
        %931 = vmatpush1.msra.mxu0 %v806
        %932 = vmatprep.subr.mxu0 0.0
        %933 = vmatpush1.msra.mxu0 %v807
        %934 = vmatprep.subr.mxu0 0.0
        %935 = vmatpush1.msra.mxu0 %v808
        %936 = vmatprep.subr.mxu0 0.0
        %937 = vmatpush1.msra.mxu0 %v809
        %938 = vmatprep.subr.mxu0 0.0
        %939 = vmatpush1.msra.mxu0 %v810
        %940 = vmatprep.subr.mxu0 0.0
        %941 = vmatpush1.msra.mxu0 %v811
        %942 = vmatprep.subr.mxu0 0.0
        %943 = vmatpush1.msra.mxu0 %v812
        %944 = vmatprep.subr.mxu0 0.0
        %945 = vmatpush1.msra.mxu0 %v813
        %946 = vmatprep.subr.mxu0 0.0
        %947 = vmatpush1.msra.mxu0 %v814
        %948 = vmatprep.subr.mxu0 0.0
        %949 = vmatpush1.msra.mxu0 %v815
        %950 = vmatprep.subr.mxu0 0.0
        %951 = vmatpush1.msra.mxu0 %v816
        %952 = vmatprep.subr.mxu0 0.0
        %953 = vmatpush1.msra.mxu0 %v817
        %954 = vmatprep.subr.mxu0 0.0
        %955 = vmatpush1.msra.mxu0 %v818
        %956 = vmatprep.subr.mxu0 0.0
        %957 = vmatpush1.msra.mxu0 %v819
        %958 = vmatprep.subr.mxu0 0.0
        %959 = vmatpush1.msra.mxu0 %v820
        %960 = vmatprep.subr.mxu0 0.0
        %961 = vmatpush1.msra.mxu0 %v821
        %962 = vmatprep.subr.mxu0 0.0
        %963 = vmatpush1.msra.mxu0 %v822
        %964 = vmatprep.subr.mxu0 0.0
        %965 = vmatpush1.msra.mxu0 %v823
        %966 = vmatprep.subr.mxu0 0.0
        %967 = vmatpush1.msra.mxu0 %v824
        %968 = vmatprep.subr.mxu0 0.0
        %969 = vmatpush1.msra.mxu0 %v825
        %970 = vmatprep.subr.mxu0 0.0
        %971 = vmatpush1.msra.mxu0 %v826
        %972 = vmatprep.subr.mxu0 0.0
        %973 = vmatpush1.msra.mxu0 %v827
        %974 = vmatprep.subr.mxu0 0.0
        %975 = vmatpush1.msra.mxu0 %v828
        %976 = vmatprep.subr.mxu0 0.0
        %977 = vmatpush1.msra.mxu0 %v829
        %978 = vmatprep.subr.mxu0 0.0
        %979 = vmatpush1.msra.mxu0 %v830
        %980 = vmatprep.subr.mxu0 0.0
        %981 = vmatpush1.msra.mxu0 %v831
        %982 = vmatprep.subr.mxu0 0.0
        %983 = vmatpush1.msra.mxu0 %v832
        %984 = vmatprep.subr.mxu0 0.0
        %985 = vmatpush1.msra.mxu0 %v833
        %986 = vmatprep.subr.mxu0 0.0
        %987 = vmatpush1.msra.mxu0 %v834
        %988 = vmatprep.subr.mxu0 0.0
        %989 = vmatpush1.msra.mxu0 %v835
        %990 = vmatprep.subr.mxu0 0.0
        %991 = vmatpush1.msra.mxu0 %v836
        %992 = vmatprep.subr.mxu0 0.0
        %993 = vmatpush1.msra.mxu0 %v837
        %994 = vmatprep.mubr.f32.mxu0 %v300
        %995 = vmatmul.mubr.f32.gmra.mrb[0].mxu0 %v299
        %v996 = vpop.f32.mrb[0].mxu0
        %v997 = vadd.f32 0.0, %v996
        %v998 = vpop.f32.mrb[0].mxu0
        %999 = vmatprep.mubr.f32.mxu0 %v302
        %1000 = vmatmul.mubr.f32.gmra.mrb[0].mxu0 %v301
        %v1001 = vpop.f32.mrb[0].mxu0
        %v1002 = vadd.f32 0.0, %v1001
        %v1003 = vpop.f32.mrb[0].mxu0
        %1004 = vdwg.mxu0
        %v1005 = vmul.f32 %v720, %v922
        %v1006 = vmul.f32 %v725, %v927
        %1007 = vmatprep.subr.mxu0 0.0
        %1008 = vmatpush1.msra.mxu0 %v839
        %1009 = vmatprep.subr.mxu0 0.0
        %1010 = vmatpush1.msra.mxu0 %v840
        %1011 = vmatprep.subr.mxu0 0.0
        %1012 = vmatpush1.msra.mxu0 %v841
        %1013 = vmatprep.subr.mxu0 0.0
        %1014 = vmatpush1.msra.mxu0 %v842
        %1015 = vmatprep.subr.mxu0 0.0
        %1016 = vmatpush1.msra.mxu0 %v843
        %1017 = vmatprep.subr.mxu0 0.0
        %1018 = vmatpush1.msra.mxu0 %v844
        %1019 = vmatprep.subr.mxu0 0.0
        %1020 = vmatpush1.msra.mxu0 %v845
        %1021 = vmatprep.subr.mxu0 0.0
        %1022 = vmatpush1.msra.mxu0 %v846
        %1023 = vmatprep.subr.mxu0 0.0
        %1024 = vmatpush1.msra.mxu0 %v847
        %1025 = vmatprep.subr.mxu0 0.0
        %1026 = vmatpush1.msra.mxu0 %v848
        %1027 = vmatprep.subr.mxu0 0.0
        %1028 = vmatpush1.msra.mxu0 %v849
        %1029 = vmatprep.subr.mxu0 0.0
        %1030 = vmatpush1.msra.mxu0 %v850
        %1031 = vmatprep.subr.mxu0 0.0
        %1032 = vmatpush1.msra.mxu0 %v851
        %1033 = vmatprep.subr.mxu0 0.0
        %1034 = vmatpush1.msra.mxu0 %v852
        %1035 = vmatprep.subr.mxu0 0.0
        %1036 = vmatpush1.msra.mxu0 %v853
        %1037 = vmatprep.subr.mxu0 0.0
        %1038 = vmatpush1.msra.mxu0 %v854
        %1039 = vmatprep.subr.mxu0 0.0
        %1040 = vmatpush1.msra.mxu0 0.0
        %1041 = vmatprep.subr.mxu0 0.0
        %1042 = vmatpush1.msra.mxu0 0.0
        %1043 = vmatprep.subr.mxu0 0.0
        %1044 = vmatpush1.msra.mxu0 0.0
        %1045 = vmatprep.subr.mxu0 0.0
        %1046 = vmatpush1.msra.mxu0 0.0
        %1047 = vmatprep.subr.mxu0 0.0
        %1048 = vmatpush1.msra.mxu0 0.0
        %1049 = vmatprep.subr.mxu0 0.0
        %1050 = vmatpush1.msra.mxu0 0.0
        %1051 = vmatprep.subr.mxu0 0.0
        %1052 = vmatpush1.msra.mxu0 0.0
        %1053 = vmatprep.subr.mxu0 0.0
        %1054 = vmatpush1.msra.mxu0 0.0
        %1055 = vmatprep.subr.mxu0 0.0
        %1056 = vmatpush1.msra.mxu0 0.0
        %1057 = vmatprep.subr.mxu0 0.0
        %1058 = vmatpush1.msra.mxu0 0.0
        %1059 = vmatprep.subr.mxu0 0.0
        %1060 = vmatpush1.msra.mxu0 0.0
        %1061 = vmatprep.subr.mxu0 0.0
        %1062 = vmatpush1.msra.mxu0 0.0
        %1063 = vmatprep.subr.mxu0 0.0
        %1064 = vmatpush1.msra.mxu0 0.0
        %1065 = vmatprep.subr.mxu0 0.0
        %1066 = vmatpush1.msra.mxu0 0.0
        %1067 = vmatprep.subr.mxu0 0.0
        %1068 = vmatpush1.msra.mxu0 0.0
        %1069 = vmatprep.subr.mxu0 0.0
        %1070 = vmatpush1.msra.mxu0 0.0
        %1071 = vmatprep.mubr.f32.mxu0 0.0
        %1072 = vmatmul.mubr.f32.gmra.mrb[0].mxu0 %v1005
        %v1073 = vpop.f32.mrb[0].mxu0
        %v1074 = vadd.f32 0.0, %v1073
        %v1075 = vpop.f32.mrb[0].mxu0
        %1076 = vmatprep.mubr.f32.mxu0 0.0
        %1077 = vmatmul.mubr.f32.gmra.mrb[0].mxu0 %v1006
        %v1078 = vpop.f32.mrb[0].mxu0
        %v1079 = vadd.f32 0.0, %v1078
        %v1080 = vpop.f32.mrb[0].mxu0
        %1081 = vdwg.mxu0
        %v1082 = vmul.f32 %v797, %v997
        %v1083 = vmul.f32 %v802, %v1002
        %1084 = vmatprep.subr.mxu0 0.0
        %1085 = vmatpush1.msra.mxu0 %v839
        %1086 = vmatprep.subr.mxu0 0.0
        %1087 = vmatpush1.msra.mxu0 %v840
        %1088 = vmatprep.subr.mxu0 0.0
        %1089 = vmatpush1.msra.mxu0 %v841
        %1090 = vmatprep.subr.mxu0 0.0
        %1091 = vmatpush1.msra.mxu0 %v842
        %1092 = vmatprep.subr.mxu0 0.0
        %1093 = vmatpush1.msra.mxu0 %v843
        %1094 = vmatprep.subr.mxu0 0.0
        %1095 = vmatpush1.msra.mxu0 %v844
        %1096 = vmatprep.subr.mxu0 0.0
        %1097 = vmatpush1.msra.mxu0 %v845
        %1098 = vmatprep.subr.mxu0 0.0
        %1099 = vmatpush1.msra.mxu0 %v846
        %1100 = vmatprep.subr.mxu0 0.0
        %1101 = vmatpush1.msra.mxu0 %v847
        %1102 = vmatprep.subr.mxu0 0.0
        %1103 = vmatpush1.msra.mxu0 %v848
        %1104 = vmatprep.subr.mxu0 0.0
        %1105 = vmatpush1.msra.mxu0 %v849
        %1106 = vmatprep.subr.mxu0 0.0
        %1107 = vmatpush1.msra.mxu0 %v850
        %1108 = vmatprep.subr.mxu0 0.0
        %1109 = vmatpush1.msra.mxu0 %v851
        %1110 = vmatprep.subr.mxu0 0.0
        %1111 = vmatpush1.msra.mxu0 %v852
        %1112 = vmatprep.subr.mxu0 0.0
        %1113 = vmatpush1.msra.mxu0 %v853
        %1114 = vmatprep.subr.mxu0 0.0
        %1115 = vmatpush1.msra.mxu0 %v854
        %1116 = vmatprep.subr.mxu0 0.0
        %1117 = vmatpush1.msra.mxu0 0.0
        %1118 = vmatprep.subr.mxu0 0.0
        %1119 = vmatpush1.msra.mxu0 0.0
        %1120 = vmatprep.subr.mxu0 0.0
        %1121 = vmatpush1.msra.mxu0 0.0
        %1122 = vmatprep.subr.mxu0 0.0
        %1123 = vmatpush1.msra.mxu0 0.0
        %1124 = vmatprep.subr.mxu0 0.0
        %1125 = vmatpush1.msra.mxu0 0.0
        %1126 = vmatprep.subr.mxu0 0.0
        %1127 = vmatpush1.msra.mxu0 0.0
        %1128 = vmatprep.subr.mxu0 0.0
        %1129 = vmatpush1.msra.mxu0 0.0
        %1130 = vmatprep.subr.mxu0 0.0
        %1131 = vmatpush1.msra.mxu0 0.0
        %1132 = vmatprep.subr.mxu0 0.0
        %1133 = vmatpush1.msra.mxu0 0.0
        %1134 = vmatprep.subr.mxu0 0.0
        %1135 = vmatpush1.msra.mxu0 0.0
        %1136 = vmatprep.subr.mxu0 0.0
        %1137 = vmatpush1.msra.mxu0 0.0
        %1138 = vmatprep.subr.mxu0 0.0
        %1139 = vmatpush1.msra.mxu0 0.0
        %1140 = vmatprep.subr.mxu0 0.0
        %1141 = vmatpush1.msra.mxu0 0.0
        %1142 = vmatprep.subr.mxu0 0.0
        %1143 = vmatpush1.msra.mxu0 0.0
        %1144 = vmatprep.subr.mxu0 0.0
        %1145 = vmatpush1.msra.mxu0 0.0
        %1146 = vmatprep.subr.mxu0 0.0
        %1147 = vmatpush1.msra.mxu0 0.0
        %1148 = vmatprep.mubr.f32.mxu0 0.0
        %1149 = vmatmul.mubr.f32.gmra.mrb[0].mxu0 %v1082
        %v1150 = vpop.f32.mrb[0].mxu0
        %v1151 = vadd.f32 0.0, %v1150
        %v1152 = vpop.f32.mrb[0].mxu0
        %1153 = vmatprep.mubr.f32.mxu0 0.0
        %1154 = vmatmul.mubr.f32.gmra.mrb[0].mxu0 %v1083
        %v1155 = vpop.f32.mrb[0].mxu0
        %v1156 = vadd.f32 0.0, %v1155
        %v1157 = vpop.f32.mrb[0].mxu0
        %1158 = vdwg.mxu0
        %s1159 = scalar_lea.vmem [#allocation7], 512
        %v1160 = vld [vmem:[%s1159] sm:$0xff]
        %v1161 = vld [vmem:[%s1159 + $0x8] sm:$0xff]
        %v1162 = vld [vmem:[%s1159 + $0x10] sm:$0xff]
        %v1163 = vld [vmem:[%s1159 + $0x18] sm:$0xff]
        %v1164 = vld [vmem:[%s1159 + $0x20] sm:$0xff]
        %v1165 = vld [vmem:[%s1159 + $0x28] sm:$0xff]
        %v1166 = vld [vmem:[%s1159 + $0x30] sm:$0xff]
        %v1167 = vld [vmem:[%s1159 + $0x38] sm:$0xff]
        %v1168 = vld [vmem:[%s1159 + $0x40] sm:$0xff]
        %v1169 = vld [vmem:[%s1159 + $0x48] sm:$0xff]
        %v1170 = vld [vmem:[%s1159 + $0x50] sm:$0xff]
        %v1171 = vld [vmem:[%s1159 + $0x58] sm:$0xff]
        %v1172 = vld [vmem:[%s1159 + $0x60] sm:$0xff]
        %v1173 = vld [vmem:[%s1159 + $0x68] sm:$0xff]
        %v1174 = vld [vmem:[%s1159 + $0x70] sm:$0xff]
        %v1175 = vld [vmem:[%s1159 + $0x78] sm:$0xff]
        %v1176 = vld [vmem:[%s1159 + $0x80] sm:$0xff]
        %v1177 = vld [vmem:[%s1159 + $0x88] sm:$0xff]
        %v1178 = vld [vmem:[%s1159 + $0x90] sm:$0xff]
        %v1179 = vld [vmem:[%s1159 + $0x98] sm:$0xff]
        %v1180 = vld [vmem:[%s1159 + $0xa0] sm:$0xff]
        %v1181 = vld [vmem:[%s1159 + $0xa8] sm:$0xff]
        %v1182 = vld [vmem:[%s1159 + $0xb0] sm:$0xff]
        %v1183 = vld [vmem:[%s1159 + $0xb8] sm:$0xff]
        %v1184 = vld [vmem:[%s1159 + $0xc0] sm:$0xff]
        %v1185 = vld [vmem:[%s1159 + $0xc8] sm:$0xff]
        %v1186 = vld [vmem:[%s1159 + $0xd0] sm:$0xff]
        %v1187 = vld [vmem:[%s1159 + $0xd8] sm:$0xff]
        %v1188 = vld [vmem:[%s1159 + $0xe0] sm:$0xff]
        %v1189 = vld [vmem:[%s1159 + $0xe8] sm:$0xff]
        %v1190 = vld [vmem:[%s1159 + $0xf0] sm:$0xff]
        %v1191 = vld [vmem:[%s1159 + $0xf8] sm:$0xff]
        %s1192 = scalar_lea.vmem [#allocation8], 256
        %v1193 = vld [vmem:[%s1192] sm:$0xff]
        %v1194 = vld [vmem:[%s1192 + $0x8] sm:$0xff]
        %v1195 = vld [vmem:[%s1192 + $0x10] sm:$0xff]
        %v1196 = vld [vmem:[%s1192 + $0x18] sm:$0xff]
        %v1197 = vld [vmem:[%s1192 + $0x20] sm:$0xff]
        %v1198 = vld [vmem:[%s1192 + $0x28] sm:$0xff]
        %v1199 = vld [vmem:[%s1192 + $0x30] sm:$0xff]
        %v1200 = vld [vmem:[%s1192 + $0x38] sm:$0xff]
        %v1201 = vld [vmem:[%s1192 + $0x40] sm:$0xff]
        %v1202 = vld [vmem:[%s1192 + $0x48] sm:$0xff]
        %v1203 = vld [vmem:[%s1192 + $0x50] sm:$0xff]
        %v1204 = vld [vmem:[%s1192 + $0x58] sm:$0xff]
        %v1205 = vld [vmem:[%s1192 + $0x60] sm:$0xff]
        %v1206 = vld [vmem:[%s1192 + $0x68] sm:$0xff]
        %v1207 = vld [vmem:[%s1192 + $0x70] sm:$0xff]
        %v1208 = vld [vmem:[%s1192 + $0x78] sm:$0xff]
        %1209 = vmatprep.subr.mxu0 0.0
        %1210 = vmatpush1.msra.mxu0 %v1160
        %1211 = vmatprep.subr.mxu0 0.0
        %1212 = vmatpush1.msra.mxu0 %v1161
        %1213 = vmatprep.subr.mxu0 0.0
        %1214 = vmatpush1.msra.mxu0 %v1162
        %1215 = vmatprep.subr.mxu0 0.0
        %1216 = vmatpush1.msra.mxu0 %v1163
        %1217 = vmatprep.subr.mxu0 0.0
        %1218 = vmatpush1.msra.mxu0 %v1164
        %1219 = vmatprep.subr.mxu0 0.0
        %1220 = vmatpush1.msra.mxu0 %v1165
        %1221 = vmatprep.subr.mxu0 0.0
        %1222 = vmatpush1.msra.mxu0 %v1166
        %1223 = vmatprep.subr.mxu0 0.0
        %1224 = vmatpush1.msra.mxu0 %v1167
        %1225 = vmatprep.subr.mxu0 0.0
        %1226 = vmatpush1.msra.mxu0 %v1168
        %1227 = vmatprep.subr.mxu0 0.0
        %1228 = vmatpush1.msra.mxu0 %v1169
        %1229 = vmatprep.subr.mxu0 0.0
        %1230 = vmatpush1.msra.mxu0 %v1170
        %1231 = vmatprep.subr.mxu0 0.0
        %1232 = vmatpush1.msra.mxu0 %v1171
        %1233 = vmatprep.subr.mxu0 0.0
        %1234 = vmatpush1.msra.mxu0 %v1172
        %1235 = vmatprep.subr.mxu0 0.0
        %1236 = vmatpush1.msra.mxu0 %v1173
        %1237 = vmatprep.subr.mxu0 0.0
        %1238 = vmatpush1.msra.mxu0 %v1174
        %1239 = vmatprep.subr.mxu0 0.0
        %1240 = vmatpush1.msra.mxu0 %v1175
        %1241 = vmatprep.subr.mxu0 0.0
        %1242 = vmatpush1.msra.mxu0 %v1176
        %1243 = vmatprep.subr.mxu0 0.0
        %1244 = vmatpush1.msra.mxu0 %v1177
        %1245 = vmatprep.subr.mxu0 0.0
        %1246 = vmatpush1.msra.mxu0 %v1178
        %1247 = vmatprep.subr.mxu0 0.0
        %1248 = vmatpush1.msra.mxu0 %v1179
        %1249 = vmatprep.subr.mxu0 0.0
        %1250 = vmatpush1.msra.mxu0 %v1180
        %1251 = vmatprep.subr.mxu0 0.0
        %1252 = vmatpush1.msra.mxu0 %v1181
        %1253 = vmatprep.subr.mxu0 0.0
        %1254 = vmatpush1.msra.mxu0 %v1182
        %1255 = vmatprep.subr.mxu0 0.0
        %1256 = vmatpush1.msra.mxu0 %v1183
        %1257 = vmatprep.subr.mxu0 0.0
        %1258 = vmatpush1.msra.mxu0 %v1184
        %1259 = vmatprep.subr.mxu0 0.0
        %1260 = vmatpush1.msra.mxu0 %v1185
        %1261 = vmatprep.subr.mxu0 0.0
        %1262 = vmatpush1.msra.mxu0 %v1186
        %1263 = vmatprep.subr.mxu0 0.0
        %1264 = vmatpush1.msra.mxu0 %v1187
        %1265 = vmatprep.subr.mxu0 0.0
        %1266 = vmatpush1.msra.mxu0 %v1188
        %1267 = vmatprep.subr.mxu0 0.0
        %1268 = vmatpush1.msra.mxu0 %v1189
        %1269 = vmatprep.subr.mxu0 0.0
        %1270 = vmatpush1.msra.mxu0 %v1190
        %1271 = vmatprep.subr.mxu0 0.0
        %1272 = vmatpush1.msra.mxu0 %v1191
        %1273 = vmatprep.mubr.f32.mxu0 %v296
        %1274 = vmatmul.mubr.f32.gmra.mrb[0].mxu0 %v295
        %v1275 = vpop.f32.mrb[0].mxu0
        %v1276 = vadd.f32 0.0, %v1275
        %v1277 = vpop.f32.mrb[0].mxu0
        %1278 = vmatprep.mubr.f32.mxu0 %v298
        %1279 = vmatmul.mubr.f32.gmra.mrb[0].mxu0 %v297
        %v1280 = vpop.f32.mrb[0].mxu0
        %v1281 = vadd.f32 0.0, %v1280
        %v1282 = vpop.f32.mrb[0].mxu0
        %1283 = vdwg.mxu0
        %1284 = vmatprep.subr.mxu0 0.0
        %1285 = vmatpush1.msra.mxu0 %v1160
        %1286 = vmatprep.subr.mxu0 0.0
        %1287 = vmatpush1.msra.mxu0 %v1161
        %1288 = vmatprep.subr.mxu0 0.0
        %1289 = vmatpush1.msra.mxu0 %v1162
        %1290 = vmatprep.subr.mxu0 0.0
        %1291 = vmatpush1.msra.mxu0 %v1163
        %1292 = vmatprep.subr.mxu0 0.0
        %1293 = vmatpush1.msra.mxu0 %v1164
        %1294 = vmatprep.subr.mxu0 0.0
        %1295 = vmatpush1.msra.mxu0 %v1165
        %1296 = vmatprep.subr.mxu0 0.0
        %1297 = vmatpush1.msra.mxu0 %v1166
        %1298 = vmatprep.subr.mxu0 0.0
        %1299 = vmatpush1.msra.mxu0 %v1167
        %1300 = vmatprep.subr.mxu0 0.0
        %1301 = vmatpush1.msra.mxu0 %v1168
        %1302 = vmatprep.subr.mxu0 0.0
        %1303 = vmatpush1.msra.mxu0 %v1169
        %1304 = vmatprep.subr.mxu0 0.0
        %1305 = vmatpush1.msra.mxu0 %v1170
        %1306 = vmatprep.subr.mxu0 0.0
        %1307 = vmatpush1.msra.mxu0 %v1171
        %1308 = vmatprep.subr.mxu0 0.0
        %1309 = vmatpush1.msra.mxu0 %v1172
        %1310 = vmatprep.subr.mxu0 0.0
        %1311 = vmatpush1.msra.mxu0 %v1173
        %1312 = vmatprep.subr.mxu0 0.0
        %1313 = vmatpush1.msra.mxu0 %v1174
        %1314 = vmatprep.subr.mxu0 0.0
        %1315 = vmatpush1.msra.mxu0 %v1175
        %1316 = vmatprep.subr.mxu0 0.0
        %1317 = vmatpush1.msra.mxu0 %v1176
        %1318 = vmatprep.subr.mxu0 0.0
        %1319 = vmatpush1.msra.mxu0 %v1177
        %1320 = vmatprep.subr.mxu0 0.0
        %1321 = vmatpush1.msra.mxu0 %v1178
        %1322 = vmatprep.subr.mxu0 0.0
        %1323 = vmatpush1.msra.mxu0 %v1179
        %1324 = vmatprep.subr.mxu0 0.0
        %1325 = vmatpush1.msra.mxu0 %v1180
        %1326 = vmatprep.subr.mxu0 0.0
        %1327 = vmatpush1.msra.mxu0 %v1181
        %1328 = vmatprep.subr.mxu0 0.0
        %1329 = vmatpush1.msra.mxu0 %v1182
        %1330 = vmatprep.subr.mxu0 0.0
        %1331 = vmatpush1.msra.mxu0 %v1183
        %1332 = vmatprep.subr.mxu0 0.0
        %1333 = vmatpush1.msra.mxu0 %v1184
        %1334 = vmatprep.subr.mxu0 0.0
        %1335 = vmatpush1.msra.mxu0 %v1185
        %1336 = vmatprep.subr.mxu0 0.0
        %1337 = vmatpush1.msra.mxu0 %v1186
        %1338 = vmatprep.subr.mxu0 0.0
        %1339 = vmatpush1.msra.mxu0 %v1187
        %1340 = vmatprep.subr.mxu0 0.0
        %1341 = vmatpush1.msra.mxu0 %v1188
        %1342 = vmatprep.subr.mxu0 0.0
        %1343 = vmatpush1.msra.mxu0 %v1189
        %1344 = vmatprep.subr.mxu0 0.0
        %1345 = vmatpush1.msra.mxu0 %v1190
        %1346 = vmatprep.subr.mxu0 0.0
        %1347 = vmatpush1.msra.mxu0 %v1191
        %1348 = vmatprep.mubr.f32.mxu0 %v300
        %1349 = vmatmul.mubr.f32.gmra.mrb[0].mxu0 %v299
        %v1350 = vpop.f32.mrb[0].mxu0
        %v1351 = vadd.f32 0.0, %v1350
        %v1352 = vpop.f32.mrb[0].mxu0
        %1353 = vmatprep.mubr.f32.mxu0 %v302
        %1354 = vmatmul.mubr.f32.gmra.mrb[0].mxu0 %v301
        %v1355 = vpop.f32.mrb[0].mxu0
        %v1356 = vadd.f32 0.0, %v1355
        %v1357 = vpop.f32.mrb[0].mxu0
        %1358 = vdwg.mxu0
        %v1359 = vmul.f32 %v1074, %v1276
        %v1360 = vmul.f32 %v1079, %v1281
        %1361 = vmatprep.subr.mxu0 0.0
        %1362 = vmatpush1.msra.mxu0 %v1193
        %1363 = vmatprep.subr.mxu0 0.0
        %1364 = vmatpush1.msra.mxu0 %v1194
        %1365 = vmatprep.subr.mxu0 0.0
        %1366 = vmatpush1.msra.mxu0 %v1195
        %1367 = vmatprep.subr.mxu0 0.0
        %1368 = vmatpush1.msra.mxu0 %v1196
        %1369 = vmatprep.subr.mxu0 0.0
        %1370 = vmatpush1.msra.mxu0 %v1197
        %1371 = vmatprep.subr.mxu0 0.0
        %1372 = vmatpush1.msra.mxu0 %v1198
        %1373 = vmatprep.subr.mxu0 0.0
        %1374 = vmatpush1.msra.mxu0 %v1199
        %1375 = vmatprep.subr.mxu0 0.0
        %1376 = vmatpush1.msra.mxu0 %v1200
        %1377 = vmatprep.subr.mxu0 0.0
        %1378 = vmatpush1.msra.mxu0 %v1201
        %1379 = vmatprep.subr.mxu0 0.0
        %1380 = vmatpush1.msra.mxu0 %v1202
        %1381 = vmatprep.subr.mxu0 0.0
        %1382 = vmatpush1.msra.mxu0 %v1203
        %1383 = vmatprep.subr.mxu0 0.0
        %1384 = vmatpush1.msra.mxu0 %v1204
        %1385 = vmatprep.subr.mxu0 0.0
        %1386 = vmatpush1.msra.mxu0 %v1205
        %1387 = vmatprep.subr.mxu0 0.0
        %1388 = vmatpush1.msra.mxu0 %v1206
        %1389 = vmatprep.subr.mxu0 0.0
        %1390 = vmatpush1.msra.mxu0 %v1207
        %1391 = vmatprep.subr.mxu0 0.0
        %1392 = vmatpush1.msra.mxu0 %v1208
        %1393 = vmatprep.subr.mxu0 0.0
        %1394 = vmatpush1.msra.mxu0 0.0
        %1395 = vmatprep.subr.mxu0 0.0
        %1396 = vmatpush1.msra.mxu0 0.0
        %1397 = vmatprep.subr.mxu0 0.0
        %1398 = vmatpush1.msra.mxu0 0.0
        %1399 = vmatprep.subr.mxu0 0.0
        %1400 = vmatpush1.msra.mxu0 0.0
        %1401 = vmatprep.subr.mxu0 0.0
        %1402 = vmatpush1.msra.mxu0 0.0
        %1403 = vmatprep.subr.mxu0 0.0
        %1404 = vmatpush1.msra.mxu0 0.0
        %1405 = vmatprep.subr.mxu0 0.0
        %1406 = vmatpush1.msra.mxu0 0.0
        %1407 = vmatprep.subr.mxu0 0.0
        %1408 = vmatpush1.msra.mxu0 0.0
        %1409 = vmatprep.subr.mxu0 0.0
        %1410 = vmatpush1.msra.mxu0 0.0
        %1411 = vmatprep.subr.mxu0 0.0
        %1412 = vmatpush1.msra.mxu0 0.0
        %1413 = vmatprep.subr.mxu0 0.0
        %1414 = vmatpush1.msra.mxu0 0.0
        %1415 = vmatprep.subr.mxu0 0.0
        %1416 = vmatpush1.msra.mxu0 0.0
        %1417 = vmatprep.subr.mxu0 0.0
        %1418 = vmatpush1.msra.mxu0 0.0
        %1419 = vmatprep.subr.mxu0 0.0
        %1420 = vmatpush1.msra.mxu0 0.0
        %1421 = vmatprep.subr.mxu0 0.0
        %1422 = vmatpush1.msra.mxu0 0.0
        %1423 = vmatprep.subr.mxu0 0.0
        %1424 = vmatpush1.msra.mxu0 0.0
        %1425 = vmatprep.mubr.f32.mxu0 0.0
        %1426 = vmatmul.mubr.f32.gmra.mrb[0].mxu0 %v1359
        %v1427 = vpop.f32.mrb[0].mxu0
        %v1428 = vadd.f32 0.0, %v1427
        %v1429 = vpop.f32.mrb[0].mxu0
        %1430 = vmatprep.mubr.f32.mxu0 0.0
        %1431 = vmatmul.mubr.f32.gmra.mrb[0].mxu0 %v1360
        %v1432 = vpop.f32.mrb[0].mxu0
        %v1433 = vadd.f32 0.0, %v1432
        %v1434 = vpop.f32.mrb[0].mxu0
        %1435 = vdwg.mxu0
        %v1436 = vmul.f32 %v1151, %v1351
        %v1437 = vmul.f32 %v1156, %v1356
        %1438 = vmatprep.subr.mxu0 0.0
        %1439 = vmatpush1.msra.mxu0 %v1193
        %1440 = vmatprep.subr.mxu0 0.0
        %1441 = vmatpush1.msra.mxu0 %v1194
        %1442 = vmatprep.subr.mxu0 0.0
        %1443 = vmatpush1.msra.mxu0 %v1195
        %1444 = vmatprep.subr.mxu0 0.0
        %1445 = vmatpush1.msra.mxu0 %v1196
        %1446 = vmatprep.subr.mxu0 0.0
        %1447 = vmatpush1.msra.mxu0 %v1197
        %1448 = vmatprep.subr.mxu0 0.0
        %1449 = vmatpush1.msra.mxu0 %v1198
        %1450 = vmatprep.subr.mxu0 0.0
        %1451 = vmatpush1.msra.mxu0 %v1199
        %1452 = vmatprep.subr.mxu0 0.0
        %1453 = vmatpush1.msra.mxu0 %v1200
        %1454 = vmatprep.subr.mxu0 0.0
        %1455 = vmatpush1.msra.mxu0 %v1201
        %1456 = vmatprep.subr.mxu0 0.0
        %1457 = vmatpush1.msra.mxu0 %v1202
        %1458 = vmatprep.subr.mxu0 0.0
        %1459 = vmatpush1.msra.mxu0 %v1203
        %1460 = vmatprep.subr.mxu0 0.0
        %1461 = vmatpush1.msra.mxu0 %v1204
        %1462 = vmatprep.subr.mxu0 0.0
        %1463 = vmatpush1.msra.mxu0 %v1205
        %1464 = vmatprep.subr.mxu0 0.0
        %1465 = vmatpush1.msra.mxu0 %v1206
        %1466 = vmatprep.subr.mxu0 0.0
        %1467 = vmatpush1.msra.mxu0 %v1207
        %1468 = vmatprep.subr.mxu0 0.0
        %1469 = vmatpush1.msra.mxu0 %v1208
        %1470 = vmatprep.subr.mxu0 0.0
        %1471 = vmatpush1.msra.mxu0 0.0
        %1472 = vmatprep.subr.mxu0 0.0
        %1473 = vmatpush1.msra.mxu0 0.0
        %1474 = vmatprep.subr.mxu0 0.0
        %1475 = vmatpush1.msra.mxu0 0.0
        %1476 = vmatprep.subr.mxu0 0.0
        %1477 = vmatpush1.msra.mxu0 0.0
        %1478 = vmatprep.subr.mxu0 0.0
        %1479 = vmatpush1.msra.mxu0 0.0
        %1480 = vmatprep.subr.mxu0 0.0
        %1481 = vmatpush1.msra.mxu0 0.0
        %1482 = vmatprep.subr.mxu0 0.0
        %1483 = vmatpush1.msra.mxu0 0.0
        %1484 = vmatprep.subr.mxu0 0.0
        %1485 = vmatpush1.msra.mxu0 0.0
        %1486 = vmatprep.subr.mxu0 0.0
        %1487 = vmatpush1.msra.mxu0 0.0
        %1488 = vmatprep.subr.mxu0 0.0
        %1489 = vmatpush1.msra.mxu0 0.0
        %1490 = vmatprep.subr.mxu0 0.0
        %1491 = vmatpush1.msra.mxu0 0.0
        %1492 = vmatprep.subr.mxu0 0.0
        %1493 = vmatpush1.msra.mxu0 0.0
        %1494 = vmatprep.subr.mxu0 0.0
        %1495 = vmatpush1.msra.mxu0 0.0
        %1496 = vmatprep.subr.mxu0 0.0
        %1497 = vmatpush1.msra.mxu0 0.0
        %1498 = vmatprep.subr.mxu0 0.0
        %1499 = vmatpush1.msra.mxu0 0.0
        %1500 = vmatprep.subr.mxu0 0.0
        %1501 = vmatpush1.msra.mxu0 0.0
        %1502 = vmatprep.mubr.f32.mxu0 0.0
        %1503 = vmatmul.mubr.f32.gmra.mrb[0].mxu0 %v1436
        %v1504 = vpop.f32.mrb[0].mxu0
        %v1505 = vadd.f32 0.0, %v1504
        %v1506 = vpop.f32.mrb[0].mxu0
        %1507 = vmatprep.mubr.f32.mxu0 0.0
        %1508 = vmatmul.mubr.f32.gmra.mrb[0].mxu0 %v1437
        %v1509 = vpop.f32.mrb[0].mxu0
        %v1510 = vadd.f32 0.0, %v1509
        %v1511 = vpop.f32.mrb[0].mxu0
        %1512 = vdwg.mxu0
        %s1513 = scalar_lea.vmem [#allocation7], 768
        %v1514 = vld [vmem:[%s1513] sm:$0xff]
        %v1515 = vld [vmem:[%s1513 + $0x8] sm:$0xff]
        %v1516 = vld [vmem:[%s1513 + $0x10] sm:$0xff]
        %v1517 = vld [vmem:[%s1513 + $0x18] sm:$0xff]
        %v1518 = vld [vmem:[%s1513 + $0x20] sm:$0xff]
        %v1519 = vld [vmem:[%s1513 + $0x28] sm:$0xff]
        %v1520 = vld [vmem:[%s1513 + $0x30] sm:$0xff]
        %v1521 = vld [vmem:[%s1513 + $0x38] sm:$0xff]
        %v1522 = vld [vmem:[%s1513 + $0x40] sm:$0xff]
        %v1523 = vld [vmem:[%s1513 + $0x48] sm:$0xff]
        %v1524 = vld [vmem:[%s1513 + $0x50] sm:$0xff]
        %v1525 = vld [vmem:[%s1513 + $0x58] sm:$0xff]
        %v1526 = vld [vmem:[%s1513 + $0x60] sm:$0xff]
        %v1527 = vld [vmem:[%s1513 + $0x68] sm:$0xff]
        %v1528 = vld [vmem:[%s1513 + $0x70] sm:$0xff]
        %v1529 = vld [vmem:[%s1513 + $0x78] sm:$0xff]
        %v1530 = vld [vmem:[%s1513 + $0x80] sm:$0xff]
        %v1531 = vld [vmem:[%s1513 + $0x88] sm:$0xff]
        %v1532 = vld [vmem:[%s1513 + $0x90] sm:$0xff]
        %v1533 = vld [vmem:[%s1513 + $0x98] sm:$0xff]
        %v1534 = vld [vmem:[%s1513 + $0xa0] sm:$0xff]
        %v1535 = vld [vmem:[%s1513 + $0xa8] sm:$0xff]
        %v1536 = vld [vmem:[%s1513 + $0xb0] sm:$0xff]
        %v1537 = vld [vmem:[%s1513 + $0xb8] sm:$0xff]
        %v1538 = vld [vmem:[%s1513 + $0xc0] sm:$0xff]
        %v1539 = vld [vmem:[%s1513 + $0xc8] sm:$0xff]
        %v1540 = vld [vmem:[%s1513 + $0xd0] sm:$0xff]
        %v1541 = vld [vmem:[%s1513 + $0xd8] sm:$0xff]
        %v1542 = vld [vmem:[%s1513 + $0xe0] sm:$0xff]
        %v1543 = vld [vmem:[%s1513 + $0xe8] sm:$0xff]
        %v1544 = vld [vmem:[%s1513 + $0xf0] sm:$0xff]
        %v1545 = vld [vmem:[%s1513 + $0xf8] sm:$0xff]
        %s1546 = scalar_lea.vmem [#allocation8], 384
        %v1547 = vld [vmem:[%s1546] sm:$0xff]
        %v1548 = vld [vmem:[%s1546 + $0x8] sm:$0xff]
        %v1549 = vld [vmem:[%s1546 + $0x10] sm:$0xff]
        %v1550 = vld [vmem:[%s1546 + $0x18] sm:$0xff]
        %v1551 = vld [vmem:[%s1546 + $0x20] sm:$0xff]
        %v1552 = vld [vmem:[%s1546 + $0x28] sm:$0xff]
        %v1553 = vld [vmem:[%s1546 + $0x30] sm:$0xff]
        %v1554 = vld [vmem:[%s1546 + $0x38] sm:$0xff]
        %v1555 = vld [vmem:[%s1546 + $0x40] sm:$0xff]
        %v1556 = vld [vmem:[%s1546 + $0x48] sm:$0xff]
        %v1557 = vld [vmem:[%s1546 + $0x50] sm:$0xff]
        %v1558 = vld [vmem:[%s1546 + $0x58] sm:$0xff]
        %v1559 = vld [vmem:[%s1546 + $0x60] sm:$0xff]
        %v1560 = vld [vmem:[%s1546 + $0x68] sm:$0xff]
        %v1561 = vld [vmem:[%s1546 + $0x70] sm:$0xff]
        %v1562 = vld [vmem:[%s1546 + $0x78] sm:$0xff]
        %1563 = vmatprep.subr.mxu0 0.0
        %1564 = vmatpush1.msra.mxu0 %v1514
        %1565 = vmatprep.subr.mxu0 0.0
        %1566 = vmatpush1.msra.mxu0 %v1515
        %1567 = vmatprep.subr.mxu0 0.0
        %1568 = vmatpush1.msra.mxu0 %v1516
        %1569 = vmatprep.subr.mxu0 0.0
        %1570 = vmatpush1.msra.mxu0 %v1517
        %1571 = vmatprep.subr.mxu0 0.0
        %1572 = vmatpush1.msra.mxu0 %v1518
        %1573 = vmatprep.subr.mxu0 0.0
        %1574 = vmatpush1.msra.mxu0 %v1519
        %1575 = vmatprep.subr.mxu0 0.0
        %1576 = vmatpush1.msra.mxu0 %v1520
        %1577 = vmatprep.subr.mxu0 0.0
        %1578 = vmatpush1.msra.mxu0 %v1521
        %1579 = vmatprep.subr.mxu0 0.0
        %1580 = vmatpush1.msra.mxu0 %v1522
        %1581 = vmatprep.subr.mxu0 0.0
        %1582 = vmatpush1.msra.mxu0 %v1523
        %1583 = vmatprep.subr.mxu0 0.0
        %1584 = vmatpush1.msra.mxu0 %v1524
        %1585 = vmatprep.subr.mxu0 0.0
        %1586 = vmatpush1.msra.mxu0 %v1525
        %1587 = vmatprep.subr.mxu0 0.0
        %1588 = vmatpush1.msra.mxu0 %v1526
        %1589 = vmatprep.subr.mxu0 0.0
        %1590 = vmatpush1.msra.mxu0 %v1527
        %1591 = vmatprep.subr.mxu0 0.0
        %1592 = vmatpush1.msra.mxu0 %v1528
        %1593 = vmatprep.subr.mxu0 0.0
        %1594 = vmatpush1.msra.mxu0 %v1529
        %1595 = vmatprep.subr.mxu0 0.0
        %1596 = vmatpush1.msra.mxu0 %v1530
        %1597 = vmatprep.subr.mxu0 0.0
        %1598 = vmatpush1.msra.mxu0 %v1531
        %1599 = vmatprep.subr.mxu0 0.0
        %1600 = vmatpush1.msra.mxu0 %v1532
        %1601 = vmatprep.subr.mxu0 0.0
        %1602 = vmatpush1.msra.mxu0 %v1533
        %1603 = vmatprep.subr.mxu0 0.0
        %1604 = vmatpush1.msra.mxu0 %v1534
        %1605 = vmatprep.subr.mxu0 0.0
        %1606 = vmatpush1.msra.mxu0 %v1535
        %1607 = vmatprep.subr.mxu0 0.0
        %1608 = vmatpush1.msra.mxu0 %v1536
        %1609 = vmatprep.subr.mxu0 0.0
        %1610 = vmatpush1.msra.mxu0 %v1537
        %1611 = vmatprep.subr.mxu0 0.0
        %1612 = vmatpush1.msra.mxu0 %v1538
        %1613 = vmatprep.subr.mxu0 0.0
        %1614 = vmatpush1.msra.mxu0 %v1539
        %1615 = vmatprep.subr.mxu0 0.0
        %1616 = vmatpush1.msra.mxu0 %v1540
        %1617 = vmatprep.subr.mxu0 0.0
        %1618 = vmatpush1.msra.mxu0 %v1541
        %1619 = vmatprep.subr.mxu0 0.0
        %1620 = vmatpush1.msra.mxu0 %v1542
        %1621 = vmatprep.subr.mxu0 0.0
        %1622 = vmatpush1.msra.mxu0 %v1543
        %1623 = vmatprep.subr.mxu0 0.0
        %1624 = vmatpush1.msra.mxu0 %v1544
        %1625 = vmatprep.subr.mxu0 0.0
        %1626 = vmatpush1.msra.mxu0 %v1545
        %1627 = vmatprep.mubr.f32.mxu0 %v296
        %1628 = vmatmul.mubr.f32.gmra.mrb[0].mxu0 %v295
        %v1629 = vpop.f32.mrb[0].mxu0
        %v1630 = vadd.f32 0.0, %v1629
        %v1631 = vpop.f32.mrb[0].mxu0
        %1632 = vmatprep.mubr.f32.mxu0 %v298
        %1633 = vmatmul.mubr.f32.gmra.mrb[0].mxu0 %v297
        %v1634 = vpop.f32.mrb[0].mxu0
        %v1635 = vadd.f32 0.0, %v1634
        %v1636 = vpop.f32.mrb[0].mxu0
        %1637 = vdwg.mxu0
        %1638 = vmatprep.subr.mxu0 0.0
        %1639 = vmatpush1.msra.mxu0 %v1514
        %1640 = vmatprep.subr.mxu0 0.0
        %1641 = vmatpush1.msra.mxu0 %v1515
        %1642 = vmatprep.subr.mxu0 0.0
        %1643 = vmatpush1.msra.mxu0 %v1516
        %1644 = vmatprep.subr.mxu0 0.0
        %1645 = vmatpush1.msra.mxu0 %v1517
        %1646 = vmatprep.subr.mxu0 0.0
        %1647 = vmatpush1.msra.mxu0 %v1518
        %1648 = vmatprep.subr.mxu0 0.0
        %1649 = vmatpush1.msra.mxu0 %v1519
        %1650 = vmatprep.subr.mxu0 0.0
        %1651 = vmatpush1.msra.mxu0 %v1520
        %1652 = vmatprep.subr.mxu0 0.0
        %1653 = vmatpush1.msra.mxu0 %v1521
        %1654 = vmatprep.subr.mxu0 0.0
        %1655 = vmatpush1.msra.mxu0 %v1522
        %1656 = vmatprep.subr.mxu0 0.0
        %1657 = vmatpush1.msra.mxu0 %v1523
        %1658 = vmatprep.subr.mxu0 0.0
        %1659 = vmatpush1.msra.mxu0 %v1524
        %1660 = vmatprep.subr.mxu0 0.0
        %1661 = vmatpush1.msra.mxu0 %v1525
        %1662 = vmatprep.subr.mxu0 0.0
        %1663 = vmatpush1.msra.mxu0 %v1526
        %1664 = vmatprep.subr.mxu0 0.0
        %1665 = vmatpush1.msra.mxu0 %v1527
        %1666 = vmatprep.subr.mxu0 0.0
        %1667 = vmatpush1.msra.mxu0 %v1528
        %1668 = vmatprep.subr.mxu0 0.0
        %1669 = vmatpush1.msra.mxu0 %v1529
        %1670 = vmatprep.subr.mxu0 0.0
        %1671 = vmatpush1.msra.mxu0 %v1530
        %1672 = vmatprep.subr.mxu0 0.0
        %1673 = vmatpush1.msra.mxu0 %v1531
        %1674 = vmatprep.subr.mxu0 0.0
        %1675 = vmatpush1.msra.mxu0 %v1532
        %1676 = vmatprep.subr.mxu0 0.0
        %1677 = vmatpush1.msra.mxu0 %v1533
        %1678 = vmatprep.subr.mxu0 0.0
        %1679 = vmatpush1.msra.mxu0 %v1534
        %1680 = vmatprep.subr.mxu0 0.0
        %1681 = vmatpush1.msra.mxu0 %v1535
        %1682 = vmatprep.subr.mxu0 0.0
        %1683 = vmatpush1.msra.mxu0 %v1536
        %1684 = vmatprep.subr.mxu0 0.0
        %1685 = vmatpush1.msra.mxu0 %v1537
        %1686 = vmatprep.subr.mxu0 0.0
        %1687 = vmatpush1.msra.mxu0 %v1538
        %1688 = vmatprep.subr.mxu0 0.0
        %1689 = vmatpush1.msra.mxu0 %v1539
        %1690 = vmatprep.subr.mxu0 0.0
        %1691 = vmatpush1.msra.mxu0 %v1540
        %1692 = vmatprep.subr.mxu0 0.0
        %1693 = vmatpush1.msra.mxu0 %v1541
        %1694 = vmatprep.subr.mxu0 0.0
        %1695 = vmatpush1.msra.mxu0 %v1542
        %1696 = vmatprep.subr.mxu0 0.0
        %1697 = vmatpush1.msra.mxu0 %v1543
        %1698 = vmatprep.subr.mxu0 0.0
        %1699 = vmatpush1.msra.mxu0 %v1544
        %1700 = vmatprep.subr.mxu0 0.0
        %1701 = vmatpush1.msra.mxu0 %v1545
        %1702 = vmatprep.mubr.f32.mxu0 %v300
        %1703 = vmatmul.mubr.f32.gmra.mrb[0].mxu0 %v299
        %v1704 = vpop.f32.mrb[0].mxu0
        %v1705 = vadd.f32 0.0, %v1704
        %v1706 = vpop.f32.mrb[0].mxu0
        %1707 = vmatprep.mubr.f32.mxu0 %v302
        %1708 = vmatmul.mubr.f32.gmra.mrb[0].mxu0 %v301
        %v1709 = vpop.f32.mrb[0].mxu0
        %v1710 = vadd.f32 0.0, %v1709
        %v1711 = vpop.f32.mrb[0].mxu0
        %1712 = vdwg.mxu0
        %v1713 = vmul.f32 %v1428, %v1630
        %v1714 = vmul.f32 %v1433, %v1635
        %1715 = vmatprep.subr.mxu0 0.0
        %1716 = vmatpush1.msra.mxu0 %v1547
        %1717 = vmatprep.subr.mxu0 0.0
        %1718 = vmatpush1.msra.mxu0 %v1548
        %1719 = vmatprep.subr.mxu0 0.0
        %1720 = vmatpush1.msra.mxu0 %v1549
        %1721 = vmatprep.subr.mxu0 0.0
        %1722 = vmatpush1.msra.mxu0 %v1550
        %1723 = vmatprep.subr.mxu0 0.0
        %1724 = vmatpush1.msra.mxu0 %v1551
        %1725 = vmatprep.subr.mxu0 0.0
        %1726 = vmatpush1.msra.mxu0 %v1552
        %1727 = vmatprep.subr.mxu0 0.0
        %1728 = vmatpush1.msra.mxu0 %v1553
        %1729 = vmatprep.subr.mxu0 0.0
        %1730 = vmatpush1.msra.mxu0 %v1554
        %1731 = vmatprep.subr.mxu0 0.0
        %1732 = vmatpush1.msra.mxu0 %v1555
        %1733 = vmatprep.subr.mxu0 0.0
        %1734 = vmatpush1.msra.mxu0 %v1556
        %1735 = vmatprep.subr.mxu0 0.0
        %1736 = vmatpush1.msra.mxu0 %v1557
        %1737 = vmatprep.subr.mxu0 0.0
        %1738 = vmatpush1.msra.mxu0 %v1558
        %1739 = vmatprep.subr.mxu0 0.0
        %1740 = vmatpush1.msra.mxu0 %v1559
        %1741 = vmatprep.subr.mxu0 0.0
        %1742 = vmatpush1.msra.mxu0 %v1560
        %1743 = vmatprep.subr.mxu0 0.0
        %1744 = vmatpush1.msra.mxu0 %v1561
        %1745 = vmatprep.subr.mxu0 0.0
        %1746 = vmatpush1.msra.mxu0 %v1562
        %1747 = vmatprep.subr.mxu0 0.0
        %1748 = vmatpush1.msra.mxu0 0.0
        %1749 = vmatprep.subr.mxu0 0.0
        %1750 = vmatpush1.msra.mxu0 0.0
        %1751 = vmatprep.subr.mxu0 0.0
        %1752 = vmatpush1.msra.mxu0 0.0
        %1753 = vmatprep.subr.mxu0 0.0
        %1754 = vmatpush1.msra.mxu0 0.0
        %1755 = vmatprep.subr.mxu0 0.0
        %1756 = vmatpush1.msra.mxu0 0.0
        %1757 = vmatprep.subr.mxu0 0.0
        %1758 = vmatpush1.msra.mxu0 0.0
        %1759 = vmatprep.subr.mxu0 0.0
        %1760 = vmatpush1.msra.mxu0 0.0
        %1761 = vmatprep.subr.mxu0 0.0
        %1762 = vmatpush1.msra.mxu0 0.0
        %1763 = vmatprep.subr.mxu0 0.0
        %1764 = vmatpush1.msra.mxu0 0.0
        %1765 = vmatprep.subr.mxu0 0.0
        %1766 = vmatpush1.msra.mxu0 0.0
        %1767 = vmatprep.subr.mxu0 0.0
        %1768 = vmatpush1.msra.mxu0 0.0
        %1769 = vmatprep.subr.mxu0 0.0
        %1770 = vmatpush1.msra.mxu0 0.0
        %1771 = vmatprep.subr.mxu0 0.0
        %1772 = vmatpush1.msra.mxu0 0.0
        %1773 = vmatprep.subr.mxu0 0.0
        %1774 = vmatpush1.msra.mxu0 0.0
        %1775 = vmatprep.subr.mxu0 0.0
        %1776 = vmatpush1.msra.mxu0 0.0
        %1777 = vmatprep.subr.mxu0 0.0
        %1778 = vmatpush1.msra.mxu0 0.0
        %1779 = vmatprep.mubr.f32.mxu0 0.0
        %1780 = vmatmul.mubr.f32.gmra.mrb[0].mxu0 %v1713
        %v1781 = vpop.f32.mrb[0].mxu0
        %v1782 = vadd.f32 0.0, %v1781
        %v1783 = vpop.f32.mrb[0].mxu0
        %1784 = vmatprep.mubr.f32.mxu0 0.0
        %1785 = vmatmul.mubr.f32.gmra.mrb[0].mxu0 %v1714
        %v1786 = vpop.f32.mrb[0].mxu0
        %v1787 = vadd.f32 0.0, %v1786
        %v1788 = vpop.f32.mrb[0].mxu0
        %1789 = vdwg.mxu0
        %v1790 = vmul.f32 %v1505, %v1705
        %v1791 = vmul.f32 %v1510, %v1710
        %1792 = vmatprep.subr.mxu0 0.0
        %1793 = vmatpush1.msra.mxu0 %v1547
        %1794 = vmatprep.subr.mxu0 0.0
        %1795 = vmatpush1.msra.mxu0 %v1548
        %1796 = vmatprep.subr.mxu0 0.0
        %1797 = vmatpush1.msra.mxu0 %v1549
        %1798 = vmatprep.subr.mxu0 0.0
        %1799 = vmatpush1.msra.mxu0 %v1550
        %1800 = vmatprep.subr.mxu0 0.0
        %1801 = vmatpush1.msra.mxu0 %v1551
        %1802 = vmatprep.subr.mxu0 0.0
        %1803 = vmatpush1.msra.mxu0 %v1552
        %1804 = vmatprep.subr.mxu0 0.0
        %1805 = vmatpush1.msra.mxu0 %v1553
        %1806 = vmatprep.subr.mxu0 0.0
        %1807 = vmatpush1.msra.mxu0 %v1554
        %1808 = vmatprep.subr.mxu0 0.0
        %1809 = vmatpush1.msra.mxu0 %v1555
        %1810 = vmatprep.subr.mxu0 0.0
        %1811 = vmatpush1.msra.mxu0 %v1556
        %1812 = vmatprep.subr.mxu0 0.0
        %1813 = vmatpush1.msra.mxu0 %v1557
        %1814 = vmatprep.subr.mxu0 0.0
        %1815 = vmatpush1.msra.mxu0 %v1558
        %1816 = vmatprep.subr.mxu0 0.0
        %1817 = vmatpush1.msra.mxu0 %v1559
        %1818 = vmatprep.subr.mxu0 0.0
        %1819 = vmatpush1.msra.mxu0 %v1560
        %1820 = vmatprep.subr.mxu0 0.0
        %1821 = vmatpush1.msra.mxu0 %v1561
        %1822 = vmatprep.subr.mxu0 0.0
        %1823 = vmatpush1.msra.mxu0 %v1562
        %1824 = vmatprep.subr.mxu0 0.0
        %1825 = vmatpush1.msra.mxu0 0.0
        %1826 = vmatprep.subr.mxu0 0.0
        %1827 = vmatpush1.msra.mxu0 0.0
        %1828 = vmatprep.subr.mxu0 0.0
        %1829 = vmatpush1.msra.mxu0 0.0
        %1830 = vmatprep.subr.mxu0 0.0
        %1831 = vmatpush1.msra.mxu0 0.0
        %1832 = vmatprep.subr.mxu0 0.0
        %1833 = vmatpush1.msra.mxu0 0.0
        %1834 = vmatprep.subr.mxu0 0.0
        %1835 = vmatpush1.msra.mxu0 0.0
        %1836 = vmatprep.subr.mxu0 0.0
        %1837 = vmatpush1.msra.mxu0 0.0
        %1838 = vmatprep.subr.mxu0 0.0
        %1839 = vmatpush1.msra.mxu0 0.0
        %1840 = vmatprep.subr.mxu0 0.0
        %1841 = vmatpush1.msra.mxu0 0.0
        %1842 = vmatprep.subr.mxu0 0.0
        %1843 = vmatpush1.msra.mxu0 0.0
        %1844 = vmatprep.subr.mxu0 0.0
        %1845 = vmatpush1.msra.mxu0 0.0
        %1846 = vmatprep.subr.mxu0 0.0
        %1847 = vmatpush1.msra.mxu0 0.0
        %1848 = vmatprep.subr.mxu0 0.0
        %1849 = vmatpush1.msra.mxu0 0.0
        %1850 = vmatprep.subr.mxu0 0.0
        %1851 = vmatpush1.msra.mxu0 0.0
        %1852 = vmatprep.subr.mxu0 0.0
        %1853 = vmatpush1.msra.mxu0 0.0
        %1854 = vmatprep.subr.mxu0 0.0
        %1855 = vmatpush1.msra.mxu0 0.0
        %1856 = vmatprep.mubr.f32.mxu0 0.0
        %1857 = vmatmul.mubr.f32.gmra.mrb[0].mxu0 %v1790
        %v1858 = vpop.f32.mrb[0].mxu0
        %v1859 = vadd.f32 0.0, %v1858
        %v1860 = vpop.f32.mrb[0].mxu0
        %1861 = vmatprep.mubr.f32.mxu0 0.0
        %1862 = vmatmul.mubr.f32.gmra.mrb[0].mxu0 %v1791
        %v1863 = vpop.f32.mrb[0].mxu0
        %v1864 = vadd.f32 0.0, %v1863
        %v1865 = vpop.f32.mrb[0].mxu0
        %1866 = vdwg.mxu0
        %s1867 = scalar_lea.vmem [#allocation7], 1024
        %v1868 = vld [vmem:[%s1867] sm:$0xff]
        %v1869 = vld [vmem:[%s1867 + $0x8] sm:$0xff]
        %v1870 = vld [vmem:[%s1867 + $0x10] sm:$0xff]
        %v1871 = vld [vmem:[%s1867 + $0x18] sm:$0xff]
        %v1872 = vld [vmem:[%s1867 + $0x20] sm:$0xff]
        %v1873 = vld [vmem:[%s1867 + $0x28] sm:$0xff]
        %v1874 = vld [vmem:[%s1867 + $0x30] sm:$0xff]
        %v1875 = vld [vmem:[%s1867 + $0x38] sm:$0xff]
        %v1876 = vld [vmem:[%s1867 + $0x40] sm:$0xff]
        %v1877 = vld [vmem:[%s1867 + $0x48] sm:$0xff]
        %v1878 = vld [vmem:[%s1867 + $0x50] sm:$0xff]
        %v1879 = vld [vmem:[%s1867 + $0x58] sm:$0xff]
        %v1880 = vld [vmem:[%s1867 + $0x60] sm:$0xff]
        %v1881 = vld [vmem:[%s1867 + $0x68] sm:$0xff]
        %v1882 = vld [vmem:[%s1867 + $0x70] sm:$0xff]
        %v1883 = vld [vmem:[%s1867 + $0x78] sm:$0xff]
        %v1884 = vld [vmem:[%s1867 + $0x80] sm:$0xff]
        %v1885 = vld [vmem:[%s1867 + $0x88] sm:$0xff]
        %v1886 = vld [vmem:[%s1867 + $0x90] sm:$0xff]
        %v1887 = vld [vmem:[%s1867 + $0x98] sm:$0xff]
        %v1888 = vld [vmem:[%s1867 + $0xa0] sm:$0xff]
        %v1889 = vld [vmem:[%s1867 + $0xa8] sm:$0xff]
        %v1890 = vld [vmem:[%s1867 + $0xb0] sm:$0xff]
        %v1891 = vld [vmem:[%s1867 + $0xb8] sm:$0xff]
        %v1892 = vld [vmem:[%s1867 + $0xc0] sm:$0xff]
        %v1893 = vld [vmem:[%s1867 + $0xc8] sm:$0xff]
        %v1894 = vld [vmem:[%s1867 + $0xd0] sm:$0xff]
        %v1895 = vld [vmem:[%s1867 + $0xd8] sm:$0xff]
        %v1896 = vld [vmem:[%s1867 + $0xe0] sm:$0xff]
        %v1897 = vld [vmem:[%s1867 + $0xe8] sm:$0xff]
        %v1898 = vld [vmem:[%s1867 + $0xf0] sm:$0xff]
        %v1899 = vld [vmem:[%s1867 + $0xf8] sm:$0xff]
        %s1900 = scalar_lea.vmem [#allocation8], 512
        %v1901 = vld [vmem:[%s1900] sm:$0xff]
        %v1902 = vld [vmem:[%s1900 + $0x8] sm:$0xff]
        %v1903 = vld [vmem:[%s1900 + $0x10] sm:$0xff]
        %v1904 = vld [vmem:[%s1900 + $0x18] sm:$0xff]
        %v1905 = vld [vmem:[%s1900 + $0x20] sm:$0xff]
        %v1906 = vld [vmem:[%s1900 + $0x28] sm:$0xff]
        %v1907 = vld [vmem:[%s1900 + $0x30] sm:$0xff]
        %v1908 = vld [vmem:[%s1900 + $0x38] sm:$0xff]
        %v1909 = vld [vmem:[%s1900 + $0x40] sm:$0xff]
        %v1910 = vld [vmem:[%s1900 + $0x48] sm:$0xff]
        %v1911 = vld [vmem:[%s1900 + $0x50] sm:$0xff]
        %v1912 = vld [vmem:[%s1900 + $0x58] sm:$0xff]
        %v1913 = vld [vmem:[%s1900 + $0x60] sm:$0xff]
        %v1914 = vld [vmem:[%s1900 + $0x68] sm:$0xff]
        %v1915 = vld [vmem:[%s1900 + $0x70] sm:$0xff]
        %v1916 = vld [vmem:[%s1900 + $0x78] sm:$0xff]
        %1917 = vmatprep.subr.mxu0 0.0
        %1918 = vmatpush1.msra.mxu0 %v1868
        %1919 = vmatprep.subr.mxu0 0.0
        %1920 = vmatpush1.msra.mxu0 %v1869
        %1921 = vmatprep.subr.mxu0 0.0
        %1922 = vmatpush1.msra.mxu0 %v1870
        %1923 = vmatprep.subr.mxu0 0.0
        %1924 = vmatpush1.msra.mxu0 %v1871
        %1925 = vmatprep.subr.mxu0 0.0
        %1926 = vmatpush1.msra.mxu0 %v1872
        %1927 = vmatprep.subr.mxu0 0.0
        %1928 = vmatpush1.msra.mxu0 %v1873
        %1929 = vmatprep.subr.mxu0 0.0
        %1930 = vmatpush1.msra.mxu0 %v1874
        %1931 = vmatprep.subr.mxu0 0.0
        %1932 = vmatpush1.msra.mxu0 %v1875
        %1933 = vmatprep.subr.mxu0 0.0
        %1934 = vmatpush1.msra.mxu0 %v1876
        %1935 = vmatprep.subr.mxu0 0.0
        %1936 = vmatpush1.msra.mxu0 %v1877
        %1937 = vmatprep.subr.mxu0 0.0
        %1938 = vmatpush1.msra.mxu0 %v1878
        %1939 = vmatprep.subr.mxu0 0.0
        %1940 = vmatpush1.msra.mxu0 %v1879
        %1941 = vmatprep.subr.mxu0 0.0
        %1942 = vmatpush1.msra.mxu0 %v1880
        %1943 = vmatprep.subr.mxu0 0.0
        %1944 = vmatpush1.msra.mxu0 %v1881
        %1945 = vmatprep.subr.mxu0 0.0
        %1946 = vmatpush1.msra.mxu0 %v1882
        %1947 = vmatprep.subr.mxu0 0.0
        %1948 = vmatpush1.msra.mxu0 %v1883
        %1949 = vmatprep.subr.mxu0 0.0
        %1950 = vmatpush1.msra.mxu0 %v1884
        %1951 = vmatprep.subr.mxu0 0.0
        %1952 = vmatpush1.msra.mxu0 %v1885
        %1953 = vmatprep.subr.mxu0 0.0
        %1954 = vmatpush1.msra.mxu0 %v1886
        %1955 = vmatprep.subr.mxu0 0.0
        %1956 = vmatpush1.msra.mxu0 %v1887
        %1957 = vmatprep.subr.mxu0 0.0
        %1958 = vmatpush1.msra.mxu0 %v1888
        %1959 = vmatprep.subr.mxu0 0.0
        %1960 = vmatpush1.msra.mxu0 %v1889
        %1961 = vmatprep.subr.mxu0 0.0
        %1962 = vmatpush1.msra.mxu0 %v1890
        %1963 = vmatprep.subr.mxu0 0.0
        %1964 = vmatpush1.msra.mxu0 %v1891
        %1965 = vmatprep.subr.mxu0 0.0
        %1966 = vmatpush1.msra.mxu0 %v1892
        %1967 = vmatprep.subr.mxu0 0.0
        %1968 = vmatpush1.msra.mxu0 %v1893
        %1969 = vmatprep.subr.mxu0 0.0
        %1970 = vmatpush1.msra.mxu0 %v1894
        %1971 = vmatprep.subr.mxu0 0.0
        %1972 = vmatpush1.msra.mxu0 %v1895
        %1973 = vmatprep.subr.mxu0 0.0
        %1974 = vmatpush1.msra.mxu0 %v1896
        %1975 = vmatprep.subr.mxu0 0.0
        %1976 = vmatpush1.msra.mxu0 %v1897
        %1977 = vmatprep.subr.mxu0 0.0
        %1978 = vmatpush1.msra.mxu0 %v1898
        %1979 = vmatprep.subr.mxu0 0.0
        %1980 = vmatpush1.msra.mxu0 %v1899
        %1981 = vmatprep.mubr.f32.mxu0 %v296
        %1982 = vmatmul.mubr.f32.gmra.mrb[0].mxu0 %v295
        %v1983 = vpop.f32.mrb[0].mxu0
        %v1984 = vadd.f32 0.0, %v1983
        %v1985 = vpop.f32.mrb[0].mxu0
        %1986 = vmatprep.mubr.f32.mxu0 %v298
        %1987 = vmatmul.mubr.f32.gmra.mrb[0].mxu0 %v297
        %v1988 = vpop.f32.mrb[0].mxu0
        %v1989 = vadd.f32 0.0, %v1988
        %v1990 = vpop.f32.mrb[0].mxu0
        %1991 = vdwg.mxu0
        %1992 = vmatprep.subr.mxu0 0.0
        %1993 = vmatpush1.msra.mxu0 %v1868
        %1994 = vmatprep.subr.mxu0 0.0
        %1995 = vmatpush1.msra.mxu0 %v1869
        %1996 = vmatprep.subr.mxu0 0.0
        %1997 = vmatpush1.msra.mxu0 %v1870
        %1998 = vmatprep.subr.mxu0 0.0
        %1999 = vmatpush1.msra.mxu0 %v1871
        %2000 = vmatprep.subr.mxu0 0.0
        %2001 = vmatpush1.msra.mxu0 %v1872
        %2002 = vmatprep.subr.mxu0 0.0
        %2003 = vmatpush1.msra.mxu0 %v1873
        %2004 = vmatprep.subr.mxu0 0.0
        %2005 = vmatpush1.msra.mxu0 %v1874
        %2006 = vmatprep.subr.mxu0 0.0
        %2007 = vmatpush1.msra.mxu0 %v1875
        %2008 = vmatprep.subr.mxu0 0.0
        %2009 = vmatpush1.msra.mxu0 %v1876
        %2010 = vmatprep.subr.mxu0 0.0
        %2011 = vmatpush1.msra.mxu0 %v1877
        %2012 = vmatprep.subr.mxu0 0.0
        %2013 = vmatpush1.msra.mxu0 %v1878
        %2014 = vmatprep.subr.mxu0 0.0
        %2015 = vmatpush1.msra.mxu0 %v1879
        %2016 = vmatprep.subr.mxu0 0.0
        %2017 = vmatpush1.msra.mxu0 %v1880
        %2018 = vmatprep.subr.mxu0 0.0
        %2019 = vmatpush1.msra.mxu0 %v1881
        %2020 = vmatprep.subr.mxu0 0.0
        %2021 = vmatpush1.msra.mxu0 %v1882
        %2022 = vmatprep.subr.mxu0 0.0
        %2023 = vmatpush1.msra.mxu0 %v1883
        %2024 = vmatprep.subr.mxu0 0.0
        %2025 = vmatpush1.msra.mxu0 %v1884
        %2026 = vmatprep.subr.mxu0 0.0
        %2027 = vmatpush1.msra.mxu0 %v1885
        %2028 = vmatprep.subr.mxu0 0.0
        %2029 = vmatpush1.msra.mxu0 %v1886
        %2030 = vmatprep.subr.mxu0 0.0
        %2031 = vmatpush1.msra.mxu0 %v1887
        %2032 = vmatprep.subr.mxu0 0.0
        %2033 = vmatpush1.msra.mxu0 %v1888
        %2034 = vmatprep.subr.mxu0 0.0
        %2035 = vmatpush1.msra.mxu0 %v1889
        %2036 = vmatprep.subr.mxu0 0.0
        %2037 = vmatpush1.msra.mxu0 %v1890
        %2038 = vmatprep.subr.mxu0 0.0
        %2039 = vmatpush1.msra.mxu0 %v1891
        %2040 = vmatprep.subr.mxu0 0.0
        %2041 = vmatpush1.msra.mxu0 %v1892
        %2042 = vmatprep.subr.mxu0 0.0
        %2043 = vmatpush1.msra.mxu0 %v1893
        %2044 = vmatprep.subr.mxu0 0.0
        %2045 = vmatpush1.msra.mxu0 %v1894
        %2046 = vmatprep.subr.mxu0 0.0
        %2047 = vmatpush1.msra.mxu0 %v1895
        %2048 = vmatprep.subr.mxu0 0.0
        %2049 = vmatpush1.msra.mxu0 %v1896
        %2050 = vmatprep.subr.mxu0 0.0
        %2051 = vmatpush1.msra.mxu0 %v1897
        %2052 = vmatprep.subr.mxu0 0.0
        %2053 = vmatpush1.msra.mxu0 %v1898
        %2054 = vmatprep.subr.mxu0 0.0
        %2055 = vmatpush1.msra.mxu0 %v1899
        %2056 = vmatprep.mubr.f32.mxu0 %v300
        %2057 = vmatmul.mubr.f32.gmra.mrb[0].mxu0 %v299
        %v2058 = vpop.f32.mrb[0].mxu0
        %v2059 = vadd.f32 0.0, %v2058
        %v2060 = vpop.f32.mrb[0].mxu0
        %2061 = vmatprep.mubr.f32.mxu0 %v302
        %2062 = vmatmul.mubr.f32.gmra.mrb[0].mxu0 %v301
        %v2063 = vpop.f32.mrb[0].mxu0
        %v2064 = vadd.f32 0.0, %v2063
        %v2065 = vpop.f32.mrb[0].mxu0
        %2066 = vdwg.mxu0
        %v2067 = vmul.f32 %v1782, %v1984
        %v2068 = vmul.f32 %v1787, %v1989
        %2069 = vmatprep.subr.mxu0 0.0
        %2070 = vmatpush1.msra.mxu0 %v1901
        %2071 = vmatprep.subr.mxu0 0.0
        %2072 = vmatpush1.msra.mxu0 %v1902
        %2073 = vmatprep.subr.mxu0 0.0
        %2074 = vmatpush1.msra.mxu0 %v1903
        %2075 = vmatprep.subr.mxu0 0.0
        %2076 = vmatpush1.msra.mxu0 %v1904
        %2077 = vmatprep.subr.mxu0 0.0
        %2078 = vmatpush1.msra.mxu0 %v1905
        %2079 = vmatprep.subr.mxu0 0.0
        %2080 = vmatpush1.msra.mxu0 %v1906
        %2081 = vmatprep.subr.mxu0 0.0
        %2082 = vmatpush1.msra.mxu0 %v1907
        %2083 = vmatprep.subr.mxu0 0.0
        %2084 = vmatpush1.msra.mxu0 %v1908
        %2085 = vmatprep.subr.mxu0 0.0
        %2086 = vmatpush1.msra.mxu0 %v1909
        %2087 = vmatprep.subr.mxu0 0.0
        %2088 = vmatpush1.msra.mxu0 %v1910
        %2089 = vmatprep.subr.mxu0 0.0
        %2090 = vmatpush1.msra.mxu0 %v1911
        %2091 = vmatprep.subr.mxu0 0.0
        %2092 = vmatpush1.msra.mxu0 %v1912
        %2093 = vmatprep.subr.mxu0 0.0
        %2094 = vmatpush1.msra.mxu0 %v1913
        %2095 = vmatprep.subr.mxu0 0.0
        %2096 = vmatpush1.msra.mxu0 %v1914
        %2097 = vmatprep.subr.mxu0 0.0
        %2098 = vmatpush1.msra.mxu0 %v1915
        %2099 = vmatprep.subr.mxu0 0.0
        %2100 = vmatpush1.msra.mxu0 %v1916
        %2101 = vmatprep.subr.mxu0 0.0
        %2102 = vmatpush1.msra.mxu0 0.0
        %2103 = vmatprep.subr.mxu0 0.0
        %2104 = vmatpush1.msra.mxu0 0.0
        %2105 = vmatprep.subr.mxu0 0.0
        %2106 = vmatpush1.msra.mxu0 0.0
        %2107 = vmatprep.subr.mxu0 0.0
        %2108 = vmatpush1.msra.mxu0 0.0
        %2109 = vmatprep.subr.mxu0 0.0
        %2110 = vmatpush1.msra.mxu0 0.0
        %2111 = vmatprep.subr.mxu0 0.0
        %2112 = vmatpush1.msra.mxu0 0.0
        %2113 = vmatprep.subr.mxu0 0.0
        %2114 = vmatpush1.msra.mxu0 0.0
        %2115 = vmatprep.subr.mxu0 0.0
        %2116 = vmatpush1.msra.mxu0 0.0
        %2117 = vmatprep.subr.mxu0 0.0
        %2118 = vmatpush1.msra.mxu0 0.0
        %2119 = vmatprep.subr.mxu0 0.0
        %2120 = vmatpush1.msra.mxu0 0.0
        %2121 = vmatprep.subr.mxu0 0.0
        %2122 = vmatpush1.msra.mxu0 0.0
        %2123 = vmatprep.subr.mxu0 0.0
        %2124 = vmatpush1.msra.mxu0 0.0
        %2125 = vmatprep.subr.mxu0 0.0
        %2126 = vmatpush1.msra.mxu0 0.0
        %2127 = vmatprep.subr.mxu0 0.0
        %2128 = vmatpush1.msra.mxu0 0.0
        %2129 = vmatprep.subr.mxu0 0.0
        %2130 = vmatpush1.msra.mxu0 0.0
        %2131 = vmatprep.subr.mxu0 0.0
        %2132 = vmatpush1.msra.mxu0 0.0
        %2133 = vmatprep.mubr.f32.mxu0 0.0
        %2134 = vmatmul.mubr.f32.gmra.mrb[0].mxu0 %v2067
        %v2135 = vpop.f32.mrb[0].mxu0
        %v2136 = vadd.f32 0.0, %v2135
        %v2137 = vpop.f32.mrb[0].mxu0
        %2138 = vmatprep.mubr.f32.mxu0 0.0
        %2139 = vmatmul.mubr.f32.gmra.mrb[0].mxu0 %v2068
        %v2140 = vpop.f32.mrb[0].mxu0
        %v2141 = vadd.f32 0.0, %v2140
        %v2142 = vpop.f32.mrb[0].mxu0
        %2143 = vdwg.mxu0
        %v2144 = vmul.f32 %v1859, %v2059
        %v2145 = vmul.f32 %v1864, %v2064
        %2146 = vmatprep.subr.mxu0 0.0
        %2147 = vmatpush1.msra.mxu0 %v1901
        %2148 = vmatprep.subr.mxu0 0.0
        %2149 = vmatpush1.msra.mxu0 %v1902
        %2150 = vmatprep.subr.mxu0 0.0
        %2151 = vmatpush1.msra.mxu0 %v1903
        %2152 = vmatprep.subr.mxu0 0.0
        %2153 = vmatpush1.msra.mxu0 %v1904
        %2154 = vmatprep.subr.mxu0 0.0
        %2155 = vmatpush1.msra.mxu0 %v1905
        %2156 = vmatprep.subr.mxu0 0.0
        %2157 = vmatpush1.msra.mxu0 %v1906
        %2158 = vmatprep.subr.mxu0 0.0
        %2159 = vmatpush1.msra.mxu0 %v1907
        %2160 = vmatprep.subr.mxu0 0.0
        %2161 = vmatpush1.msra.mxu0 %v1908
        %2162 = vmatprep.subr.mxu0 0.0
        %2163 = vmatpush1.msra.mxu0 %v1909
        %2164 = vmatprep.subr.mxu0 0.0
        %2165 = vmatpush1.msra.mxu0 %v1910
        %2166 = vmatprep.subr.mxu0 0.0
        %2167 = vmatpush1.msra.mxu0 %v1911
        %2168 = vmatprep.subr.mxu0 0.0
        %2169 = vmatpush1.msra.mxu0 %v1912
        %2170 = vmatprep.subr.mxu0 0.0
        %2171 = vmatpush1.msra.mxu0 %v1913
        %2172 = vmatprep.subr.mxu0 0.0
        %2173 = vmatpush1.msra.mxu0 %v1914
        %2174 = vmatprep.subr.mxu0 0.0
        %2175 = vmatpush1.msra.mxu0 %v1915
        %2176 = vmatprep.subr.mxu0 0.0
        %2177 = vmatpush1.msra.mxu0 %v1916
        %2178 = vmatprep.subr.mxu0 0.0
        %2179 = vmatpush1.msra.mxu0 0.0
        %2180 = vmatprep.subr.mxu0 0.0
        %2181 = vmatpush1.msra.mxu0 0.0
        %2182 = vmatprep.subr.mxu0 0.0
        %2183 = vmatpush1.msra.mxu0 0.0
        %2184 = vmatprep.subr.mxu0 0.0
        %2185 = vmatpush1.msra.mxu0 0.0
        %2186 = vmatprep.subr.mxu0 0.0
        %2187 = vmatpush1.msra.mxu0 0.0
        %2188 = vmatprep.subr.mxu0 0.0
        %2189 = vmatpush1.msra.mxu0 0.0
        %2190 = vmatprep.subr.mxu0 0.0
        %2191 = vmatpush1.msra.mxu0 0.0
        %2192 = vmatprep.subr.mxu0 0.0
        %2193 = vmatpush1.msra.mxu0 0.0
        %2194 = vmatprep.subr.mxu0 0.0
        %2195 = vmatpush1.msra.mxu0 0.0
        %2196 = vmatprep.subr.mxu0 0.0
        %2197 = vmatpush1.msra.mxu0 0.0
        %2198 = vmatprep.subr.mxu0 0.0
        %2199 = vmatpush1.msra.mxu0 0.0
        %2200 = vmatprep.subr.mxu0 0.0
        %2201 = vmatpush1.msra.mxu0 0.0
        %2202 = vmatprep.subr.mxu0 0.0
        %2203 = vmatpush1.msra.mxu0 0.0
        %2204 = vmatprep.subr.mxu0 0.0
        %2205 = vmatpush1.msra.mxu0 0.0
        %2206 = vmatprep.subr.mxu0 0.0
        %2207 = vmatpush1.msra.mxu0 0.0
        %2208 = vmatprep.subr.mxu0 0.0
        %2209 = vmatpush1.msra.mxu0 0.0
        %2210 = vmatprep.mubr.f32.mxu0 0.0
        %2211 = vmatmul.mubr.f32.gmra.mrb[0].mxu0 %v2144
        %v2212 = vpop.f32.mrb[0].mxu0
        %v2213 = vadd.f32 0.0, %v2212
        %v2214 = vpop.f32.mrb[0].mxu0
        %2215 = vmatprep.mubr.f32.mxu0 0.0
        %2216 = vmatmul.mubr.f32.gmra.mrb[0].mxu0 %v2145
        %v2217 = vpop.f32.mrb[0].mxu0
        %v2218 = vadd.f32 0.0, %v2217
        %v2219 = vpop.f32.mrb[0].mxu0
        %2220 = vdwg.mxu0
        %s2221 = scalar_lea.vmem [#allocation7], 1280
        %v2222 = vld [vmem:[%s2221] sm:$0xff]
        %v2223 = vld [vmem:[%s2221 + $0x8] sm:$0xff]
        %v2224 = vld [vmem:[%s2221 + $0x10] sm:$0xff]
        %v2225 = vld [vmem:[%s2221 + $0x18] sm:$0xff]
        %v2226 = vld [vmem:[%s2221 + $0x20] sm:$0xff]
        %v2227 = vld [vmem:[%s2221 + $0x28] sm:$0xff]
        %v2228 = vld [vmem:[%s2221 + $0x30] sm:$0xff]
        %v2229 = vld [vmem:[%s2221 + $0x38] sm:$0xff]
        %v2230 = vld [vmem:[%s2221 + $0x40] sm:$0xff]
        %v2231 = vld [vmem:[%s2221 + $0x48] sm:$0xff]
        %v2232 = vld [vmem:[%s2221 + $0x50] sm:$0xff]
        %v2233 = vld [vmem:[%s2221 + $0x58] sm:$0xff]
        %v2234 = vld [vmem:[%s2221 + $0x60] sm:$0xff]
        %v2235 = vld [vmem:[%s2221 + $0x68] sm:$0xff]
        %v2236 = vld [vmem:[%s2221 + $0x70] sm:$0xff]
        %v2237 = vld [vmem:[%s2221 + $0x78] sm:$0xff]
        %v2238 = vld [vmem:[%s2221 + $0x80] sm:$0xff]
        %v2239 = vld [vmem:[%s2221 + $0x88] sm:$0xff]
        %v2240 = vld [vmem:[%s2221 + $0x90] sm:$0xff]
        %v2241 = vld [vmem:[%s2221 + $0x98] sm:$0xff]
        %v2242 = vld [vmem:[%s2221 + $0xa0] sm:$0xff]
        %v2243 = vld [vmem:[%s2221 + $0xa8] sm:$0xff]
        %v2244 = vld [vmem:[%s2221 + $0xb0] sm:$0xff]
        %v2245 = vld [vmem:[%s2221 + $0xb8] sm:$0xff]
        %v2246 = vld [vmem:[%s2221 + $0xc0] sm:$0xff]
        %v2247 = vld [vmem:[%s2221 + $0xc8] sm:$0xff]
        %v2248 = vld [vmem:[%s2221 + $0xd0] sm:$0xff]
        %v2249 = vld [vmem:[%s2221 + $0xd8] sm:$0xff]
        %v2250 = vld [vmem:[%s2221 + $0xe0] sm:$0xff]
        %v2251 = vld [vmem:[%s2221 + $0xe8] sm:$0xff]
        %v2252 = vld [vmem:[%s2221 + $0xf0] sm:$0xff]
        %v2253 = vld [vmem:[%s2221 + $0xf8] sm:$0xff]
        %s2254 = scalar_lea.vmem [#allocation8], 640
        %v2255 = vld [vmem:[%s2254] sm:$0xff]
        %v2256 = vld [vmem:[%s2254 + $0x8] sm:$0xff]
        %v2257 = vld [vmem:[%s2254 + $0x10] sm:$0xff]
        %v2258 = vld [vmem:[%s2254 + $0x18] sm:$0xff]
        %v2259 = vld [vmem:[%s2254 + $0x20] sm:$0xff]
        %v2260 = vld [vmem:[%s2254 + $0x28] sm:$0xff]
        %v2261 = vld [vmem:[%s2254 + $0x30] sm:$0xff]
        %v2262 = vld [vmem:[%s2254 + $0x38] sm:$0xff]
        %v2263 = vld [vmem:[%s2254 + $0x40] sm:$0xff]
        %v2264 = vld [vmem:[%s2254 + $0x48] sm:$0xff]
        %v2265 = vld [vmem:[%s2254 + $0x50] sm:$0xff]
        %v2266 = vld [vmem:[%s2254 + $0x58] sm:$0xff]
        %v2267 = vld [vmem:[%s2254 + $0x60] sm:$0xff]
        %v2268 = vld [vmem:[%s2254 + $0x68] sm:$0xff]
        %v2269 = vld [vmem:[%s2254 + $0x70] sm:$0xff]
        %v2270 = vld [vmem:[%s2254 + $0x78] sm:$0xff]
        %2271 = vmatprep.subr.mxu0 0.0
        %2272 = vmatpush1.msra.mxu0 %v2222
        %2273 = vmatprep.subr.mxu0 0.0
        %2274 = vmatpush1.msra.mxu0 %v2223
        %2275 = vmatprep.subr.mxu0 0.0
        %2276 = vmatpush1.msra.mxu0 %v2224
        %2277 = vmatprep.subr.mxu0 0.0
        %2278 = vmatpush1.msra.mxu0 %v2225
        %2279 = vmatprep.subr.mxu0 0.0
        %2280 = vmatpush1.msra.mxu0 %v2226
        %2281 = vmatprep.subr.mxu0 0.0
        %2282 = vmatpush1.msra.mxu0 %v2227
        %2283 = vmatprep.subr.mxu0 0.0
        %2284 = vmatpush1.msra.mxu0 %v2228
        %2285 = vmatprep.subr.mxu0 0.0
        %2286 = vmatpush1.msra.mxu0 %v2229
        %2287 = vmatprep.subr.mxu0 0.0
        %2288 = vmatpush1.msra.mxu0 %v2230
        %2289 = vmatprep.subr.mxu0 0.0
        %2290 = vmatpush1.msra.mxu0 %v2231
        %2291 = vmatprep.subr.mxu0 0.0
        %2292 = vmatpush1.msra.mxu0 %v2232
        %2293 = vmatprep.subr.mxu0 0.0
        %2294 = vmatpush1.msra.mxu0 %v2233
        %2295 = vmatprep.subr.mxu0 0.0
        %2296 = vmatpush1.msra.mxu0 %v2234
        %2297 = vmatprep.subr.mxu0 0.0
        %2298 = vmatpush1.msra.mxu0 %v2235
        %2299 = vmatprep.subr.mxu0 0.0
        %2300 = vmatpush1.msra.mxu0 %v2236
        %2301 = vmatprep.subr.mxu0 0.0
        %2302 = vmatpush1.msra.mxu0 %v2237
        %2303 = vmatprep.subr.mxu0 0.0
        %2304 = vmatpush1.msra.mxu0 %v2238
        %2305 = vmatprep.subr.mxu0 0.0
        %2306 = vmatpush1.msra.mxu0 %v2239
        %2307 = vmatprep.subr.mxu0 0.0
        %2308 = vmatpush1.msra.mxu0 %v2240
        %2309 = vmatprep.subr.mxu0 0.0
        %2310 = vmatpush1.msra.mxu0 %v2241
        %2311 = vmatprep.subr.mxu0 0.0
        %2312 = vmatpush1.msra.mxu0 %v2242
        %2313 = vmatprep.subr.mxu0 0.0
        %2314 = vmatpush1.msra.mxu0 %v2243
        %2315 = vmatprep.subr.mxu0 0.0
        %2316 = vmatpush1.msra.mxu0 %v2244
        %2317 = vmatprep.subr.mxu0 0.0
        %2318 = vmatpush1.msra.mxu0 %v2245
        %2319 = vmatprep.subr.mxu0 0.0
        %2320 = vmatpush1.msra.mxu0 %v2246
        %2321 = vmatprep.subr.mxu0 0.0
        %2322 = vmatpush1.msra.mxu0 %v2247
        %2323 = vmatprep.subr.mxu0 0.0
        %2324 = vmatpush1.msra.mxu0 %v2248
        %2325 = vmatprep.subr.mxu0 0.0
        %2326 = vmatpush1.msra.mxu0 %v2249
        %2327 = vmatprep.subr.mxu0 0.0
        %2328 = vmatpush1.msra.mxu0 %v2250
        %2329 = vmatprep.subr.mxu0 0.0
        %2330 = vmatpush1.msra.mxu0 %v2251
        %2331 = vmatprep.subr.mxu0 0.0
        %2332 = vmatpush1.msra.mxu0 %v2252
        %2333 = vmatprep.subr.mxu0 0.0
        %2334 = vmatpush1.msra.mxu0 %v2253
        %2335 = vmatprep.mubr.f32.mxu0 %v296
        %2336 = vmatmul.mubr.f32.gmra.mrb[0].mxu0 %v295
        %v2337 = vpop.f32.mrb[0].mxu0
        %v2338 = vadd.f32 0.0, %v2337
        %v2339 = vpop.f32.mrb[0].mxu0
        %2340 = vmatprep.mubr.f32.mxu0 %v298
        %2341 = vmatmul.mubr.f32.gmra.mrb[0].mxu0 %v297
        %v2342 = vpop.f32.mrb[0].mxu0
        %v2343 = vadd.f32 0.0, %v2342
        %v2344 = vpop.f32.mrb[0].mxu0
        %2345 = vdwg.mxu0
        %2346 = vmatprep.subr.mxu0 0.0
        %2347 = vmatpush1.msra.mxu0 %v2222
        %2348 = vmatprep.subr.mxu0 0.0
        %2349 = vmatpush1.msra.mxu0 %v2223
        %2350 = vmatprep.subr.mxu0 0.0
        %2351 = vmatpush1.msra.mxu0 %v2224
        %2352 = vmatprep.subr.mxu0 0.0
        %2353 = vmatpush1.msra.mxu0 %v2225
        %2354 = vmatprep.subr.mxu0 0.0
        %2355 = vmatpush1.msra.mxu0 %v2226
        %2356 = vmatprep.subr.mxu0 0.0
        %2357 = vmatpush1.msra.mxu0 %v2227
        %2358 = vmatprep.subr.mxu0 0.0
        %2359 = vmatpush1.msra.mxu0 %v2228
        %2360 = vmatprep.subr.mxu0 0.0
        %2361 = vmatpush1.msra.mxu0 %v2229
        %2362 = vmatprep.subr.mxu0 0.0
        %2363 = vmatpush1.msra.mxu0 %v2230
        %2364 = vmatprep.subr.mxu0 0.0
        %2365 = vmatpush1.msra.mxu0 %v2231
        %2366 = vmatprep.subr.mxu0 0.0
        %2367 = vmatpush1.msra.mxu0 %v2232
        %2368 = vmatprep.subr.mxu0 0.0
        %2369 = vmatpush1.msra.mxu0 %v2233
        %2370 = vmatprep.subr.mxu0 0.0
        %2371 = vmatpush1.msra.mxu0 %v2234
        %2372 = vmatprep.subr.mxu0 0.0
        %2373 = vmatpush1.msra.mxu0 %v2235
        %2374 = vmatprep.subr.mxu0 0.0
        %2375 = vmatpush1.msra.mxu0 %v2236
        %2376 = vmatprep.subr.mxu0 0.0
        %2377 = vmatpush1.msra.mxu0 %v2237
        %2378 = vmatprep.subr.mxu0 0.0
        %2379 = vmatpush1.msra.mxu0 %v2238
        %2380 = vmatprep.subr.mxu0 0.0
        %2381 = vmatpush1.msra.mxu0 %v2239
        %2382 = vmatprep.subr.mxu0 0.0
        %2383 = vmatpush1.msra.mxu0 %v2240
        %2384 = vmatprep.subr.mxu0 0.0
        %2385 = vmatpush1.msra.mxu0 %v2241
        %2386 = vmatprep.subr.mxu0 0.0
        %2387 = vmatpush1.msra.mxu0 %v2242
        %2388 = vmatprep.subr.mxu0 0.0
        %2389 = vmatpush1.msra.mxu0 %v2243
        %2390 = vmatprep.subr.mxu0 0.0
        %2391 = vmatpush1.msra.mxu0 %v2244
        %2392 = vmatprep.subr.mxu0 0.0
        %2393 = vmatpush1.msra.mxu0 %v2245
        %2394 = vmatprep.subr.mxu0 0.0
        %2395 = vmatpush1.msra.mxu0 %v2246
        %2396 = vmatprep.subr.mxu0 0.0
        %2397 = vmatpush1.msra.mxu0 %v2247
        %2398 = vmatprep.subr.mxu0 0.0
        %2399 = vmatpush1.msra.mxu0 %v2248
        %2400 = vmatprep.subr.mxu0 0.0
        %2401 = vmatpush1.msra.mxu0 %v2249
        %2402 = vmatprep.subr.mxu0 0.0
        %2403 = vmatpush1.msra.mxu0 %v2250
        %2404 = vmatprep.subr.mxu0 0.0
        %2405 = vmatpush1.msra.mxu0 %v2251
        %2406 = vmatprep.subr.mxu0 0.0
        %2407 = vmatpush1.msra.mxu0 %v2252
        %2408 = vmatprep.subr.mxu0 0.0
        %2409 = vmatpush1.msra.mxu0 %v2253
        %2410 = vmatprep.mubr.f32.mxu0 %v300
        %2411 = vmatmul.mubr.f32.gmra.mrb[0].mxu0 %v299
        %v2412 = vpop.f32.mrb[0].mxu0
        %v2413 = vadd.f32 0.0, %v2412
        %v2414 = vpop.f32.mrb[0].mxu0
        %2415 = vmatprep.mubr.f32.mxu0 %v302
        %2416 = vmatmul.mubr.f32.gmra.mrb[0].mxu0 %v301
        %v2417 = vpop.f32.mrb[0].mxu0
        %v2418 = vadd.f32 0.0, %v2417
        %v2419 = vpop.f32.mrb[0].mxu0
        %2420 = vdwg.mxu0
        %v2421 = vmul.f32 %v2136, %v2338
        %v2422 = vmul.f32 %v2141, %v2343
        %2423 = vmatprep.subr.mxu0 0.0
        %2424 = vmatpush1.msra.mxu0 %v2255
        %2425 = vmatprep.subr.mxu0 0.0
        %2426 = vmatpush1.msra.mxu0 %v2256
        %2427 = vmatprep.subr.mxu0 0.0
        %2428 = vmatpush1.msra.mxu0 %v2257
        %2429 = vmatprep.subr.mxu0 0.0
        %2430 = vmatpush1.msra.mxu0 %v2258
        %2431 = vmatprep.subr.mxu0 0.0
        %2432 = vmatpush1.msra.mxu0 %v2259
        %2433 = vmatprep.subr.mxu0 0.0
        %2434 = vmatpush1.msra.mxu0 %v2260
        %2435 = vmatprep.subr.mxu0 0.0
        %2436 = vmatpush1.msra.mxu0 %v2261
        %2437 = vmatprep.subr.mxu0 0.0
        %2438 = vmatpush1.msra.mxu0 %v2262
        %2439 = vmatprep.subr.mxu0 0.0
        %2440 = vmatpush1.msra.mxu0 %v2263
        %2441 = vmatprep.subr.mxu0 0.0
        %2442 = vmatpush1.msra.mxu0 %v2264
        %2443 = vmatprep.subr.mxu0 0.0
        %2444 = vmatpush1.msra.mxu0 %v2265
        %2445 = vmatprep.subr.mxu0 0.0
        %2446 = vmatpush1.msra.mxu0 %v2266
        %2447 = vmatprep.subr.mxu0 0.0
        %2448 = vmatpush1.msra.mxu0 %v2267
        %2449 = vmatprep.subr.mxu0 0.0
        %2450 = vmatpush1.msra.mxu0 %v2268
        %2451 = vmatprep.subr.mxu0 0.0
        %2452 = vmatpush1.msra.mxu0 %v2269
        %2453 = vmatprep.subr.mxu0 0.0
        %2454 = vmatpush1.msra.mxu0 %v2270
        %2455 = vmatprep.subr.mxu0 0.0
        %2456 = vmatpush1.msra.mxu0 0.0
        %2457 = vmatprep.subr.mxu0 0.0
        %2458 = vmatpush1.msra.mxu0 0.0
        %2459 = vmatprep.subr.mxu0 0.0
        %2460 = vmatpush1.msra.mxu0 0.0
        %2461 = vmatprep.subr.mxu0 0.0
        %2462 = vmatpush1.msra.mxu0 0.0
        %2463 = vmatprep.subr.mxu0 0.0
        %2464 = vmatpush1.msra.mxu0 0.0
        %2465 = vmatprep.subr.mxu0 0.0
        %2466 = vmatpush1.msra.mxu0 0.0
        %2467 = vmatprep.subr.mxu0 0.0
        %2468 = vmatpush1.msra.mxu0 0.0
        %2469 = vmatprep.subr.mxu0 0.0
        %2470 = vmatpush1.msra.mxu0 0.0
        %2471 = vmatprep.subr.mxu0 0.0
        %2472 = vmatpush1.msra.mxu0 0.0
        %2473 = vmatprep.subr.mxu0 0.0
        %2474 = vmatpush1.msra.mxu0 0.0
        %2475 = vmatprep.subr.mxu0 0.0
        %2476 = vmatpush1.msra.mxu0 0.0
        %2477 = vmatprep.subr.mxu0 0.0
        %2478 = vmatpush1.msra.mxu0 0.0
        %2479 = vmatprep.subr.mxu0 0.0
        %2480 = vmatpush1.msra.mxu0 0.0
        %2481 = vmatprep.subr.mxu0 0.0
        %2482 = vmatpush1.msra.mxu0 0.0
        %2483 = vmatprep.subr.mxu0 0.0
        %2484 = vmatpush1.msra.mxu0 0.0
        %2485 = vmatprep.subr.mxu0 0.0
        %2486 = vmatpush1.msra.mxu0 0.0
        %2487 = vmatprep.mubr.f32.mxu0 0.0
        %2488 = vmatmul.mubr.f32.gmra.mrb[0].mxu0 %v2421
        %v2489 = vpop.f32.mrb[0].mxu0
        %v2490 = vadd.f32 0.0, %v2489
        %v2491 = vpop.f32.mrb[0].mxu0
        %2492 = vmatprep.mubr.f32.mxu0 0.0
        %2493 = vmatmul.mubr.f32.gmra.mrb[0].mxu0 %v2422
        %v2494 = vpop.f32.mrb[0].mxu0
        %v2495 = vadd.f32 0.0, %v2494
        %v2496 = vpop.f32.mrb[0].mxu0
        %2497 = vdwg.mxu0
        %v2498 = vmul.f32 %v2213, %v2413
        %v2499 = vmul.f32 %v2218, %v2418
        %2500 = vmatprep.subr.mxu0 0.0
        %2501 = vmatpush1.msra.mxu0 %v2255
        %2502 = vmatprep.subr.mxu0 0.0
        %2503 = vmatpush1.msra.mxu0 %v2256
        %2504 = vmatprep.subr.mxu0 0.0
        %2505 = vmatpush1.msra.mxu0 %v2257
        %2506 = vmatprep.subr.mxu0 0.0
        %2507 = vmatpush1.msra.mxu0 %v2258
        %2508 = vmatprep.subr.mxu0 0.0
        %2509 = vmatpush1.msra.mxu0 %v2259
        %2510 = vmatprep.subr.mxu0 0.0
        %2511 = vmatpush1.msra.mxu0 %v2260
        %2512 = vmatprep.subr.mxu0 0.0
        %2513 = vmatpush1.msra.mxu0 %v2261
        %2514 = vmatprep.subr.mxu0 0.0
        %2515 = vmatpush1.msra.mxu0 %v2262
        %2516 = vmatprep.subr.mxu0 0.0
        %2517 = vmatpush1.msra.mxu0 %v2263
        %2518 = vmatprep.subr.mxu0 0.0
        %2519 = vmatpush1.msra.mxu0 %v2264
        %2520 = vmatprep.subr.mxu0 0.0
        %2521 = vmatpush1.msra.mxu0 %v2265
        %2522 = vmatprep.subr.mxu0 0.0
        %2523 = vmatpush1.msra.mxu0 %v2266
        %2524 = vmatprep.subr.mxu0 0.0
        %2525 = vmatpush1.msra.mxu0 %v2267
        %2526 = vmatprep.subr.mxu0 0.0
        %2527 = vmatpush1.msra.mxu0 %v2268
        %2528 = vmatprep.subr.mxu0 0.0
        %2529 = vmatpush1.msra.mxu0 %v2269
        %2530 = vmatprep.subr.mxu0 0.0
        %2531 = vmatpush1.msra.mxu0 %v2270
        %2532 = vmatprep.subr.mxu0 0.0
        %2533 = vmatpush1.msra.mxu0 0.0
        %2534 = vmatprep.subr.mxu0 0.0
        %2535 = vmatpush1.msra.mxu0 0.0
        %2536 = vmatprep.subr.mxu0 0.0
        %2537 = vmatpush1.msra.mxu0 0.0
        %2538 = vmatprep.subr.mxu0 0.0
        %2539 = vmatpush1.msra.mxu0 0.0
        %2540 = vmatprep.subr.mxu0 0.0
        %2541 = vmatpush1.msra.mxu0 0.0
        %2542 = vmatprep.subr.mxu0 0.0
        %2543 = vmatpush1.msra.mxu0 0.0
        %2544 = vmatprep.subr.mxu0 0.0
        %2545 = vmatpush1.msra.mxu0 0.0
        %2546 = vmatprep.subr.mxu0 0.0
        %2547 = vmatpush1.msra.mxu0 0.0
        %2548 = vmatprep.subr.mxu0 0.0
        %2549 = vmatpush1.msra.mxu0 0.0
        %2550 = vmatprep.subr.mxu0 0.0
        %2551 = vmatpush1.msra.mxu0 0.0
        %2552 = vmatprep.subr.mxu0 0.0
        %2553 = vmatpush1.msra.mxu0 0.0
        %2554 = vmatprep.subr.mxu0 0.0
        %2555 = vmatpush1.msra.mxu0 0.0
        %2556 = vmatprep.subr.mxu0 0.0
        %2557 = vmatpush1.msra.mxu0 0.0
        %2558 = vmatprep.subr.mxu0 0.0
        %2559 = vmatpush1.msra.mxu0 0.0
        %2560 = vmatprep.subr.mxu0 0.0
        %2561 = vmatpush1.msra.mxu0 0.0
        %2562 = vmatprep.subr.mxu0 0.0
        %2563 = vmatpush1.msra.mxu0 0.0
        %2564 = vmatprep.mubr.f32.mxu0 0.0
        %2565 = vmatmul.mubr.f32.gmra.mrb[0].mxu0 %v2498
        %v2566 = vpop.f32.mrb[0].mxu0
        %v2567 = vadd.f32 0.0, %v2566
        %v2568 = vpop.f32.mrb[0].mxu0
        %2569 = vmatprep.mubr.f32.mxu0 0.0
        %2570 = vmatmul.mubr.f32.gmra.mrb[0].mxu0 %v2499
        %v2571 = vpop.f32.mrb[0].mxu0
        %v2572 = vadd.f32 0.0, %v2571
        %v2573 = vpop.f32.mrb[0].mxu0
        %2574 = vdwg.mxu0
        %s2575 = scalar_lea.vmem [#allocation7], 1536
        %v2576 = vld [vmem:[%s2575] sm:$0xff]
        %v2577 = vld [vmem:[%s2575 + $0x8] sm:$0xff]
        %v2578 = vld [vmem:[%s2575 + $0x10] sm:$0xff]
        %v2579 = vld [vmem:[%s2575 + $0x18] sm:$0xff]
        %v2580 = vld [vmem:[%s2575 + $0x20] sm:$0xff]
        %v2581 = vld [vmem:[%s2575 + $0x28] sm:$0xff]
        %v2582 = vld [vmem:[%s2575 + $0x30] sm:$0xff]
        %v2583 = vld [vmem:[%s2575 + $0x38] sm:$0xff]
        %v2584 = vld [vmem:[%s2575 + $0x40] sm:$0xff]
        %v2585 = vld [vmem:[%s2575 + $0x48] sm:$0xff]
        %v2586 = vld [vmem:[%s2575 + $0x50] sm:$0xff]
        %v2587 = vld [vmem:[%s2575 + $0x58] sm:$0xff]
        %v2588 = vld [vmem:[%s2575 + $0x60] sm:$0xff]
        %v2589 = vld [vmem:[%s2575 + $0x68] sm:$0xff]
        %v2590 = vld [vmem:[%s2575 + $0x70] sm:$0xff]
        %v2591 = vld [vmem:[%s2575 + $0x78] sm:$0xff]
        %v2592 = vld [vmem:[%s2575 + $0x80] sm:$0xff]
        %v2593 = vld [vmem:[%s2575 + $0x88] sm:$0xff]
        %v2594 = vld [vmem:[%s2575 + $0x90] sm:$0xff]
        %v2595 = vld [vmem:[%s2575 + $0x98] sm:$0xff]
        %v2596 = vld [vmem:[%s2575 + $0xa0] sm:$0xff]
        %v2597 = vld [vmem:[%s2575 + $0xa8] sm:$0xff]
        %v2598 = vld [vmem:[%s2575 + $0xb0] sm:$0xff]
        %v2599 = vld [vmem:[%s2575 + $0xb8] sm:$0xff]
        %v2600 = vld [vmem:[%s2575 + $0xc0] sm:$0xff]
        %v2601 = vld [vmem:[%s2575 + $0xc8] sm:$0xff]
        %v2602 = vld [vmem:[%s2575 + $0xd0] sm:$0xff]
        %v2603 = vld [vmem:[%s2575 + $0xd8] sm:$0xff]
        %v2604 = vld [vmem:[%s2575 + $0xe0] sm:$0xff]
        %v2605 = vld [vmem:[%s2575 + $0xe8] sm:$0xff]
        %v2606 = vld [vmem:[%s2575 + $0xf0] sm:$0xff]
        %v2607 = vld [vmem:[%s2575 + $0xf8] sm:$0xff]
        %s2608 = scalar_lea.vmem [#allocation8], 768
        %v2609 = vld [vmem:[%s2608] sm:$0xff]
        %v2610 = vld [vmem:[%s2608 + $0x8] sm:$0xff]
        %v2611 = vld [vmem:[%s2608 + $0x10] sm:$0xff]
        %v2612 = vld [vmem:[%s2608 + $0x18] sm:$0xff]
        %v2613 = vld [vmem:[%s2608 + $0x20] sm:$0xff]
        %v2614 = vld [vmem:[%s2608 + $0x28] sm:$0xff]
        %v2615 = vld [vmem:[%s2608 + $0x30] sm:$0xff]
        %v2616 = vld [vmem:[%s2608 + $0x38] sm:$0xff]
        %v2617 = vld [vmem:[%s2608 + $0x40] sm:$0xff]
        %v2618 = vld [vmem:[%s2608 + $0x48] sm:$0xff]
        %v2619 = vld [vmem:[%s2608 + $0x50] sm:$0xff]
        %v2620 = vld [vmem:[%s2608 + $0x58] sm:$0xff]
        %v2621 = vld [vmem:[%s2608 + $0x60] sm:$0xff]
        %v2622 = vld [vmem:[%s2608 + $0x68] sm:$0xff]
        %v2623 = vld [vmem:[%s2608 + $0x70] sm:$0xff]
        %v2624 = vld [vmem:[%s2608 + $0x78] sm:$0xff]
        %2625 = vmatprep.subr.mxu0 0.0
        %2626 = vmatpush1.msra.mxu0 %v2576
        %2627 = vmatprep.subr.mxu0 0.0
        %2628 = vmatpush1.msra.mxu0 %v2577
        %2629 = vmatprep.subr.mxu0 0.0
        %2630 = vmatpush1.msra.mxu0 %v2578
        %2631 = vmatprep.subr.mxu0 0.0
        %2632 = vmatpush1.msra.mxu0 %v2579
        %2633 = vmatprep.subr.mxu0 0.0
        %2634 = vmatpush1.msra.mxu0 %v2580
        %2635 = vmatprep.subr.mxu0 0.0
        %2636 = vmatpush1.msra.mxu0 %v2581
        %2637 = vmatprep.subr.mxu0 0.0
        %2638 = vmatpush1.msra.mxu0 %v2582
        %2639 = vmatprep.subr.mxu0 0.0
        %2640 = vmatpush1.msra.mxu0 %v2583
        %2641 = vmatprep.subr.mxu0 0.0
        %2642 = vmatpush1.msra.mxu0 %v2584
        %2643 = vmatprep.subr.mxu0 0.0
        %2644 = vmatpush1.msra.mxu0 %v2585
        %2645 = vmatprep.subr.mxu0 0.0
        %2646 = vmatpush1.msra.mxu0 %v2586
        %2647 = vmatprep.subr.mxu0 0.0
        %2648 = vmatpush1.msra.mxu0 %v2587
        %2649 = vmatprep.subr.mxu0 0.0
        %2650 = vmatpush1.msra.mxu0 %v2588
        %2651 = vmatprep.subr.mxu0 0.0
        %2652 = vmatpush1.msra.mxu0 %v2589
        %2653 = vmatprep.subr.mxu0 0.0
        %2654 = vmatpush1.msra.mxu0 %v2590
        %2655 = vmatprep.subr.mxu0 0.0
        %2656 = vmatpush1.msra.mxu0 %v2591
        %2657 = vmatprep.subr.mxu0 0.0
        %2658 = vmatpush1.msra.mxu0 %v2592
        %2659 = vmatprep.subr.mxu0 0.0
        %2660 = vmatpush1.msra.mxu0 %v2593
        %2661 = vmatprep.subr.mxu0 0.0
        %2662 = vmatpush1.msra.mxu0 %v2594
        %2663 = vmatprep.subr.mxu0 0.0
        %2664 = vmatpush1.msra.mxu0 %v2595
        %2665 = vmatprep.subr.mxu0 0.0
        %2666 = vmatpush1.msra.mxu0 %v2596
        %2667 = vmatprep.subr.mxu0 0.0
        %2668 = vmatpush1.msra.mxu0 %v2597
        %2669 = vmatprep.subr.mxu0 0.0
        %2670 = vmatpush1.msra.mxu0 %v2598
        %2671 = vmatprep.subr.mxu0 0.0
        %2672 = vmatpush1.msra.mxu0 %v2599
        %2673 = vmatprep.subr.mxu0 0.0
        %2674 = vmatpush1.msra.mxu0 %v2600
        %2675 = vmatprep.subr.mxu0 0.0
        %2676 = vmatpush1.msra.mxu0 %v2601
        %2677 = vmatprep.subr.mxu0 0.0
        %2678 = vmatpush1.msra.mxu0 %v2602
        %2679 = vmatprep.subr.mxu0 0.0
        %2680 = vmatpush1.msra.mxu0 %v2603
        %2681 = vmatprep.subr.mxu0 0.0
        %2682 = vmatpush1.msra.mxu0 %v2604
        %2683 = vmatprep.subr.mxu0 0.0
        %2684 = vmatpush1.msra.mxu0 %v2605
        %2685 = vmatprep.subr.mxu0 0.0
        %2686 = vmatpush1.msra.mxu0 %v2606
        %2687 = vmatprep.subr.mxu0 0.0
        %2688 = vmatpush1.msra.mxu0 %v2607
        %2689 = vmatprep.mubr.f32.mxu0 %v296
        %2690 = vmatmul.mubr.f32.gmra.mrb[0].mxu0 %v295
        %v2691 = vpop.f32.mrb[0].mxu0
        %v2692 = vadd.f32 0.0, %v2691
        %v2693 = vpop.f32.mrb[0].mxu0
        %2694 = vmatprep.mubr.f32.mxu0 %v298
        %2695 = vmatmul.mubr.f32.gmra.mrb[0].mxu0 %v297
        %v2696 = vpop.f32.mrb[0].mxu0
        %v2697 = vadd.f32 0.0, %v2696
        %v2698 = vpop.f32.mrb[0].mxu0
        %2699 = vdwg.mxu0
        %2700 = vmatprep.subr.mxu0 0.0
        %2701 = vmatpush1.msra.mxu0 %v2576
        %2702 = vmatprep.subr.mxu0 0.0
        %2703 = vmatpush1.msra.mxu0 %v2577
        %2704 = vmatprep.subr.mxu0 0.0
        %2705 = vmatpush1.msra.mxu0 %v2578
        %2706 = vmatprep.subr.mxu0 0.0
        %2707 = vmatpush1.msra.mxu0 %v2579
        %2708 = vmatprep.subr.mxu0 0.0
        %2709 = vmatpush1.msra.mxu0 %v2580
        %2710 = vmatprep.subr.mxu0 0.0
        %2711 = vmatpush1.msra.mxu0 %v2581
        %2712 = vmatprep.subr.mxu0 0.0
        %2713 = vmatpush1.msra.mxu0 %v2582
        %2714 = vmatprep.subr.mxu0 0.0
        %2715 = vmatpush1.msra.mxu0 %v2583
        %2716 = vmatprep.subr.mxu0 0.0
        %2717 = vmatpush1.msra.mxu0 %v2584
        %2718 = vmatprep.subr.mxu0 0.0
        %2719 = vmatpush1.msra.mxu0 %v2585
        %2720 = vmatprep.subr.mxu0 0.0
        %2721 = vmatpush1.msra.mxu0 %v2586
        %2722 = vmatprep.subr.mxu0 0.0
        %2723 = vmatpush1.msra.mxu0 %v2587
        %2724 = vmatprep.subr.mxu0 0.0
        %2725 = vmatpush1.msra.mxu0 %v2588
        %2726 = vmatprep.subr.mxu0 0.0
        %2727 = vmatpush1.msra.mxu0 %v2589
        %2728 = vmatprep.subr.mxu0 0.0
        %2729 = vmatpush1.msra.mxu0 %v2590
        %2730 = vmatprep.subr.mxu0 0.0
        %2731 = vmatpush1.msra.mxu0 %v2591
        %2732 = vmatprep.subr.mxu0 0.0
        %2733 = vmatpush1.msra.mxu0 %v2592
        %2734 = vmatprep.subr.mxu0 0.0
        %2735 = vmatpush1.msra.mxu0 %v2593
        %2736 = vmatprep.subr.mxu0 0.0
        %2737 = vmatpush1.msra.mxu0 %v2594
        %2738 = vmatprep.subr.mxu0 0.0
        %2739 = vmatpush1.msra.mxu0 %v2595
        %2740 = vmatprep.subr.mxu0 0.0
        %2741 = vmatpush1.msra.mxu0 %v2596
        %2742 = vmatprep.subr.mxu0 0.0
        %2743 = vmatpush1.msra.mxu0 %v2597
        %2744 = vmatprep.subr.mxu0 0.0
        %2745 = vmatpush1.msra.mxu0 %v2598
        %2746 = vmatprep.subr.mxu0 0.0
        %2747 = vmatpush1.msra.mxu0 %v2599
        %2748 = vmatprep.subr.mxu0 0.0
        %2749 = vmatpush1.msra.mxu0 %v2600
        %2750 = vmatprep.subr.mxu0 0.0
        %2751 = vmatpush1.msra.mxu0 %v2601
        %2752 = vmatprep.subr.mxu0 0.0
        %2753 = vmatpush1.msra.mxu0 %v2602
        %2754 = vmatprep.subr.mxu0 0.0
        %2755 = vmatpush1.msra.mxu0 %v2603
        %2756 = vmatprep.subr.mxu0 0.0
        %2757 = vmatpush1.msra.mxu0 %v2604
        %2758 = vmatprep.subr.mxu0 0.0
        %2759 = vmatpush1.msra.mxu0 %v2605
        %2760 = vmatprep.subr.mxu0 0.0
        %2761 = vmatpush1.msra.mxu0 %v2606
        %2762 = vmatprep.subr.mxu0 0.0
        %2763 = vmatpush1.msra.mxu0 %v2607
        %2764 = vmatprep.mubr.f32.mxu0 %v300
        %2765 = vmatmul.mubr.f32.gmra.mrb[0].mxu0 %v299
        %v2766 = vpop.f32.mrb[0].mxu0
        %v2767 = vadd.f32 0.0, %v2766
        %v2768 = vpop.f32.mrb[0].mxu0
        %2769 = vmatprep.mubr.f32.mxu0 %v302
        %2770 = vmatmul.mubr.f32.gmra.mrb[0].mxu0 %v301
        %v2771 = vpop.f32.mrb[0].mxu0
        %v2772 = vadd.f32 0.0, %v2771
        %v2773 = vpop.f32.mrb[0].mxu0
        %2774 = vdwg.mxu0
        %v2775 = vmul.f32 %v2490, %v2692
        %v2776 = vmul.f32 %v2495, %v2697
        %2777 = vmatprep.subr.mxu0 0.0
        %2778 = vmatpush1.msra.mxu0 %v2609
        %2779 = vmatprep.subr.mxu0 0.0
        %2780 = vmatpush1.msra.mxu0 %v2610
        %2781 = vmatprep.subr.mxu0 0.0
        %2782 = vmatpush1.msra.mxu0 %v2611
        %2783 = vmatprep.subr.mxu0 0.0
        %2784 = vmatpush1.msra.mxu0 %v2612
        %2785 = vmatprep.subr.mxu0 0.0
        %2786 = vmatpush1.msra.mxu0 %v2613
        %2787 = vmatprep.subr.mxu0 0.0
        %2788 = vmatpush1.msra.mxu0 %v2614
        %2789 = vmatprep.subr.mxu0 0.0
        %2790 = vmatpush1.msra.mxu0 %v2615
        %2791 = vmatprep.subr.mxu0 0.0
        %2792 = vmatpush1.msra.mxu0 %v2616
        %2793 = vmatprep.subr.mxu0 0.0
        %2794 = vmatpush1.msra.mxu0 %v2617
        %2795 = vmatprep.subr.mxu0 0.0
        %2796 = vmatpush1.msra.mxu0 %v2618
        %2797 = vmatprep.subr.mxu0 0.0
        %2798 = vmatpush1.msra.mxu0 %v2619
        %2799 = vmatprep.subr.mxu0 0.0
        %2800 = vmatpush1.msra.mxu0 %v2620
        %2801 = vmatprep.subr.mxu0 0.0
        %2802 = vmatpush1.msra.mxu0 %v2621
        %2803 = vmatprep.subr.mxu0 0.0
        %2804 = vmatpush1.msra.mxu0 %v2622
        %2805 = vmatprep.subr.mxu0 0.0
        %2806 = vmatpush1.msra.mxu0 %v2623
        %2807 = vmatprep.subr.mxu0 0.0
        %2808 = vmatpush1.msra.mxu0 %v2624
        %2809 = vmatprep.subr.mxu0 0.0
        %2810 = vmatpush1.msra.mxu0 0.0
        %2811 = vmatprep.subr.mxu0 0.0
        %2812 = vmatpush1.msra.mxu0 0.0
        %2813 = vmatprep.subr.mxu0 0.0
        %2814 = vmatpush1.msra.mxu0 0.0
        %2815 = vmatprep.subr.mxu0 0.0
        %2816 = vmatpush1.msra.mxu0 0.0
        %2817 = vmatprep.subr.mxu0 0.0
        %2818 = vmatpush1.msra.mxu0 0.0
        %2819 = vmatprep.subr.mxu0 0.0
        %2820 = vmatpush1.msra.mxu0 0.0
        %2821 = vmatprep.subr.mxu0 0.0
        %2822 = vmatpush1.msra.mxu0 0.0
        %2823 = vmatprep.subr.mxu0 0.0
        %2824 = vmatpush1.msra.mxu0 0.0
        %2825 = vmatprep.subr.mxu0 0.0
        %2826 = vmatpush1.msra.mxu0 0.0
        %2827 = vmatprep.subr.mxu0 0.0
        %2828 = vmatpush1.msra.mxu0 0.0
        %2829 = vmatprep.subr.mxu0 0.0
        %2830 = vmatpush1.msra.mxu0 0.0
        %2831 = vmatprep.subr.mxu0 0.0
        %2832 = vmatpush1.msra.mxu0 0.0
        %2833 = vmatprep.subr.mxu0 0.0
        %2834 = vmatpush1.msra.mxu0 0.0
        %2835 = vmatprep.subr.mxu0 0.0
        %2836 = vmatpush1.msra.mxu0 0.0
        %2837 = vmatprep.subr.mxu0 0.0
        %2838 = vmatpush1.msra.mxu0 0.0
        %2839 = vmatprep.subr.mxu0 0.0
        %2840 = vmatpush1.msra.mxu0 0.0
        %2841 = vmatprep.mubr.f32.mxu0 0.0
        %2842 = vmatmul.mubr.f32.gmra.mrb[0].mxu0 %v2775
        %v2843 = vpop.f32.mrb[0].mxu0
        %v2844 = vadd.f32 0.0, %v2843
        %v2845 = vpop.f32.mrb[0].mxu0
        %2846 = vmatprep.mubr.f32.mxu0 0.0
        %2847 = vmatmul.mubr.f32.gmra.mrb[0].mxu0 %v2776
        %v2848 = vpop.f32.mrb[0].mxu0
        %v2849 = vadd.f32 0.0, %v2848
        %v2850 = vpop.f32.mrb[0].mxu0
        %2851 = vdwg.mxu0
        %v2852 = vmul.f32 %v2567, %v2767
        %v2853 = vmul.f32 %v2572, %v2772
        %2854 = vmatprep.subr.mxu0 0.0
        %2855 = vmatpush1.msra.mxu0 %v2609
        %2856 = vmatprep.subr.mxu0 0.0
        %2857 = vmatpush1.msra.mxu0 %v2610
        %2858 = vmatprep.subr.mxu0 0.0
        %2859 = vmatpush1.msra.mxu0 %v2611
        %2860 = vmatprep.subr.mxu0 0.0
        %2861 = vmatpush1.msra.mxu0 %v2612
        %2862 = vmatprep.subr.mxu0 0.0
        %2863 = vmatpush1.msra.mxu0 %v2613
        %2864 = vmatprep.subr.mxu0 0.0
        %2865 = vmatpush1.msra.mxu0 %v2614
        %2866 = vmatprep.subr.mxu0 0.0
        %2867 = vmatpush1.msra.mxu0 %v2615
        %2868 = vmatprep.subr.mxu0 0.0
        %2869 = vmatpush1.msra.mxu0 %v2616
        %2870 = vmatprep.subr.mxu0 0.0
        %2871 = vmatpush1.msra.mxu0 %v2617
        %2872 = vmatprep.subr.mxu0 0.0
        %2873 = vmatpush1.msra.mxu0 %v2618
        %2874 = vmatprep.subr.mxu0 0.0
        %2875 = vmatpush1.msra.mxu0 %v2619
        %2876 = vmatprep.subr.mxu0 0.0
        %2877 = vmatpush1.msra.mxu0 %v2620
        %2878 = vmatprep.subr.mxu0 0.0
        %2879 = vmatpush1.msra.mxu0 %v2621
        %2880 = vmatprep.subr.mxu0 0.0
        %2881 = vmatpush1.msra.mxu0 %v2622
        %2882 = vmatprep.subr.mxu0 0.0
        %2883 = vmatpush1.msra.mxu0 %v2623
        %2884 = vmatprep.subr.mxu0 0.0
        %2885 = vmatpush1.msra.mxu0 %v2624
        %2886 = vmatprep.subr.mxu0 0.0
        %2887 = vmatpush1.msra.mxu0 0.0
        %2888 = vmatprep.subr.mxu0 0.0
        %2889 = vmatpush1.msra.mxu0 0.0
        %2890 = vmatprep.subr.mxu0 0.0
        %2891 = vmatpush1.msra.mxu0 0.0
        %2892 = vmatprep.subr.mxu0 0.0
        %2893 = vmatpush1.msra.mxu0 0.0
        %2894 = vmatprep.subr.mxu0 0.0
        %2895 = vmatpush1.msra.mxu0 0.0
        %2896 = vmatprep.subr.mxu0 0.0
        %2897 = vmatpush1.msra.mxu0 0.0
        %2898 = vmatprep.subr.mxu0 0.0
        %2899 = vmatpush1.msra.mxu0 0.0
        %2900 = vmatprep.subr.mxu0 0.0
        %2901 = vmatpush1.msra.mxu0 0.0
        %2902 = vmatprep.subr.mxu0 0.0
        %2903 = vmatpush1.msra.mxu0 0.0
        %2904 = vmatprep.subr.mxu0 0.0
        %2905 = vmatpush1.msra.mxu0 0.0
        %2906 = vmatprep.subr.mxu0 0.0
        %2907 = vmatpush1.msra.mxu0 0.0
        %2908 = vmatprep.subr.mxu0 0.0
        %2909 = vmatpush1.msra.mxu0 0.0
        %2910 = vmatprep.subr.mxu0 0.0
        %2911 = vmatpush1.msra.mxu0 0.0
        %2912 = vmatprep.subr.mxu0 0.0
        %2913 = vmatpush1.msra.mxu0 0.0
        %2914 = vmatprep.subr.mxu0 0.0
        %2915 = vmatpush1.msra.mxu0 0.0
        %2916 = vmatprep.subr.mxu0 0.0
        %2917 = vmatpush1.msra.mxu0 0.0
        %2918 = vmatprep.mubr.f32.mxu0 0.0
        %2919 = vmatmul.mubr.f32.gmra.mrb[0].mxu0 %v2852
        %v2920 = vpop.f32.mrb[0].mxu0
        %v2921 = vadd.f32 0.0, %v2920
        %v2922 = vpop.f32.mrb[0].mxu0
        %2923 = vmatprep.mubr.f32.mxu0 0.0
        %2924 = vmatmul.mubr.f32.gmra.mrb[0].mxu0 %v2853
        %v2925 = vpop.f32.mrb[0].mxu0
        %v2926 = vadd.f32 0.0, %v2925
        %v2927 = vpop.f32.mrb[0].mxu0
        %2928 = vdwg.mxu0
        %2929 = vst [vmem:[%s260] sm:$0xff] %v2844
        %2930 = vst [vmem:[%s260 + $0x8] sm:$0xff] %v2849
        %2931 = vst [vmem:[%s260 + $0x10] sm:$0xff] %v2921
        %2932 = vst [vmem:[%s260 + $0x18] sm:$0xff] %v2926
        %s2933 = sand.u32 %s120, 1
        %s2934 = scalar_lea.sflag [#allocation4], %s2933
        %s2935 = sand.u32 %s120, 1
        %s2936 = smul.addr %s2935, 32
        %s2937 = scalar_lea.vmem [#allocation10], %s2936
        // Predicated region
        $region53: #{tpu_custom_call.1} parent=35 // pred_check
          %p2938 = pneg %p130
        $region54: #{tpu_custom_call.1} parent=35 // pred_check_branch
          %2940 = sbr.rel (%p2938) target = $region56
        $region55: #{tpu_custom_call.1} parent=35 // pred_region
          %s2941 = smul.u32 4, %s23
          %s2943 = ssub.s32 512, 512
          %2944 = vsyncadd %s2934, %s2943
          %s2945 = smul.addr %s2941, 128
          %s2946 = scalar_lea.hbm %s4, %s2945
          %s2947 = sshll.u32 %s2937, 4
          %s2948 = int_to_ptr.vmem [resolvable:$true] %s2947
          %2953 = dma.vmem_to_hbm [thread:$0]  %s2948, 512, %s2946, %s2934, 128, 128, 8
        $region56: #{tpu_custom_call.1} parent=35 // pred_fallthru
          _
      $region36: #{tpu_custom_call.1} parent=5 // pred_fallthru
        _
      %p2954 = scmp.le.s32.totalorder 2, %s18
      // Predicated region
      $region57: #{tpu_custom_call.1} parent=5 // pred_check
        %p2955 = pneg %p2954
      $region58: #{tpu_custom_call.1} parent=5 // pred_check_branch
        %2957 = sbr.rel (%p2955) target = $region60
      $region59: #{tpu_custom_call.1} parent=5 // pred_region
        %s2958 = ssub.s32 %s18, 2
        // Predicated region
        $region61: #{tpu_custom_call.1} parent=59 // pred_check
          %p2959 = pneg %p136
        $region62: #{tpu_custom_call.1} parent=59 // pred_check_branch
          %2961 = sbr.rel (%p2959) target = $region64
        $region63: #{tpu_custom_call.1} parent=59 // pred_region
          %s2962 = sand.u32 %s121, 1
          %s2963 = scalar_lea.sflag [#allocation4], %s2962
          %s2964 = sand.u32 %s121, 1
          %s2965 = smul.addr %s2964, 32
          %s2966 = scalar_lea.vmem [#allocation10], %s2965
          %2967 = dma.done %s2963, 512
        $region64: #{tpu_custom_call.1} parent=59 // pred_fallthru
          _
      $region60: #{tpu_custom_call.1} parent=5 // pred_fallthru
        _
    $region6: #{tpu_custom_call.1} parent=1 // loop_footer
      %s22 = sadd.s32 1, %s18
    $region7: #{tpu_custom_call.1} parent=1 // loop_footer_branch
      %17 = sbr.rel target = $region3
    $region8: #{tpu_custom_call.1} parent=1 // loop_exit
      _
    %2968 = vsyncpa [#allocation3], 1
    %s2969 = scalar_lea.sflag [#allocation3], 1
    %2970 = vsyncpa %s2969, 1
    %2971 = vsyncpa [#allocation6], 1
    %2972 = vsyncpa [#allocation9], 1
    %2973 = vsyncpa [#allocation4], 1
    %s2974 = scalar_lea.sflag [#allocation4], 1
    %2975 = vsyncpa %s2974, 1

</llo_original>
